<compile_context>
chip_gen: v7x
topology: tpu7x:2x2x1
jax: 0.10.0
libtpu: 0.0.40
codegen_flags: <defaults>
</compile_context>

<pallas_src>
from functools import partial

import numpy as np
import jax
import jax.numpy as jnp
from jax.experimental import pallas as pl
from jax.experimental.pallas import tpu as pltpu


# ----------------------------------------------------------------------------
# Kernel 1: channel-major point MLP (conv1 -> conv2 -> conv3, BN folded) with
#           a lane-dense running max over points.  The conv3 bias + ReLU is
#           applied once per batch AFTER pooling (max/relu commute, see top).
#           grid = (n_split, B, tiles_per_split)
# ----------------------------------------------------------------------------
def point_mlp_kernel(x_ref, w1_ref, t1_ref, w2_ref, t2_ref, w3_ref, t3_ref,
                     o_ref, m_ref):
    n = pl.program_id(2)

    x = x_ref[0].astype(jnp.bfloat16)                              # (K, TN)

    h = jnp.dot(w1_ref[...], x, preferred_element_type=jnp.float32)
    h = jnp.maximum(h + t1_ref[...], 0.0)                          # (64, TN)
    h = jnp.dot(w2_ref[...], h.astype(jnp.bfloat16),
                preferred_element_type=jnp.float32)
    h = jnp.maximum(h + t2_ref[...], 0.0)                          # (128, TN)
    z = jnp.dot(w3_ref[...], h.astype(jnp.bfloat16),
                preferred_element_type=jnp.float32)                # (1024, TN)
    # NOTE: no bias / ReLU here -- applied after pooling (monotone, t3 const).

    # Fold the TN point-lanes down to 128 with pure elementwise maxima
    # (static 128-aligned lane slices -> VPU only, no cross-lane work).
    tn = z.shape[1]
    g = tn // 128
    if g > 0:
        tile_max = z[:, :128]
        for i in range(1, g):                      # static, unrolled
            tile_max = jnp.maximum(tile_max, z[:, i * 128:(i + 1) * 128])
    else:                                          # tiny-N fallback (tn < 128)
        tile_max = jnp.full((z.shape[0], 128), -jnp.inf, dtype=z.dtype)
    r = tn - g * 128
    if r > 0:                                      # ragged tail (N % 128 != 0)
        tail = jnp.max(z[:, g * 128:], axis=1, keepdims=True)     # (1024, 1)
        tile_max = jnp.maximum(tile_max, tail)

    @pl.when(n == 0)
    def _():
        m_ref[...] = tile_max

    @pl.when(n != 0)
    def _():
        m_ref[...] = jnp.maximum(m_ref[...], tile_max)

    # Finalize once per (split, batch): single 128->1 cross-lane reduce,
    # folded bn3 bias + ReLU on the pooled vector, one small writeback.
    @pl.when(n == pl.num_programs(2) - 1)
    def _():
        pooled = jnp.max(m_ref[...], axis=1, keepdims=True)        # (1024, 1)
        o_ref[0, 0] = jnp.maximum(pooled + t3_ref[...], 0.0)


# ----------------------------------------------------------------------------
# Kernel 2: FC head (fc1/bn4/relu -> fc2/bn5/relu -> fc3) with the identity
#           matrix pre-folded into the final bias.  Whole (small) batch at
#           once; tiny (<2 MFLOP) so deliberately left untuned / f32.
# ----------------------------------------------------------------------------
def head_kernel(f_ref, w4_ref, t4_ref, w5_ref, t5_ref, w6_ref, b6_ref, o_ref):
    h = jnp.dot(f_ref[...], w4_ref[...], preferred_element_type=jnp.float32)
    h = jnp.maximum(h + t4_ref[...], 0.0)                          # (B, 512)
    h = jnp.dot(h, w5_ref[...], preferred_element_type=jnp.float32)
    h = jnp.maximum(h + t5_ref[...], 0.0)                          # (B, 256)
    out = jnp.dot(h, w6_ref[...], preferred_element_type=jnp.float32)
    o_ref[...] = out + b6_ref[...]                                 # (B, k*k)


# ----------------------------------------------------------------------------
# Parameter preparation (eval-mode BN fold)
# ----------------------------------------------------------------------------
def _fold_bn_conv(w, b, bn, eps=1e-5):
    """relu(BN(W x + b)) == relu(W_f x + t), channel-major (Cout, Cin)."""
    g, beta, m, v = bn
    s = g / jnp.sqrt(v + eps)
    wf = (w * s[:, None]).astype(jnp.bfloat16)                     # (Cout, Cin)
    t = ((b - m) * s + beta).reshape(-1, 1).astype(jnp.float32)    # (Cout, 1)
    return wf, t


def _fold_bn_fc(w, b, bn, eps=1e-5):
    """Same fold, transposed for the row-major FC head: relu(x @ W_f + t)."""
    g, beta, m, v = bn
    s = g / jnp.sqrt(v + eps)
    wf = (w * s[:, None]).T.astype(jnp.float32)                    # (Cin, Cout)
    t = ((b - m) * s + beta).reshape(1, -1).astype(jnp.float32)    # (1, Cout)
    return wf, t


def _pick_tile_n(n):
    # Prefer big tiles: per-grid-step overhead (~0.35 us) is a double-digit
    # fraction of runtime at small TN; even TN=2048 peaks at ~14 MiB of VMEM.
    for t in (2048, 1024, 512, 256, 128):
        if n % t == 0:
            return t
    return n  # fall back to one full-extent tile for small / odd N


# ----------------------------------------------------------------------------
# Forward
# ----------------------------------------------------------------------------
@partial(jax.jit, static_argnums=(2,))
def stnkd_forward(x_bkn, params, k):
    """x_bkn: (B, K, N) float32 -- same layout as the PyTorch module input."""
    B, K, N = x_bkn.shape
    tn = _pick_tile_n(N)
    total_tiles = N // tn
    # v7x has 2 TensorCores: when the batch alone under-fills them (B odd /
    # B == 1), also shard the point axis "parallel" and combine partial maxima
    # in the wrapper (correct because max commutes with relu(.+t3)).
    n_split = 2 if (B % 2 == 1 and total_tiles >= 2 and total_tiles % 2 == 0) else 1
    tiles_per_split = total_tiles // n_split

    w1, t1 = _fold_bn_conv(params["w1"], params["b1"], params["bn1"])
    w2, t2 = _fold_bn_conv(params["w2"], params["b2"], params["bn2"])
    w3, t3 = _fold_bn_conv(params["w3"], params["b3"], params["bn3"])
    w4, t4 = _fold_bn_fc(params["w4"], params["b4"], params["bn4"])
    w5, t5 = _fold_bn_fc(params["w5"], params["b5"], params["bn5"])
    w6 = params["w6"].T.astype(jnp.float32)                        # (256, k*k)
    b6 = (params["b6"] + jnp.eye(k, dtype=jnp.float32).reshape(-1)
          ).reshape(1, k * k).astype(jnp.float32)                  # bias + identity

    const = lambda a: pl.BlockSpec(a.shape, lambda s, b, n: (0,) * a.ndim)

    flops = 2 * B * N * (64 * K + 128 * 64 + 1024 * 128)
    bytes_accessed = (4 * B * K * N + 4 * B * 1024
                      + 2 * (64 * K + 128 * 64 + 1024 * 128))

    partial_max = pl.pallas_call(
        point_mlp_kernel,
        out_shape=jax.ShapeDtypeStruct((n_split, B, 1024, 1), jnp.float32),
        grid_spec=pltpu.PrefetchScalarGridSpec(
            num_scalar_prefetch=0,
            grid=(n_split, B, tiles_per_split),
            in_specs=[pl.BlockSpec(
                          (1, K, tn),
                          lambda s, b, n: (b, 0, s * tiles_per_split + n)),
                      const(w1), const(t1), const(w2), const(t2),
                      const(w3), const(t3)],
            out_specs=pl.BlockSpec((1, 1, 1024, 1),
                                   lambda s, b, n: (s, b, 0, 0)),
            scratch_shapes=[pltpu.VMEM((1024, 128), jnp.float32)],
        ),
        compiler_params=pltpu.CompilerParams(
            dimension_semantics=("parallel", "parallel", "arbitrary"),
            vmem_limit_bytes=48 * 1024 * 1024),
        cost_estimate=pl.CostEstimate(flops=flops, transcendentals=0,
                                      bytes_accessed=bytes_accessed),
    )(x_bkn, w1, t1, w2, t2, w3, t3)

    # Combine per-split partial results (elementwise max) and drop unit dims.
    # HBM bytes of (n_split, B, 1024, 1) are contiguous, so this is one tiny
    # XLA op (a plain reshape when n_split == 1).
    feats = jnp.max(partial_max, axis=0).reshape(B, 1024)

    full = lambda a: pl.BlockSpec(a.shape, lambda: (0,) * a.ndim)
    out = pl.pallas_call(
        head_kernel,
        out_shape=jax.ShapeDtypeStruct((B, k * k), jnp.float32),
        grid=(),
        in_specs=[full(feats), full(w4), full(t4), full(w5), full(t5),
                  full(w6), full(b6)],
        out_specs=pl.BlockSpec((B, k * k), lambda: (0, 0)),
    )(feats, w4, t4, w5, t5, w6, b6)

    return out.reshape(B, k, k)


# ----------------------------------------------------------------------------
# Pure-JAX f32 reference (eval-mode BN) and parameter construction
# ----------------------------------------------------------------------------
def reference_forward(x_bkn, params, k, eps=1e-5):
    def bn(y, p):
        g, b, m, v = p
        return (y - m) / jnp.sqrt(v + eps) * g + b
    x = jnp.transpose(x_bkn, (0, 2, 1)).astype(jnp.float32)        # (B, N, K)
    h = jax.nn.relu(bn(x @ params["w1"].T + params["b1"], params["bn1"]))
    h = jax.nn.relu(bn(h @ params["w2"].T + params["b2"], params["bn2"]))
    h = jax.nn.relu(bn(h @ params["w3"].T + params["b3"], params["bn3"]))
    f = jnp.max(h, axis=1)                                         # (B, 1024)
    f = jax.nn.relu(bn(f @ params["w4"].T + params["b4"], params["bn4"]))
    f = jax.nn.relu(bn(f @ params["w5"].T + params["b5"], params["bn5"]))
    f = f @ params["w6"].T + params["b6"]
    f = f + jnp.eye(k, dtype=jnp.float32).reshape(1, k * k)
    return f.reshape(-1, k, k)


def make_params(key, k):
    keys = jax.random.split(key, 32)
    ki = iter(keys)

    def lin(cout, cin):
        lim = 1.0 / np.sqrt(cin)
        w = jax.random.uniform(next(ki), (cout, cin), jnp.float32, -lim, lim)
        b = jax.random.uniform(next(ki), (cout,), jnp.float32, -lim, lim)
        return w, b

    def bn(c):
        g = 1.0 + 0.1 * jax.random.normal(next(ki), (c,), jnp.float32)
        b = 0.1 * jax.random.normal(next(ki), (c,), jnp.float32)
        m = 0.1 * jax.random.normal(next(ki), (c,), jnp.float32)
        v = jax.random.uniform(next(ki), (c,), jnp.float32, 0.5, 1.5)
        return (g, b, m, v)

    p = {}
    p["w1"], p["b1"] = lin(64, k)        # conv1: Conv1d(k, 64, 1)
    p["w2"], p["b2"] = lin(128, 64)      # conv2
    p["w3"], p["b3"] = lin(1024, 128)    # conv3
    p["w4"], p["b4"] = lin(512, 1024)    # fc1
    p["w5"], p["b5"] = lin(256, 512)     # fc2
    p["w6"], p["b6"] = lin(k * k, 256)   # fc3
    p["bn1"], p["bn2"], p["bn3"] = bn(64), bn(128), bn(1024)
    p["bn4"], p["bn5"] = bn(512), bn(256)
    return p


if __name__ == "__main__":
    K = 16    # feature dim "k" of STNkd (small for the demo)
    key = jax.random.PRNGKey(0)
    kp, kx1, kx2 = jax.random.split(key, 3)
    params = make_params(kp, K)

    # Check 1: B=2, N=1280 -> TILE_N=256, 5 point tiles, no N-split.
    B, N = 2, 1280
    x = jax.random.normal(kx1, (B, K, N), jnp.float32)   # PyTorch layout (B, k, N)
    out = jax.block_until_ready(stnkd_forward(x, params, K))
    assert out.shape == (B, K, K), out.shape
    ref = reference_forward(x, params, K)
    # bf16 MXU path in the point MLP (f32 accumulation) -> looser tolerance
    # vs. the pure-f32 reference.
    np.testing.assert_allclose(np.asarray(out), np.asarray(ref),
                               rtol=3e-2, atol=3e-2)

    # Check 2: B=1, N=4096 -> TILE_N=2048, 2 tiles, n_split=2 (v7x megacore
    # path: point axis sharded "parallel", partial maxima combined in wrapper).
    B2, N2 = 1, 4096
    x2 = jax.random.normal(kx2, (B2, K, N2), jnp.float32)
    out2 = jax.block_until_ready(stnkd_forward(x2, params, K))
    assert out2.shape == (B2, K, K), out2.shape
    ref2 = reference_forward(x2, params, K)
    np.testing.assert_allclose(np.asarray(out2), np.asarray(ref2),
                               rtol=3e-2, atol=3e-2)

    print("KERNEL_OK")
</pallas_src>

<mosaic_0001>
module attributes {stable_mosaic.version = 11 : i64} {
  func.func @point_mlp_kernel(%arg0: i32, %arg1: i32, %arg2: i32, %arg3: memref<1x16x256xf32, #tpu.memory_space<vmem>>, %arg4: memref<64x16xbf16, #tpu.memory_space<vmem>>, %arg5: memref<64x1xf32, #tpu.memory_space<vmem>>, %arg6: memref<128x64xbf16, #tpu.memory_space<vmem>>, %arg7: memref<128x1xf32, #tpu.memory_space<vmem>>, %arg8: memref<1024x128xbf16, #tpu.memory_space<vmem>>, %arg9: memref<1024x1xf32, #tpu.memory_space<vmem>>, %arg10: memref<1x1x1024x1xf32, #tpu.memory_space<vmem>>, %arg11: memref<1024x128xf32, #tpu.memory_space<vmem>>) attributes {dimension_semantics = [#tpu.dimension_semantics<parallel>, #tpu.dimension_semantics<parallel>, #tpu.dimension_semantics<arbitrary>], iteration_bounds = array<i64: 1, 2, 5>, scalar_prefetch = 0 : i64, scratch_operands = 1 : i64, tpu.core_type = #tpu.core_type<tc>, window_params = [{transform_indices = @transform_0, window_bounds = array<i64: 1, 16, 256>}, {pipeline_mode = #tpu.pipeline_mode<synchronous>, transform_indices = @transform_1, window_bounds = array<i64: 64, 16>}, {pipeline_mode = #tpu.pipeline_mode<synchronous>, transform_indices = @transform_2, window_bounds = array<i64: 64, 1>}, {pipeline_mode = #tpu.pipeline_mode<synchronous>, transform_indices = @transform_3, window_bounds = array<i64: 128, 64>}, {pipeline_mode = #tpu.pipeline_mode<synchronous>, transform_indices = @transform_4, window_bounds = array<i64: 128, 1>}, {pipeline_mode = #tpu.pipeline_mode<synchronous>, transform_indices = @transform_5, window_bounds = array<i64: 1024, 128>}, {pipeline_mode = #tpu.pipeline_mode<synchronous>, transform_indices = @transform_6, window_bounds = array<i64: 1024, 1>}, {transform_indices = @transform_7, window_bounds = array<i64: 1, 1, 1024, 1>}]} {
    %c0 = arith.constant 0 : index
    %c0_0 = arith.constant 0 : index
    %c0_1 = arith.constant 0 : index
    %0 = vector.load %arg3[%c0, %c0_0, %c0_1] : memref<1x16x256xf32, #tpu.memory_space<vmem>>, vector<1x16x256xf32>
    %1 = vector.shape_cast %0 : vector<1x16x256xf32> to vector<16x256xf32>
    %2 = arith.truncf %1 : vector<16x256xf32> to vector<16x256xbf16>
    %c0_2 = arith.constant 0 : index
    %c0_3 = arith.constant 0 : index
    %3 = vector.load %arg4[%c0_2, %c0_3] : memref<64x16xbf16, #tpu.memory_space<vmem>>, vector<64x16xbf16>
    %cst = arith.constant dense<0.000000e+00> : vector<64x256xf32>
    %4 = tpu.matmul %3, %2, %cst {dimension_numbers = #tpu.dot_dimension_numbers<[1], [0], [0], [1], [0, 0, 1, 1], [], []>} : vector<64x16xbf16>, vector<16x256xbf16>, vector<64x256xf32> -> vector<64x256xf32>
    %c0_4 = arith.constant 0 : index
    %c0_5 = arith.constant 0 : index
    %5 = vector.load %arg5[%c0_4, %c0_5] : memref<64x1xf32, #tpu.memory_space<vmem>>, vector<64x1xf32>
    %6 = vector.broadcast %5 : vector<64x1xf32> to vector<64x256xf32>
    %7 = arith.addf %4, %6 : vector<64x256xf32>
    %cst_6 = arith.constant 0.000000e+00 : f32
    %8 = vector.broadcast %cst_6 : f32 to vector<64x256xf32>
    %9 = arith.maximumf %7, %8 : vector<64x256xf32>
    %c0_7 = arith.constant 0 : index
    %c0_8 = arith.constant 0 : index
    %10 = vector.load %arg6[%c0_7, %c0_8] : memref<128x64xbf16, #tpu.memory_space<vmem>>, vector<128x64xbf16>
    %11 = arith.truncf %9 : vector<64x256xf32> to vector<64x256xbf16>
    %cst_9 = arith.constant dense<0.000000e+00> : vector<128x256xf32>
    %12 = tpu.matmul %10, %11, %cst_9 {dimension_numbers = #tpu.dot_dimension_numbers<[1], [0], [0], [1], [0, 0, 1, 1], [], []>} : vector<128x64xbf16>, vector<64x256xbf16>, vector<128x256xf32> -> vector<128x256xf32>
    %c0_10 = arith.constant 0 : index
    %c0_11 = arith.constant 0 : index
    %13 = vector.load %arg7[%c0_10, %c0_11] : memref<128x1xf32, #tpu.memory_space<vmem>>, vector<128x1xf32>
    %14 = vector.broadcast %13 : vector<128x1xf32> to vector<128x256xf32>
    %15 = arith.addf %12, %14 : vector<128x256xf32>
    %cst_12 = arith.constant 0.000000e+00 : f32
    %16 = vector.broadcast %cst_12 : f32 to vector<128x256xf32>
    %17 = arith.maximumf %15, %16 : vector<128x256xf32>
    %c0_13 = arith.constant 0 : index
    %c0_14 = arith.constant 0 : index
    %18 = vector.load %arg8[%c0_13, %c0_14] : memref<1024x128xbf16, #tpu.memory_space<vmem>>, vector<1024x128xbf16>
    %19 = arith.truncf %17 : vector<128x256xf32> to vector<128x256xbf16>
    %cst_15 = arith.constant dense<0.000000e+00> : vector<1024x256xf32>
    %20 = tpu.matmul %18, %19, %cst_15 {dimension_numbers = #tpu.dot_dimension_numbers<[1], [0], [0], [1], [0, 0, 1, 1], [], []>} : vector<1024x128xbf16>, vector<128x256xbf16>, vector<1024x256xf32> -> vector<1024x256xf32>
    %21 = vector.extract_strided_slice %20 {offsets = [0, 0], sizes = [1024, 128], strides = [1, 1]} : vector<1024x256xf32> to vector<1024x128xf32>
    %22 = vector.extract_strided_slice %20 {offsets = [0, 128], sizes = [1024, 128], strides = [1, 1]} : vector<1024x256xf32> to vector<1024x128xf32>
    %23 = arith.maximumf %21, %22 : vector<1024x128xf32>
    %c0_i32 = arith.constant 0 : i32
    %24 = arith.cmpi eq, %arg2, %c0_i32 : i32
    %25 = arith.extui %24 : i1 to i32
    %c0_i32_16 = arith.constant 0 : i32
    %26 = arith.cmpi ne, %25, %c0_i32_16 : i32
    scf.if %26 {
      %c0_20 = arith.constant 0 : index
      %c0_21 = arith.constant 0 : index
      %33 = vector.load %arg11[%c0_20, %c0_21] : memref<1024x128xf32, #tpu.memory_space<vmem>>, vector<1024x128xf32>
      tpu.vector_store %arg11[%c0_20, %c0_21], %23 {strides = array<i32>} : memref<1024x128xf32, #tpu.memory_space<vmem>>, vector<1024x128xf32>,
    } else {
    }
    %c0_i32_17 = arith.constant 0 : i32
    %27 = arith.cmpi ne, %arg2, %c0_i32_17 : i32
    %28 = arith.extui %27 : i1 to i32
    %c0_i32_18 = arith.constant 0 : i32
    %29 = arith.cmpi ne, %28, %c0_i32_18 : i32
    scf.if %29 {
      %c0_20 = arith.constant 0 : index
      %c0_21 = arith.constant 0 : index
      %33 = vector.load %arg11[%c0_20, %c0_21] : memref<1024x128xf32, #tpu.memory_space<vmem>>, vector<1024x128xf32>
      %34 = arith.maximumf %33, %23 : vector<1024x128xf32>
      %c0_22 = arith.constant 0 : index
      %c0_23 = arith.constant 0 : index
      %35 = vector.load %arg11[%c0_22, %c0_23] : memref<1024x128xf32, #tpu.memory_space<vmem>>, vector<1024x128xf32>
      tpu.vector_store %arg11[%c0_22, %c0_23], %34 {strides = array<i32>} : memref<1024x128xf32, #tpu.memory_space<vmem>>, vector<1024x128xf32>,
    } else {
    }
    %c4_i32 = arith.constant 4 : i32
    %30 = arith.cmpi eq, %arg2, %c4_i32 : i32
    %31 = arith.extui %30 : i1 to i32
    %c0_i32_19 = arith.constant 0 : i32
    %32 = arith.cmpi ne, %31, %c0_i32_19 : i32
    scf.if %32 {
      %c0_20 = arith.constant 0 : index
      %c0_21 = arith.constant 0 : index
      %33 = vector.load %arg11[%c0_20, %c0_21] : memref<1024x128xf32, #tpu.memory_space<vmem>>, vector<1024x128xf32>
      %cst_22 = arith.constant dense<0xFF800000> : vector<1024xf32>
      %34 = vector.multi_reduction <maximumf>, %33, %cst_22 [1] : vector<1024x128xf32> to vector<1024xf32>
      %35 = vector.shape_cast %34 : vector<1024xf32> to vector<1024x1xf32>
      %c0_23 = arith.constant 0 : index
      %c0_24 = arith.constant 0 : index
      %36 = vector.load %arg9[%c0_23, %c0_24] : memref<1024x1xf32, #tpu.memory_space<vmem>>, vector<1024x1xf32>
      %37 = arith.addf %35, %36 : vector<1024x1xf32>
      %cst_25 = arith.constant 0.000000e+00 : f32
      %38 = vector.broadcast %cst_25 : f32 to vector<1024x1xf32>
      %39 = arith.maximumf %37, %38 : vector<1024x1xf32>
      %c0_26 = arith.constant 0 : index
      %c0_27 = arith.constant 0 : index
      %c0_28 = arith.constant 0 : index
      %c0_29 = arith.constant 0 : index
      %40 = vector.load %arg10[%c0_26, %c0_27, %c0_28, %c0_29] : memref<1x1x1024x1xf32, #tpu.memory_space<vmem>>, vector<1x1x1024x1xf32>
      %41 = vector.shape_cast %40 : vector<1x1x1024x1xf32> to vector<1024x1xf32>
      %42 = vector.shape_cast %39 : vector<1024x1xf32> to vector<1x1x1024x1xf32>
      tpu.vector_store %arg10[%c0_26, %c0_27, %c0_28, %c0_29], %42 {strides = array<i32>} : memref<1x1x1024x1xf32, #tpu.memory_space<vmem>>, vector<1x1x1024x1xf32>,
    } else {
    }
    return
  }
  func.func @transform_0(%arg0: i32, %arg1: i32, %arg2: i32) -> (i32, i32, i32) {
    %c5_i32 = arith.constant 5 : i32
    %0 = arith.muli %arg0, %c5_i32 : i32
    %1 = arith.addi %0, %arg2 : i32
    %c0_i32 = arith.constant 0 : i32
    %c0_i32_0 = arith.constant 0 : i32
    return %arg1, %c0_i32, %1 : i32, i32, i32
  }
  func.func @transform_1(%arg0: i32, %arg1: i32, %arg2: i32) -> (i32, i32) {
    %c0_i32 = arith.constant 0 : i32
    %c0_i32_0 = arith.constant 0 : i32
    %c0_i32_1 = arith.constant 0 : i32
    return %c0_i32, %c0_i32_0 : i32, i32
  }
  func.func @transform_2(%arg0: i32, %arg1: i32, %arg2: i32) -> (i32, i32) {
    %c0_i32 = arith.constant 0 : i32
    %c0_i32_0 = arith.constant 0 : i32
    %c0_i32_1 = arith.constant 0 : i32
    return %c0_i32, %c0_i32_0 : i32, i32
  }
  func.func @transform_3(%arg0: i32, %arg1: i32, %arg2: i32) -> (i32, i32) {
    %c0_i32 = arith.constant 0 : i32
    %c0_i32_0 = arith.constant 0 : i32
    %c0_i32_1 = arith.constant 0 : i32
    return %c0_i32, %c0_i32_0 : i32, i32
  }
  func.func @transform_4(%arg0: i32, %arg1: i32, %arg2: i32) -> (i32, i32) {
    %c0_i32 = arith.constant 0 : i32
    %c0_i32_0 = arith.constant 0 : i32
    %c0_i32_1 = arith.constant 0 : i32
    return %c0_i32, %c0_i32_0 : i32, i32
  }
  func.func @transform_5(%arg0: i32, %arg1: i32, %arg2: i32) -> (i32, i32) {
    %c0_i32 = arith.constant 0 : i32
    %c0_i32_0 = arith.constant 0 : i32
    %c0_i32_1 = arith.constant 0 : i32
    return %c0_i32, %c0_i32_0 : i32, i32
  }
  func.func @transform_6(%arg0: i32, %arg1: i32, %arg2: i32) -> (i32, i32) {
    %c0_i32 = arith.constant 0 : i32
    %c0_i32_0 = arith.constant 0 : i32
    %c0_i32_1 = arith.constant 0 : i32
    return %c0_i32, %c0_i32_0 : i32, i32
  }
  func.func @transform_7(%arg0: i32, %arg1: i32, %arg2: i32) -> (i32, i32, i32, i32) {
    %c0_i32 = arith.constant 0 : i32
    %c0_i32_0 = arith.constant 0 : i32
    %c0_i32_1 = arith.constant 0 : i32
    return %arg0, %arg1, %c0_i32, %c0_i32_0 : i32, i32, i32, i32
  }
}

module attributes {stable_mosaic.version = 11 : i64} {
  func.func @head_kernel(%arg0: memref<2x1024xf32, #tpu.memory_space<vmem>>, %arg1: memref<1024x512xf32, #tpu.memory_space<vmem>>, %arg2: memref<1x512xf32, #tpu.memory_space<vmem>>, %arg3: memref<512x256xf32, #tpu.memory_space<vmem>>, %arg4: memref<1x256xf32, #tpu.memory_space<vmem>>, %arg5: memref<256x256xf32, #tpu.memory_space<vmem>>, %arg6: memref<1x256xf32, #tpu.memory_space<vmem>>, %arg7: memref<2x256xf32, #tpu.memory_space<vmem>>) attributes {dimension_semantics = [], scalar_prefetch = 0 : i64, scratch_operands = 0 : i64, tpu.core_type = #tpu.core_type<tc>} {
    %c0 = arith.constant 0 : index
    %c0_0 = arith.constant 0 : index
    %0 = vector.load %arg0[%c0, %c0_0] : memref<2x1024xf32, #tpu.memory_space<vmem>>, vector<2x1024xf32>
    %c0_1 = arith.constant 0 : index
    %c0_2 = arith.constant 0 : index
    %1 = vector.load %arg1[%c0_1, %c0_2] : memref<1024x512xf32, #tpu.memory_space<vmem>>, vector<1024x512xf32>
    %cst = arith.constant dense<0.000000e+00> : vector<2x512xf32>
    %2 = tpu.matmul %0, %1, %cst {dimension_numbers = #tpu.dot_dimension_numbers<[1], [0], [0], [1], [0, 0, 1, 1], [], []>} : vector<2x1024xf32>, vector<1024x512xf32>, vector<2x512xf32> -> vector<2x512xf32>
    %c0_3 = arith.constant 0 : index
    %c0_4 = arith.constant 0 : index
    %3 = vector.load %arg2[%c0_3, %c0_4] : memref<1x512xf32, #tpu.memory_space<vmem>>, vector<1x512xf32>
    %4 = vector.broadcast %3 : vector<1x512xf32> to vector<2x512xf32>
    %5 = arith.addf %2, %4 : vector<2x512xf32>
    %cst_5 = arith.constant 0.000000e+00 : f32
    %6 = vector.broadcast %cst_5 : f32 to vector<2x512xf32>
    %7 = arith.maximumf %5, %6 : vector<2x512xf32>
    %c0_6 = arith.constant 0 : index
    %c0_7 = arith.constant 0 : index
    %8 = vector.load %arg3[%c0_6, %c0_7] : memref<512x256xf32, #tpu.memory_space<vmem>>, vector<512x256xf32>
    %cst_8 = arith.constant dense<0.000000e+00> : vector<2x256xf32>
    %9 = tpu.matmul %7, %8, %cst_8 {dimension_numbers = #tpu.dot_dimension_numbers<[1], [0], [0], [1], [0, 0, 1, 1], [], []>} : vector<2x512xf32>, vector<512x256xf32>, vector<2x256xf32> -> vector<2x256xf32>
    %c0_9 = arith.constant 0 : index
    %c0_10 = arith.constant 0 : index
    %10 = vector.load %arg4[%c0_9, %c0_10] : memref<1x256xf32, #tpu.memory_space<vmem>>, vector<1x256xf32>
    %11 = vector.broadcast %10 : vector<1x256xf32> to vector<2x256xf32>
    %12 = arith.addf %9, %11 : vector<2x256xf32>
    %cst_11 = arith.constant 0.000000e+00 : f32
    %13 = vector.broadcast %cst_11 : f32 to vector<2x256xf32>
    %14 = arith.maximumf %12, %13 : vector<2x256xf32>
    %c0_12 = arith.constant 0 : index
    %c0_13 = arith.constant 0 : index
    %15 = vector.load %arg5[%c0_12, %c0_13] : memref<256x256xf32, #tpu.memory_space<vmem>>, vector<256x256xf32>
    %cst_14 = arith.constant dense<0.000000e+00> : vector<2x256xf32>
    %16 = tpu.matmul %14, %15, %cst_14 {dimension_numbers = #tpu.dot_dimension_numbers<[1], [0], [0], [1], [0, 0, 1, 1], [], []>} : vector<2x256xf32>, vector<256x256xf32>, vector<2x256xf32> -> vector<2x256xf32>
    %c0_15 = arith.constant 0 : index
    %c0_16 = arith.constant 0 : index
    %17 = vector.load %arg6[%c0_15, %c0_16] : memref<1x256xf32, #tpu.memory_space<vmem>>, vector<1x256xf32>
    %18 = vector.broadcast %17 : vector<1x256xf32> to vector<2x256xf32>
    %19 = arith.addf %16, %18 : vector<2x256xf32>
    %c0_17 = arith.constant 0 : index
    %c0_18 = arith.constant 0 : index
    %20 = vector.load %arg7[%c0_17, %c0_18] : memref<2x256xf32, #tpu.memory_space<vmem>>, vector<2x256xf32>
    tpu.vector_store %arg7[%c0_17, %c0_18], %19 {strides = array<i32>} : memref<2x256xf32, #tpu.memory_space<vmem>>, vector<2x256xf32>,
    return
  }
}

</mosaic_0001>

<llo_original>
// kernel: stnkd_forward.2
$region0: #{stnkd_forward.2}
  #allocation0 [shape = 'u32[]', space=smem, size = 0x4, offset = 0x4, fixed_abs, tag = 'smem constant byte address 0x4 - core index']
  #allocation1 [shape = 'u32[144,128]{1,0:T(1,128)}', space=vmem, size = 0x12000, scoped, tag = 'internal scratch']
  #allocation2 [shape = 'f32[1024,128]{1,0:T(8,128)}', space=vmem, size = 0x80000, scoped, tag = 'scratch operand']
  %s0 = inlined_call_operand.vmem [shape: f32[2,16,1280], index: 0, kind: input, shape index: {}]
  %s1 = inlined_call_operand.vmem [shape: bf16[64,16], index: 1, kind: input, shape index: {}]
  %s2 = inlined_call_operand.vmem [shape: f32[64,1], index: 2, kind: input, shape index: {}]
  %s3 = inlined_call_operand.vmem [shape: bf16[128,64], index: 3, kind: input, shape index: {}]
  %s4 = inlined_call_operand.vmem [shape: f32[128,1], index: 4, kind: input, shape index: {}]
  %s5 = inlined_call_operand.vmem [shape: bf16[1024,128], index: 5, kind: input, shape index: {}]
  %s6 = inlined_call_operand.vmem [shape: f32[1024,1], index: 6, kind: input, shape index: {}]
  %s7 = inlined_call_operand.vmem [shape: f32[1,2,1024,1], index: 7, kind: output, shape index: {}]
  %s8 = sld [smem:[#allocation0]]
  $region96: #{stnkd_forward.2} parent=0
    _
  %s10 = ssub.s32 1, %s8
  %s11 = scalar_select 0, %s10, %s8
  $region1: #{stnkd_forward.2} parent=0
    #allocation3 [shape = 'u8[32768]{0}', space=vmem, size = 0x8000, scoped, tag = 'input window, operand 0']
    loop: start=0, step=1, limit=12
    $region2: #{stnkd_forward.2} parent=1 // loop_pre_header
      _
    $region3: #{stnkd_forward.2} parent=1 // loop_header
      %s13 = sphi 0, %s17
      %p14 = scmp.ge.s32.totalorder %s13, 12
      %s20 = sphi 0, %s39
      %s21 = sphi 0, %s35
      %s22 = sphi 0, %s31
      %s23 = sphi 0, %s20
      %s24 = sphi 0, %s21
      %s25 = sphi 0, %s22
      %s26 = sphi 0, %s23
      %s27 = sphi 0, %s24
      %s28 = sphi 0, %s25
      %s48 = sphi 0, %s50
      %s51 = sphi 0, %s48
      %s52 = sphi 0, %s51
      %s68 = sphi 0, %s52
      %s72 = sphi 0, %s72
      %s74 = sphi 0, %s72
      %s75 = sphi 0, %s74
      %s89 = sphi 0, %s75
      %s93 = sphi 0, %s93
      %s95 = sphi 0, %s93
      %s96 = sphi 0, %s95
      %s110 = sphi 0, %s96
      %s114 = sphi 0, %s114
      %s116 = sphi 0, %s114
      %s117 = sphi 0, %s116
      %s131 = sphi 0, %s117
      %s135 = sphi 0, %s135
      %s137 = sphi 0, %s135
      %s138 = sphi 0, %s137
      %s152 = sphi 0, %s138
      %s156 = sphi 0, %s156
      %s158 = sphi 0, %s156
      %s159 = sphi 0, %s158
      %s173 = sphi 0, %s159
      %s177 = sphi 0, %s177
      %s179 = sphi 0, %s177
      %s180 = sphi 0, %s179
      %s194 = sphi 0, %s180
      %s202 = sphi 0, %s204
      %s205 = sphi 0, %s202
      %s206 = sphi 0, %s205
      %s222 = sphi 0, %s206
    $region4: #{stnkd_forward.2} parent=1 // loop_header_branch
      %16 = sbr.rel (%p14) target = $region8
    $region5: #{stnkd_forward.2} parent=1 // loop_body
      %s18 = ssub.s32 %s13, 1
      %s19 = ssub.s32 %s13, 2
      %s29 = sadd.s32 1, %s22
      %p30 = scmp.ge.s32.totalorder %s29, 5
      %s31 = scalar_select %p30, 0, %s29
      %s32 = sadd.s32 1, %s21
      %s33 = scalar_select %p30, %s32, %s21
      %p34 = scmp.ge.s32.totalorder %s33, 2
      %s35 = scalar_select %p34, 0, %s33
      %s36 = sadd.s32 1, %s20
      %s37 = scalar_select %p34, %s36, %s20
      %p38 = scmp.ge.s32.totalorder %s37, 1
      %s39 = scalar_select %p38, 0, %s37
      %s40 = smul.u32 %s20, 5
      %s41 = sadd.s32 %s40, %s22
      %s42 = smul.u32 %s39, 5
      %s43 = sadd.s32 %s42, %s31
      %s44 = ssub.s32 %s21, %s35
      %s45 = ssub.s32 %s41, %s43
      %s46 = sor.u32 %s44, %s45
      %p47 = scmp.eq.s32.totalorder %s46, 0
      %s49 = sadd.s32 %s48, 1
      %s50 = scalar_select %p47, %s48, %s49
      %p53 = pneg %p47
      %p54 = scmp.eq.s32.totalorder %s13, 9
      %p55 = por %p53, %p54
      %p56 = scmp.ne.s32.totalorder %s48, %s51
      %p57 = scmp.eq.s32.totalorder %s13, 0
      %p58 = por %p56, %p57
      %p59 = scmp.ne.s32.totalorder %s48, %s51
      %p60 = scmp.eq.s32.totalorder %s18, 9
      %p61 = por %p59, %p60
      %p62 = scmp.ne.s32.totalorder %s51, %s52
      %p63 = scmp.eq.s32.totalorder %s18, 0
      %p64 = por %p62, %p63
      %p65 = scmp.ne.s32.totalorder %s51, %s52
      %p66 = scmp.eq.s32.totalorder %s19, 9
      %p67 = por %p65, %p66
      %p69 = scmp.ne.s32.totalorder %s52, %s68
      %p70 = scmp.eq.s32.totalorder %s19, 0
      %p71 = por %p69, %p70
      %s73 = sadd.s32 %s72, 1
      %p76 = scmp.eq.s32.totalorder %s13, 9
      %p77 = scmp.ne.s32.totalorder %s72, %s74
      %p78 = scmp.eq.s32.totalorder %s13, 0
      %p79 = por %p77, %p78
      %p80 = scmp.ne.s32.totalorder %s72, %s74
      %p81 = scmp.eq.s32.totalorder %s18, 9
      %p82 = por %p80, %p81
      %p83 = scmp.ne.s32.totalorder %s74, %s75
      %p84 = scmp.eq.s32.totalorder %s18, 0
      %p85 = por %p83, %p84
      %p86 = scmp.ne.s32.totalorder %s74, %s75
      %p87 = scmp.eq.s32.totalorder %s19, 9
      %p88 = por %p86, %p87
      %p90 = scmp.ne.s32.totalorder %s75, %s89
      %p91 = scmp.eq.s32.totalorder %s19, 0
      %p92 = por %p90, %p91
      %s94 = sadd.s32 %s93, 1
      %p97 = scmp.eq.s32.totalorder %s13, 9
      %p98 = scmp.ne.s32.totalorder %s93, %s95
      %p99 = scmp.eq.s32.totalorder %s13, 0
      %p100 = por %p98, %p99
      %p101 = scmp.ne.s32.totalorder %s93, %s95
      %p102 = scmp.eq.s32.totalorder %s18, 9
      %p103 = por %p101, %p102
      %p104 = scmp.ne.s32.totalorder %s95, %s96
      %p105 = scmp.eq.s32.totalorder %s18, 0
      %p106 = por %p104, %p105
      %p107 = scmp.ne.s32.totalorder %s95, %s96
      %p108 = scmp.eq.s32.totalorder %s19, 9
      %p109 = por %p107, %p108
      %p111 = scmp.ne.s32.totalorder %s96, %s110
      %p112 = scmp.eq.s32.totalorder %s19, 0
      %p113 = por %p111, %p112
      %s115 = sadd.s32 %s114, 1
      %p118 = scmp.eq.s32.totalorder %s13, 9
      %p119 = scmp.ne.s32.totalorder %s114, %s116
      %p120 = scmp.eq.s32.totalorder %s13, 0
      %p121 = por %p119, %p120
      %p122 = scmp.ne.s32.totalorder %s114, %s116
      %p123 = scmp.eq.s32.totalorder %s18, 9
      %p124 = por %p122, %p123
      %p125 = scmp.ne.s32.totalorder %s116, %s117
      %p126 = scmp.eq.s32.totalorder %s18, 0
      %p127 = por %p125, %p126
      %p128 = scmp.ne.s32.totalorder %s116, %s117
      %p129 = scmp.eq.s32.totalorder %s19, 9
      %p130 = por %p128, %p129
      %p132 = scmp.ne.s32.totalorder %s117, %s131
      %p133 = scmp.eq.s32.totalorder %s19, 0
      %p134 = por %p132, %p133
      %s136 = sadd.s32 %s135, 1
      %p139 = scmp.eq.s32.totalorder %s13, 9
      %p140 = scmp.ne.s32.totalorder %s135, %s137
      %p141 = scmp.eq.s32.totalorder %s13, 0
      %p142 = por %p140, %p141
      %p143 = scmp.ne.s32.totalorder %s135, %s137
      %p144 = scmp.eq.s32.totalorder %s18, 9
      %p145 = por %p143, %p144
      %p146 = scmp.ne.s32.totalorder %s137, %s138
      %p147 = scmp.eq.s32.totalorder %s18, 0
      %p148 = por %p146, %p147
      %p149 = scmp.ne.s32.totalorder %s137, %s138
      %p150 = scmp.eq.s32.totalorder %s19, 9
      %p151 = por %p149, %p150
      %p153 = scmp.ne.s32.totalorder %s138, %s152
      %p154 = scmp.eq.s32.totalorder %s19, 0
      %p155 = por %p153, %p154
      %s157 = sadd.s32 %s156, 1
      %p160 = scmp.eq.s32.totalorder %s13, 9
      %p161 = scmp.ne.s32.totalorder %s156, %s158
      %p162 = scmp.eq.s32.totalorder %s13, 0
      %p163 = por %p161, %p162
      %p164 = scmp.ne.s32.totalorder %s156, %s158
      %p165 = scmp.eq.s32.totalorder %s18, 9
      %p166 = por %p164, %p165
      %p167 = scmp.ne.s32.totalorder %s158, %s159
      %p168 = scmp.eq.s32.totalorder %s18, 0
      %p169 = por %p167, %p168
      %p170 = scmp.ne.s32.totalorder %s158, %s159
      %p171 = scmp.eq.s32.totalorder %s19, 9
      %p172 = por %p170, %p171
      %p174 = scmp.ne.s32.totalorder %s159, %s173
      %p175 = scmp.eq.s32.totalorder %s19, 0
      %p176 = por %p174, %p175
      %s178 = sadd.s32 %s177, 1
      %p181 = scmp.eq.s32.totalorder %s13, 9
      %p182 = scmp.ne.s32.totalorder %s177, %s179
      %p183 = scmp.eq.s32.totalorder %s13, 0
      %p184 = por %p182, %p183
      %p185 = scmp.ne.s32.totalorder %s177, %s179
      %p186 = scmp.eq.s32.totalorder %s18, 9
      %p187 = por %p185, %p186
      %p188 = scmp.ne.s32.totalorder %s179, %s180
      %p189 = scmp.eq.s32.totalorder %s18, 0
      %p190 = por %p188, %p189
      %p191 = scmp.ne.s32.totalorder %s179, %s180
      %p192 = scmp.eq.s32.totalorder %s19, 9
      %p193 = por %p191, %p192
      %p195 = scmp.ne.s32.totalorder %s180, %s194
      %p196 = scmp.eq.s32.totalorder %s19, 0
      %p197 = por %p195, %p196
      %s198 = ssub.s32 %s20, %s39
      %s199 = ssub.s32 %s21, %s35
      %s200 = sor.u32 %s198, %s199
      %p201 = scmp.eq.s32.totalorder %s200, 0
      %s203 = sadd.s32 %s202, 1
      %s204 = scalar_select %p201, %s202, %s203
      %p207 = pneg %p201
      %p208 = scmp.eq.s32.totalorder %s13, 9
      %p209 = por %p207, %p208
      %p210 = scmp.ne.s32.totalorder %s202, %s205
      %p211 = scmp.eq.s32.totalorder %s13, 0
      %p212 = por %p210, %p211
      %p213 = scmp.ne.s32.totalorder %s202, %s205
      %p214 = scmp.eq.s32.totalorder %s18, 9
      %p215 = por %p213, %p214
      %p216 = scmp.ne.s32.totalorder %s205, %s206
      %p217 = scmp.eq.s32.totalorder %s18, 0
      %p218 = por %p216, %p217
      %p219 = scmp.ne.s32.totalorder %s205, %s206
      %p220 = scmp.eq.s32.totalorder %s19, 9
      %p221 = por %p219, %p220
      %p223 = scmp.ne.s32.totalorder %s206, %s222
      %p224 = scmp.eq.s32.totalorder %s19, 0
      %p225 = por %p223, %p224
      %p226 = scmp.le.s32.totalorder 1, %s13
      %p227 = scmp.lt.s32.totalorder %s13, 11
      %p228 = pnand %p226, %p227
      %p229 = pneg %p228
      // Predicated region
      $region9: #{stnkd_forward.2} parent=5 // pred_check
        _
      $region10: #{stnkd_forward.2} parent=5 // pred_check_branch
        %231 = sbr.rel (%p228) target = $region12
      $region11: #{stnkd_forward.2} parent=5 // pred_region
        %s232 = ssub.s32 %s13, 1
        // Predicated region
        $region13: #{stnkd_forward.2} parent=11 // pred_check
          %p233 = pneg %p85
        $region14: #{stnkd_forward.2} parent=11 // pred_check_branch
          %235 = sbr.rel (%p233) target = $region16
        $region15: #{stnkd_forward.2} parent=11 // pred_region
          _
        $region16: #{stnkd_forward.2} parent=11 // pred_fallthru
          _
        // Predicated region
        $region17: #{stnkd_forward.2} parent=11 // pred_check
          %p236 = pneg %p106
        $region18: #{stnkd_forward.2} parent=11 // pred_check_branch
          %238 = sbr.rel (%p236) target = $region20
        $region19: #{stnkd_forward.2} parent=11 // pred_region
          _
        $region20: #{stnkd_forward.2} parent=11 // pred_fallthru
          _
        // Predicated region
        $region21: #{stnkd_forward.2} parent=11 // pred_check
          %p239 = pneg %p127
        $region22: #{stnkd_forward.2} parent=11 // pred_check_branch
          %241 = sbr.rel (%p239) target = $region24
        $region23: #{stnkd_forward.2} parent=11 // pred_region
          _
        $region24: #{stnkd_forward.2} parent=11 // pred_fallthru
          _
        // Predicated region
        $region25: #{stnkd_forward.2} parent=11 // pred_check
          %p242 = pneg %p148
        $region26: #{stnkd_forward.2} parent=11 // pred_check_branch
          %244 = sbr.rel (%p242) target = $region28
        $region27: #{stnkd_forward.2} parent=11 // pred_region
          _
        $region28: #{stnkd_forward.2} parent=11 // pred_fallthru
          _
        // Predicated region
        $region29: #{stnkd_forward.2} parent=11 // pred_check
          %p245 = pneg %p169
        $region30: #{stnkd_forward.2} parent=11 // pred_check_branch
          %247 = sbr.rel (%p245) target = $region32
        $region31: #{stnkd_forward.2} parent=11 // pred_region
          _
        $region32: #{stnkd_forward.2} parent=11 // pred_fallthru
          _
        // Predicated region
        $region33: #{stnkd_forward.2} parent=11 // pred_check
          %p248 = pneg %p190
        $region34: #{stnkd_forward.2} parent=11 // pred_check_branch
          %250 = sbr.rel (%p248) target = $region36
        $region35: #{stnkd_forward.2} parent=11 // pred_region
          _
        $region36: #{stnkd_forward.2} parent=11 // pred_fallthru
          _
      $region12: #{stnkd_forward.2} parent=5 // pred_fallthru
        _
      %p251 = scmp.lt.s32.totalorder %s13, 10
      // Predicated region
      $region37: #{stnkd_forward.2} parent=5 // pred_check
        %p252 = pneg %p251
      $region38: #{stnkd_forward.2} parent=5 // pred_check_branch
        %254 = sbr.rel (%p252) target = $region40
      $region39: #{stnkd_forward.2} parent=5 // pred_region
        // Predicated region
        $region41: #{stnkd_forward.2} parent=39 // pred_check
          %p255 = pneg %p58
        $region42: #{stnkd_forward.2} parent=39 // pred_check_branch
          %257 = sbr.rel (%p255) target = $region44
        $region43: #{stnkd_forward.2} parent=39 // pred_region
          %s258 = sand.u32 %s48, 1
          %s259 = sand.u32 %s48, 1
          %s260 = smul.addr %s259, 32
          %s261 = scalar_lea.vmem [#allocation3], %s260
          %s262 = smul.u32 %s20, 5
          %s263 = sadd.s32 %s262, %s22
          %s264 = smul.u32 2, %s263
          %s265 = smul.addr %s21, 20
          %s266 = sadd.s32 %s264, %s265
          %s267 = smul.addr %s266, 8
          %s268 = scalar_lea.vmem %s0, %s267
          // Predicated region
          $region45: #{stnkd_forward.2} parent=43 // pred_check
            _
          $region46: #{stnkd_forward.2} parent=43 // pred_check_branch
            %270 = sbr.rel (0) target = $region48
          $region47: #{stnkd_forward.2} parent=43 // pred_region
            // Predicated region
            $region49: #{stnkd_forward.2} parent=47 // pred_check
              _
            $region50: #{stnkd_forward.2} parent=47 // pred_check_branch
              %272 = sbr.rel (0) target = $region52
            $region51: #{stnkd_forward.2} parent=47 // pred_region
              loop: start=0, step=1, limit=1
              $region53: #{stnkd_forward.2} parent=51 // loop_pre_header
                _
              $region54: #{stnkd_forward.2} parent=51 // loop_header
                %s274 = sphi 0, %s278
                %p275 = scmp.ge.s32.totalorder %s274, 1
                %s279 = sphi %s268, %s268
                %s280 = sphi %s261, %s261
              $region55: #{stnkd_forward.2} parent=51 // loop_header_branch
                %277 = sbr.rel (%p275) target = $region59
              $region56: #{stnkd_forward.2} parent=51 // loop_body
                %v281 = vld [vmem:[%s279] sm:$0xff]
                %282 = vst [vmem:[%s280] sm:$0xff] %v281
                %v283 = vld [vmem:[%s279 + $0x8] sm:$0xff]
                %284 = vst [vmem:[%s280 + $0x8] sm:$0xff] %v283
                %v285 = vld [vmem:[%s279 + $0x50] sm:$0xff]
                %286 = vst [vmem:[%s280 + $0x10] sm:$0xff] %v285
                %v287 = vld [vmem:[%s279 + $0x58] sm:$0xff]
                %288 = vst [vmem:[%s280 + $0x18] sm:$0xff] %v287
              $region57: #{stnkd_forward.2} parent=51 // loop_footer
                %s278 = sadd.s32 1, %s274
              $region58: #{stnkd_forward.2} parent=51 // loop_footer_branch
                %273 = sbr.rel target = $region54
              $region59: #{stnkd_forward.2} parent=51 // loop_exit
                _
            $region52: #{stnkd_forward.2} parent=47 // pred_fallthru
              _
            // Predicated region
            $region60: #{stnkd_forward.2} parent=47 // pred_check
              _
            $region61: #{stnkd_forward.2} parent=47 // pred_check_branch
              %290 = sbr.rel target = $region63
            $region62: #{stnkd_forward.2} parent=47 // pred_region
              _
            $region63: #{stnkd_forward.2} parent=47 // pred_fallthru
              _
          $region48: #{stnkd_forward.2} parent=43 // pred_fallthru
            _
          %291 = vnop
        $region44: #{stnkd_forward.2} parent=39 // pred_fallthru
          _
      $region40: #{stnkd_forward.2} parent=5 // pred_fallthru
        _
      %p292 = scmp.le.s32.totalorder 1, %s13
      %p293 = scmp.lt.s32.totalorder %s13, 11
      %p294 = pnand %p292, %p293
      %p295 = pneg %p294
      // Predicated region
      $region64: #{stnkd_forward.2} parent=5 // pred_check
        _
      $region65: #{stnkd_forward.2} parent=5 // pred_check_branch
        %297 = sbr.rel (%p294) target = $region67
      $region66: #{stnkd_forward.2} parent=5 // pred_region
        %s298 = ssub.s32 %s13, 1
        %s299 = sand.u32 %s51, 1
        %s300 = sand.u32 %s51, 1
        %s301 = smul.addr %s300, 32
        %s302 = scalar_lea.vmem [#allocation3], %s301
        // Predicated region
        $region68: #{stnkd_forward.2} parent=66 // pred_check
          %p303 = pneg %p64
        $region69: #{stnkd_forward.2} parent=66 // pred_check_branch
          %305 = sbr.rel (%p303) target = $region71
        $region70: #{stnkd_forward.2} parent=66 // pred_region
          _
        $region71: #{stnkd_forward.2} parent=66 // pred_fallthru
          _
        %s306 = sand.u32 %s51, 1
        %s307 = sand.u32 %s51, 1
        %s308 = smul.addr %s307, 32
        %s309 = scalar_lea.vmem [#allocation3], %s308
        %p310 = pneg %p64
        %p311 = pneg %p61
        %p312 = pneg %p85
        %p313 = pneg %p82
        %p314 = pneg %p106
        %p315 = pneg %p103
        %p316 = pneg %p127
        %p317 = pneg %p124
        %p318 = pneg %p148
        %p319 = pneg %p145
        %p320 = pneg %p169
        %p321 = pneg %p166
        %p322 = pneg %p190
        %p323 = pneg %p187
        %p324 = pneg %p218
        %p325 = pneg %p215
        %p326 = scmp.lt.s32.totalorder %s23, 0
        %s327 = scalar_select %p326, %s23, 0
        %p328 = scmp.lt.s32.totalorder %s24, 1
        %s329 = scalar_select %p328, %s24, 1
        %s330 = smul.addr %s329, 128
        %s331 = smul.addr %s327, 256
        %s332 = sadd.s32 %s330, %s331
        %s333 = smul.addr %s332, 8
        %s334 = scalar_lea.vmem %s7, %s333
        %s335 = smul.u32 %s23, 5
        %s336 = sadd.s32 %s335, %s25
        %s337 = smul.u32 2, %s336
        %p338 = scmp.lt.s32.totalorder %s23, 0
        %s339 = scalar_select %p338, %s23, 0
        %p340 = scmp.lt.s32.totalorder %s24, 1
        %s341 = scalar_select %p340, %s24, 1
        %s342 = smul.addr %s341, 128
        %s343 = smul.addr %s339, 256
        %s344 = sadd.s32 %s342, %s343
        %s345 = smul.addr %s344, 8
        %s346 = scalar_lea.vmem %s7, %s345
        %v348 = vld [vmem:[%s302] sm:$0xff]
        %v349 = vld [vmem:[%s302 + $0x8] sm:$0xff]
        %v350 = vld [vmem:[%s302 + $0x10] sm:$0xff]
        %v351 = vld [vmem:[%s302 + $0x18] sm:$0xff]
        %v352 = vpack.c.bf16 %v350, %v348
        %v353 = vpack.c.bf16 %v351, %v349
        %v354 = vld [vmem:[%s1] sm:$0xf]
        %v355 = vld [vmem:[%s1 + $0x4] sm:$0xf]
        %v356 = vld [vmem:[%s1 + $0x8] sm:$0xf]
        %v357 = vld [vmem:[%s1 + $0xc] sm:$0xf]
        %v358 = vld [vmem:[%s1 + $0x10] sm:$0xf]
        %v359 = vld [vmem:[%s1 + $0x14] sm:$0xf]
        %v360 = vld [vmem:[%s1 + $0x18] sm:$0xf]
        %v361 = vld [vmem:[%s1 + $0x1c] sm:$0xf]
        %v362 = vld [vmem:[%s2] sm:$0xff]
        %v363 = vld [vmem:[%s2 + $0x8] sm:$0xff]
        %v364 = vld [vmem:[%s2 + $0x10] sm:$0xff]
        %v365 = vld [vmem:[%s2 + $0x18] sm:$0xff]
        %v366 = vld [vmem:[%s2 + $0x20] sm:$0xff]
        %v367 = vld [vmem:[%s2 + $0x28] sm:$0xff]
        %v368 = vld [vmem:[%s2 + $0x30] sm:$0xff]
        %v369 = vld [vmem:[%s2 + $0x38] sm:$0xff]
        %371 = vset.pattern.permute.xlu0 0
        %372 = vperm.xlu0 %371, %v362
        %v373 = vpop.permute.xlu0 %372
        %376 = vset.pattern.permute.xlu0 0
        %377 = vperm.xlu0 %376, %v363
        %v378 = vpop.permute.xlu0 %377
        %381 = vset.pattern.permute.xlu0 0
        %382 = vperm.xlu0 %381, %v364
        %v383 = vpop.permute.xlu0 %382
        %386 = vset.pattern.permute.xlu0 0
        %387 = vperm.xlu0 %386, %v365
        %v388 = vpop.permute.xlu0 %387
        %391 = vset.pattern.permute.xlu0 0
        %392 = vperm.xlu0 %391, %v366
        %v393 = vpop.permute.xlu0 %392
        %396 = vset.pattern.permute.xlu0 0
        %397 = vperm.xlu0 %396, %v367
        %v398 = vpop.permute.xlu0 %397
        %401 = vset.pattern.permute.xlu0 0
        %402 = vperm.xlu0 %401, %v368
        %v403 = vpop.permute.xlu0 %402
        %406 = vset.pattern.permute.xlu0 0
        %407 = vperm.xlu0 %406, %v369
        %v408 = vpop.permute.xlu0 %407
        %v418 = vunpack.c.l.b16 %v354
        %v419 = vunpack.c.l.b16 %v355
        %v420 = vunpack.c.l.b16 %v356
        %v421 = vunpack.c.l.b16 %v357
        %v422 = vunpack.c.l.b16 %v358
        %v423 = vunpack.c.l.b16 %v359
        %v424 = vunpack.c.l.b16 %v360
        %v425 = vunpack.c.l.b16 %v361
        %v426 = vpack.c.b16 %v419, %v418
        %v427 = vpack.c.b16 %v421, %v420
        %v428 = vpack.c.b16 %v423, %v422
        %v429 = vpack.c.b16 %v425, %v424
        %vm430 = vcmask 130048
        %v432 = vsel %vm430, %v426, 0
        %v435 = vsel %vm430, %v427, 0
        %v438 = vsel %vm430, %v428, 0
        %v441 = vsel %vm430, %v429, 0
        %443 = vmatprep.subr.bf16.mxu0 %v353
        %444 = vmatpush1.bf16.msra.mxu0 %v352
        %445 = vmatprep.subr.bf16.mxu0 0
        %446 = vmatpush1.bf16.msra.mxu0 0
        %447 = vmatprep.subr.bf16.mxu0 0
        %448 = vmatpush1.bf16.msra.mxu0 0
        %449 = vmatprep.subr.bf16.mxu0 0
        %450 = vmatpush1.bf16.msra.mxu0 0
        %451 = vmatprep.subr.bf16.mxu0 0
        %452 = vmatpush1.bf16.msra.mxu0 0
        %453 = vmatprep.subr.bf16.mxu0 0
        %454 = vmatpush1.bf16.msra.mxu0 0
        %455 = vmatprep.subr.bf16.mxu0 0
        %456 = vmatpush1.bf16.msra.mxu0 0
        %457 = vmatprep.subr.bf16.mxu0 0
        %458 = vmatpush1.bf16.msra.mxu0 0
        %459 = vmatprep.subr.bf16.mxu0 0
        %460 = vmatpush1.bf16.msra.mxu0 0
        %461 = vmatprep.subr.bf16.mxu0 0
        %462 = vmatpush1.bf16.msra.mxu0 0
        %463 = vmatprep.subr.bf16.mxu0 0
        %464 = vmatpush1.bf16.msra.mxu0 0
        %465 = vmatprep.subr.bf16.mxu0 0
        %466 = vmatpush1.bf16.msra.mxu0 0
        %467 = vmatprep.subr.bf16.mxu0 0
        %468 = vmatpush1.bf16.msra.mxu0 0
        %469 = vmatprep.subr.bf16.mxu0 0
        %470 = vmatpush1.bf16.msra.mxu0 0
        %471 = vmatprep.subr.bf16.mxu0 0
        %472 = vmatpush1.bf16.msra.mxu0 0
        %473 = vmatprep.subr.bf16.mxu0 0
        %474 = vmatpush1.bf16.msra.mxu0 0
        %475 = vmatprep.mubr.bf16.mxu0 0
        %476 = vmatmul.mubr.bf16.gmra.mrb[0].mxu0 %v432
        %v477 = vpop.f32.mrb[0].mxu0
        %v478 = vadd.f32 %v373, %v477
        %v479 = vpop.f32.mrb[0].mxu0
        %v480 = vadd.f32 %v373, %v479
        %v481 = vpop.f32.mrb[0].mxu0
        %v482 = vadd.f32 %v378, %v481
        %v483 = vpop.f32.mrb[0].mxu0
        %v484 = vadd.f32 %v378, %v483
        %485 = vmatprep.mubr.bf16.mxu0 0
        %486 = vmatmul.mubr.bf16.gmra.mrb[0].mxu0 %v435
        %v487 = vpop.f32.mrb[0].mxu0
        %v488 = vadd.f32 %v383, %v487
        %v489 = vpop.f32.mrb[0].mxu0
        %v490 = vadd.f32 %v383, %v489
        %v491 = vpop.f32.mrb[0].mxu0
        %v492 = vadd.f32 %v388, %v491
        %v493 = vpop.f32.mrb[0].mxu0
        %v494 = vadd.f32 %v388, %v493
        %495 = vmatprep.mubr.bf16.mxu0 0
        %496 = vmatmul.mubr.bf16.gmra.mrb[0].mxu0 %v438
        %v497 = vpop.f32.mrb[0].mxu0
        %v498 = vadd.f32 %v393, %v497
        %v499 = vpop.f32.mrb[0].mxu0
        %v500 = vadd.f32 %v393, %v499
        %v501 = vpop.f32.mrb[0].mxu0
        %v502 = vadd.f32 %v398, %v501
        %v503 = vpop.f32.mrb[0].mxu0
        %v504 = vadd.f32 %v398, %v503
        %505 = vmatprep.mubr.bf16.mxu0 0
        %506 = vmatmul.mubr.bf16.gmra.mrb[0].mxu0 %v441
        %v507 = vpop.f32.mrb[0].mxu0
        %v508 = vadd.f32 %v403, %v507
        %v509 = vpop.f32.mrb[0].mxu0
        %v510 = vadd.f32 %v403, %v509
        %v511 = vpop.f32.mrb[0].mxu0
        %v512 = vadd.f32 %v408, %v511
        %v513 = vpop.f32.mrb[0].mxu0
        %v514 = vadd.f32 %v408, %v513
        %515 = vdwg.mxu0
        %v516 = vmax.f32 %v478, 0.0
        %v517 = vmax.f32 %v480, 0.0
        %v518 = vmax.f32 %v482, 0.0
        %v519 = vmax.f32 %v484, 0.0
        %v520 = vmax.f32 %v488, 0.0
        %v521 = vmax.f32 %v490, 0.0
        %v522 = vmax.f32 %v492, 0.0
        %v523 = vmax.f32 %v494, 0.0
        %v524 = vmax.f32 %v498, 0.0
        %v525 = vmax.f32 %v500, 0.0
        %v526 = vmax.f32 %v502, 0.0
        %v527 = vmax.f32 %v504, 0.0
        %v528 = vmax.f32 %v508, 0.0
        %v529 = vmax.f32 %v510, 0.0
        %v530 = vmax.f32 %v512, 0.0
        %v531 = vmax.f32 %v514, 0.0
        %v532 = vld [vmem:[%s3] sm:$0xf]
        %v533 = vld [vmem:[%s3 + $0x4] sm:$0xf]
        %v534 = vld [vmem:[%s3 + $0x8] sm:$0xf]
        %v535 = vld [vmem:[%s3 + $0xc] sm:$0xf]
        %v536 = vld [vmem:[%s3 + $0x10] sm:$0xf]
        %v537 = vld [vmem:[%s3 + $0x14] sm:$0xf]
        %v538 = vld [vmem:[%s3 + $0x18] sm:$0xf]
        %v539 = vld [vmem:[%s3 + $0x1c] sm:$0xf]
        %v540 = vld [vmem:[%s3 + $0x20] sm:$0xf]
        %v541 = vld [vmem:[%s3 + $0x24] sm:$0xf]
        %v542 = vld [vmem:[%s3 + $0x28] sm:$0xf]
        %v543 = vld [vmem:[%s3 + $0x2c] sm:$0xf]
        %v544 = vld [vmem:[%s3 + $0x30] sm:$0xf]
        %v545 = vld [vmem:[%s3 + $0x34] sm:$0xf]
        %v546 = vld [vmem:[%s3 + $0x38] sm:$0xf]
        %v547 = vld [vmem:[%s3 + $0x3c] sm:$0xf]
        %v548 = vpack.c.bf16 %v518, %v516
        %v549 = vpack.c.bf16 %v519, %v517
        %v550 = vpack.c.bf16 %v522, %v520
        %v551 = vpack.c.bf16 %v523, %v521
        %v552 = vpack.c.bf16 %v526, %v524
        %v553 = vpack.c.bf16 %v527, %v525
        %v554 = vpack.c.bf16 %v530, %v528
        %v555 = vpack.c.bf16 %v531, %v529
        %v556 = vld [vmem:[%s4] sm:$0xff]
        %v557 = vld [vmem:[%s4 + $0x8] sm:$0xff]
        %v558 = vld [vmem:[%s4 + $0x10] sm:$0xff]
        %v559 = vld [vmem:[%s4 + $0x18] sm:$0xff]
        %v560 = vld [vmem:[%s4 + $0x20] sm:$0xff]
        %v561 = vld [vmem:[%s4 + $0x28] sm:$0xff]
        %v562 = vld [vmem:[%s4 + $0x30] sm:$0xff]
        %v563 = vld [vmem:[%s4 + $0x38] sm:$0xff]
        %v564 = vld [vmem:[%s4 + $0x40] sm:$0xff]
        %v565 = vld [vmem:[%s4 + $0x48] sm:$0xff]
        %v566 = vld [vmem:[%s4 + $0x50] sm:$0xff]
        %v567 = vld [vmem:[%s4 + $0x58] sm:$0xff]
        %v568 = vld [vmem:[%s4 + $0x60] sm:$0xff]
        %v569 = vld [vmem:[%s4 + $0x68] sm:$0xff]
        %v570 = vld [vmem:[%s4 + $0x70] sm:$0xff]
        %v571 = vld [vmem:[%s4 + $0x78] sm:$0xff]
        %573 = vset.pattern.permute.xlu0 0
        %574 = vperm.xlu0 %573, %v556
        %v575 = vpop.permute.xlu0 %574
        %578 = vset.pattern.permute.xlu0 0
        %579 = vperm.xlu0 %578, %v557
        %v580 = vpop.permute.xlu0 %579
        %583 = vset.pattern.permute.xlu0 0
        %584 = vperm.xlu0 %583, %v558
        %v585 = vpop.permute.xlu0 %584
        %588 = vset.pattern.permute.xlu0 0
        %589 = vperm.xlu0 %588, %v559
        %v590 = vpop.permute.xlu0 %589
        %593 = vset.pattern.permute.xlu0 0
        %594 = vperm.xlu0 %593, %v560
        %v595 = vpop.permute.xlu0 %594
        %598 = vset.pattern.permute.xlu0 0
        %599 = vperm.xlu0 %598, %v561
        %v600 = vpop.permute.xlu0 %599
        %603 = vset.pattern.permute.xlu0 0
        %604 = vperm.xlu0 %603, %v562
        %v605 = vpop.permute.xlu0 %604
        %608 = vset.pattern.permute.xlu0 0
        %609 = vperm.xlu0 %608, %v563
        %v610 = vpop.permute.xlu0 %609
        %613 = vset.pattern.permute.xlu0 0
        %614 = vperm.xlu0 %613, %v564
        %v615 = vpop.permute.xlu0 %614
        %618 = vset.pattern.permute.xlu0 0
        %619 = vperm.xlu0 %618, %v565
        %v620 = vpop.permute.xlu0 %619
        %623 = vset.pattern.permute.xlu0 0
        %624 = vperm.xlu0 %623, %v566
        %v625 = vpop.permute.xlu0 %624
        %628 = vset.pattern.permute.xlu0 0
        %629 = vperm.xlu0 %628, %v567
        %v630 = vpop.permute.xlu0 %629
        %633 = vset.pattern.permute.xlu0 0
        %634 = vperm.xlu0 %633, %v568
        %v635 = vpop.permute.xlu0 %634
        %638 = vset.pattern.permute.xlu0 0
        %639 = vperm.xlu0 %638, %v569
        %v640 = vpop.permute.xlu0 %639
        %643 = vset.pattern.permute.xlu0 0
        %644 = vperm.xlu0 %643, %v570
        %v645 = vpop.permute.xlu0 %644
        %648 = vset.pattern.permute.xlu0 0
        %649 = vperm.xlu0 %648, %v571
        %v650 = vpop.permute.xlu0 %649
        %v668 = vunpack.c.l.b16 %v532
        %v669 = vunpack.c.l.b16 %v533
        %v670 = vunpack.c.l.b16 %v534
        %v671 = vunpack.c.l.b16 %v535
        %v672 = vunpack.c.l.b16 %v536
        %v673 = vunpack.c.l.b16 %v537
        %v674 = vunpack.c.l.b16 %v538
        %v675 = vunpack.c.l.b16 %v539
        %v676 = vunpack.c.l.b16 %v540
        %v677 = vunpack.c.l.b16 %v541
        %v678 = vunpack.c.l.b16 %v542
        %v679 = vunpack.c.l.b16 %v543
        %v680 = vunpack.c.l.b16 %v544
        %v681 = vunpack.c.l.b16 %v545
        %v682 = vunpack.c.l.b16 %v546
        %v683 = vunpack.c.l.b16 %v547
        %v684 = vpack.c.b16 %v669, %v668
        %v685 = vpack.c.b16 %v671, %v670
        %v686 = vpack.c.b16 %v673, %v672
        %v687 = vpack.c.b16 %v675, %v674
        %v688 = vpack.c.b16 %v677, %v676
        %v689 = vpack.c.b16 %v679, %v678
        %v690 = vpack.c.b16 %v681, %v680
        %v691 = vpack.c.b16 %v683, %v682
        %vm692 = vcmask 523264
        %v694 = vsel %vm692, %v684, 0
        %v697 = vsel %vm692, %v685, 0
        %v700 = vsel %vm692, %v686, 0
        %v703 = vsel %vm692, %v687, 0
        %v706 = vsel %vm692, %v688, 0
        %v709 = vsel %vm692, %v689, 0
        %v712 = vsel %vm692, %v690, 0
        %v715 = vsel %vm692, %v691, 0
        %717 = vmatprep.subr.bf16.mxu0 %v549
        %718 = vmatpush1.bf16.msra.mxu0 %v548
        %719 = vmatprep.subr.bf16.mxu0 %v551
        %720 = vmatpush1.bf16.msra.mxu0 %v550
        %721 = vmatprep.subr.bf16.mxu0 %v553
        %722 = vmatpush1.bf16.msra.mxu0 %v552
        %723 = vmatprep.subr.bf16.mxu0 %v555
        %724 = vmatpush1.bf16.msra.mxu0 %v554
        %725 = vmatprep.subr.bf16.mxu0 0
        %726 = vmatpush1.bf16.msra.mxu0 0
        %727 = vmatprep.subr.bf16.mxu0 0
        %728 = vmatpush1.bf16.msra.mxu0 0
        %729 = vmatprep.subr.bf16.mxu0 0
        %730 = vmatpush1.bf16.msra.mxu0 0
        %731 = vmatprep.subr.bf16.mxu0 0
        %732 = vmatpush1.bf16.msra.mxu0 0
        %733 = vmatprep.subr.bf16.mxu0 0
        %734 = vmatpush1.bf16.msra.mxu0 0
        %735 = vmatprep.subr.bf16.mxu0 0
        %736 = vmatpush1.bf16.msra.mxu0 0
        %737 = vmatprep.subr.bf16.mxu0 0
        %738 = vmatpush1.bf16.msra.mxu0 0
        %739 = vmatprep.subr.bf16.mxu0 0
        %740 = vmatpush1.bf16.msra.mxu0 0
        %741 = vmatprep.subr.bf16.mxu0 0
        %742 = vmatpush1.bf16.msra.mxu0 0
        %743 = vmatprep.subr.bf16.mxu0 0
        %744 = vmatpush1.bf16.msra.mxu0 0
        %745 = vmatprep.subr.bf16.mxu0 0
        %746 = vmatpush1.bf16.msra.mxu0 0
        %747 = vmatprep.subr.bf16.mxu0 0
        %748 = vmatpush1.bf16.msra.mxu0 0
        %749 = vmatprep.mubr.bf16.mxu0 0
        %750 = vmatmul.mubr.bf16.gmra.mrb[0].mxu0 %v694
        %v751 = vpop.f32.mrb[0].mxu0
        %v752 = vadd.f32 %v575, %v751
        %v753 = vpop.f32.mrb[0].mxu0
        %v754 = vadd.f32 %v575, %v753
        %v755 = vpop.f32.mrb[0].mxu0
        %v756 = vadd.f32 %v580, %v755
        %v757 = vpop.f32.mrb[0].mxu0
        %v758 = vadd.f32 %v580, %v757
        %759 = vmatprep.mubr.bf16.mxu0 0
        %760 = vmatmul.mubr.bf16.gmra.mrb[0].mxu0 %v697
        %v761 = vpop.f32.mrb[0].mxu0
        %v762 = vadd.f32 %v585, %v761
        %v763 = vpop.f32.mrb[0].mxu0
        %v764 = vadd.f32 %v585, %v763
        %v765 = vpop.f32.mrb[0].mxu0
        %v766 = vadd.f32 %v590, %v765
        %v767 = vpop.f32.mrb[0].mxu0
        %v768 = vadd.f32 %v590, %v767
        %769 = vmatprep.mubr.bf16.mxu0 0
        %770 = vmatmul.mubr.bf16.gmra.mrb[0].mxu0 %v700
        %v771 = vpop.f32.mrb[0].mxu0
        %v772 = vadd.f32 %v595, %v771
        %v773 = vpop.f32.mrb[0].mxu0
        %v774 = vadd.f32 %v595, %v773
        %v775 = vpop.f32.mrb[0].mxu0
        %v776 = vadd.f32 %v600, %v775
        %v777 = vpop.f32.mrb[0].mxu0
        %v778 = vadd.f32 %v600, %v777
        %779 = vmatprep.mubr.bf16.mxu0 0
        %780 = vmatmul.mubr.bf16.gmra.mrb[0].mxu0 %v703
        %v781 = vpop.f32.mrb[0].mxu0
        %v782 = vadd.f32 %v605, %v781
        %v783 = vpop.f32.mrb[0].mxu0
        %v784 = vadd.f32 %v605, %v783
        %v785 = vpop.f32.mrb[0].mxu0
        %v786 = vadd.f32 %v610, %v785
        %v787 = vpop.f32.mrb[0].mxu0
        %v788 = vadd.f32 %v610, %v787
        %789 = vmatprep.mubr.bf16.mxu0 0
        %790 = vmatmul.mubr.bf16.gmra.mrb[0].mxu0 %v706
        %v791 = vpop.f32.mrb[0].mxu0
        %v792 = vadd.f32 %v615, %v791
        %v793 = vpop.f32.mrb[0].mxu0
        %v794 = vadd.f32 %v615, %v793
        %v795 = vpop.f32.mrb[0].mxu0
        %v796 = vadd.f32 %v620, %v795
        %v797 = vpop.f32.mrb[0].mxu0
        %v798 = vadd.f32 %v620, %v797
        %799 = vmatprep.mubr.bf16.mxu0 0
        %800 = vmatmul.mubr.bf16.gmra.mrb[0].mxu0 %v709
        %v801 = vpop.f32.mrb[0].mxu0
        %v802 = vadd.f32 %v625, %v801
        %v803 = vpop.f32.mrb[0].mxu0
        %v804 = vadd.f32 %v625, %v803
        %v805 = vpop.f32.mrb[0].mxu0
        %v806 = vadd.f32 %v630, %v805
        %v807 = vpop.f32.mrb[0].mxu0
        %v808 = vadd.f32 %v630, %v807
        %809 = vmatprep.mubr.bf16.mxu0 0
        %810 = vmatmul.mubr.bf16.gmra.mrb[0].mxu0 %v712
        %v811 = vpop.f32.mrb[0].mxu0
        %v812 = vadd.f32 %v635, %v811
        %v813 = vpop.f32.mrb[0].mxu0
        %v814 = vadd.f32 %v635, %v813
        %v815 = vpop.f32.mrb[0].mxu0
        %v816 = vadd.f32 %v640, %v815
        %v817 = vpop.f32.mrb[0].mxu0
        %v818 = vadd.f32 %v640, %v817
        %819 = vmatprep.mubr.bf16.mxu0 0
        %820 = vmatmul.mubr.bf16.gmra.mrb[0].mxu0 %v715
        %v821 = vpop.f32.mrb[0].mxu0
        %v822 = vadd.f32 %v645, %v821
        %v823 = vpop.f32.mrb[0].mxu0
        %v824 = vadd.f32 %v645, %v823
        %v825 = vpop.f32.mrb[0].mxu0
        %v826 = vadd.f32 %v650, %v825
        %v827 = vpop.f32.mrb[0].mxu0
        %v828 = vadd.f32 %v650, %v827
        %829 = vdwg.mxu0
        %v830 = vmax.f32 %v752, 0.0
        %v831 = vmax.f32 %v754, 0.0
        %v832 = vmax.f32 %v756, 0.0
        %v833 = vmax.f32 %v758, 0.0
        %v834 = vmax.f32 %v762, 0.0
        %v835 = vmax.f32 %v764, 0.0
        %v836 = vmax.f32 %v766, 0.0
        %v837 = vmax.f32 %v768, 0.0
        %v838 = vmax.f32 %v772, 0.0
        %v839 = vmax.f32 %v774, 0.0
        %v840 = vmax.f32 %v776, 0.0
        %v841 = vmax.f32 %v778, 0.0
        %v842 = vmax.f32 %v782, 0.0
        %v843 = vmax.f32 %v784, 0.0
        %v844 = vmax.f32 %v786, 0.0
        %v845 = vmax.f32 %v788, 0.0
        %v846 = vmax.f32 %v792, 0.0
        %v847 = vmax.f32 %v794, 0.0
        %v848 = vmax.f32 %v796, 0.0
        %v849 = vmax.f32 %v798, 0.0
        %v850 = vmax.f32 %v802, 0.0
        %v851 = vmax.f32 %v804, 0.0
        %v852 = vmax.f32 %v806, 0.0
        %v853 = vmax.f32 %v808, 0.0
        %v854 = vmax.f32 %v812, 0.0
        %v855 = vmax.f32 %v814, 0.0
        %v856 = vmax.f32 %v816, 0.0
        %v857 = vmax.f32 %v818, 0.0
        %v858 = vmax.f32 %v822, 0.0
        %v859 = vmax.f32 %v824, 0.0
        %v860 = vmax.f32 %v826, 0.0
        %v861 = vmax.f32 %v828, 0.0
        %v862 = vld [vmem:[%s5] sm:$0xf]
        %v863 = vld [vmem:[%s5 + $0x4] sm:$0xf]
        %v864 = vld [vmem:[%s5 + $0x8] sm:$0xf]
        %v865 = vld [vmem:[%s5 + $0xc] sm:$0xf]
        %v866 = vld [vmem:[%s5 + $0x10] sm:$0xf]
        %v867 = vld [vmem:[%s5 + $0x14] sm:$0xf]
        %v868 = vld [vmem:[%s5 + $0x18] sm:$0xf]
        %v869 = vld [vmem:[%s5 + $0x1c] sm:$0xf]
        %v870 = vld [vmem:[%s5 + $0x20] sm:$0xf]
        %v871 = vld [vmem:[%s5 + $0x24] sm:$0xf]
        %v872 = vld [vmem:[%s5 + $0x28] sm:$0xf]
        %v873 = vld [vmem:[%s5 + $0x2c] sm:$0xf]
        %v874 = vld [vmem:[%s5 + $0x30] sm:$0xf]
        %v875 = vld [vmem:[%s5 + $0x34] sm:$0xf]
        %v876 = vld [vmem:[%s5 + $0x38] sm:$0xf]
        %v877 = vld [vmem:[%s5 + $0x3c] sm:$0xf]
        %v878 = vld [vmem:[%s5 + $0x40] sm:$0xf]
        %v879 = vld [vmem:[%s5 + $0x44] sm:$0xf]
        %v880 = vld [vmem:[%s5 + $0x48] sm:$0xf]
        %v881 = vld [vmem:[%s5 + $0x4c] sm:$0xf]
        %v882 = vld [vmem:[%s5 + $0x50] sm:$0xf]
        %v883 = vld [vmem:[%s5 + $0x54] sm:$0xf]
        %v884 = vld [vmem:[%s5 + $0x58] sm:$0xf]
        %v885 = vld [vmem:[%s5 + $0x5c] sm:$0xf]
        %v886 = vld [vmem:[%s5 + $0x60] sm:$0xf]
        %v887 = vld [vmem:[%s5 + $0x64] sm:$0xf]
        %v888 = vld [vmem:[%s5 + $0x68] sm:$0xf]
        %v889 = vld [vmem:[%s5 + $0x6c] sm:$0xf]
        %v890 = vld [vmem:[%s5 + $0x70] sm:$0xf]
        %v891 = vld [vmem:[%s5 + $0x74] sm:$0xf]
        %v892 = vld [vmem:[%s5 + $0x78] sm:$0xf]
        %v893 = vld [vmem:[%s5 + $0x7c] sm:$0xf]
        %v894 = vld [vmem:[%s5 + $0x80] sm:$0xf]
        %v895 = vld [vmem:[%s5 + $0x84] sm:$0xf]
        %v896 = vld [vmem:[%s5 + $0x88] sm:$0xf]
        %v897 = vld [vmem:[%s5 + $0x8c] sm:$0xf]
        %v898 = vld [vmem:[%s5 + $0x90] sm:$0xf]
        %v899 = vld [vmem:[%s5 + $0x94] sm:$0xf]
        %v900 = vld [vmem:[%s5 + $0x98] sm:$0xf]
        %v901 = vld [vmem:[%s5 + $0x9c] sm:$0xf]
        %v902 = vld [vmem:[%s5 + $0xa0] sm:$0xf]
        %v903 = vld [vmem:[%s5 + $0xa4] sm:$0xf]
        %v904 = vld [vmem:[%s5 + $0xa8] sm:$0xf]
        %v905 = vld [vmem:[%s5 + $0xac] sm:$0xf]
        %v906 = vld [vmem:[%s5 + $0xb0] sm:$0xf]
        %v907 = vld [vmem:[%s5 + $0xb4] sm:$0xf]
        %v908 = vld [vmem:[%s5 + $0xb8] sm:$0xf]
        %v909 = vld [vmem:[%s5 + $0xbc] sm:$0xf]
        %v910 = vld [vmem:[%s5 + $0xc0] sm:$0xf]
        %v911 = vld [vmem:[%s5 + $0xc4] sm:$0xf]
        %v912 = vld [vmem:[%s5 + $0xc8] sm:$0xf]
        %v913 = vld [vmem:[%s5 + $0xcc] sm:$0xf]
        %v914 = vld [vmem:[%s5 + $0xd0] sm:$0xf]
        %v915 = vld [vmem:[%s5 + $0xd4] sm:$0xf]
        %v916 = vld [vmem:[%s5 + $0xd8] sm:$0xf]
        %v917 = vld [vmem:[%s5 + $0xdc] sm:$0xf]
        %v918 = vld [vmem:[%s5 + $0xe0] sm:$0xf]
        %v919 = vld [vmem:[%s5 + $0xe4] sm:$0xf]
        %v920 = vld [vmem:[%s5 + $0xe8] sm:$0xf]
        %v921 = vld [vmem:[%s5 + $0xec] sm:$0xf]
        %v922 = vld [vmem:[%s5 + $0xf0] sm:$0xf]
        %v923 = vld [vmem:[%s5 + $0xf4] sm:$0xf]
        %v924 = vld [vmem:[%s5 + $0xf8] sm:$0xf]
        %v925 = vld [vmem:[%s5 + $0xfc] sm:$0xf]
        %v926 = vld [vmem:[%s5 + $0x100] sm:$0xf]
        %v927 = vld [vmem:[%s5 + $0x104] sm:$0xf]
        %v928 = vld [vmem:[%s5 + $0x108] sm:$0xf]
        %v929 = vld [vmem:[%s5 + $0x10c] sm:$0xf]
        %v930 = vld [vmem:[%s5 + $0x110] sm:$0xf]
        %v931 = vld [vmem:[%s5 + $0x114] sm:$0xf]
        %v932 = vld [vmem:[%s5 + $0x118] sm:$0xf]
        %v933 = vld [vmem:[%s5 + $0x11c] sm:$0xf]
        %v934 = vld [vmem:[%s5 + $0x120] sm:$0xf]
        %v935 = vld [vmem:[%s5 + $0x124] sm:$0xf]
        %v936 = vld [vmem:[%s5 + $0x128] sm:$0xf]
        %v937 = vld [vmem:[%s5 + $0x12c] sm:$0xf]
        %v938 = vld [vmem:[%s5 + $0x130] sm:$0xf]
        %v939 = vld [vmem:[%s5 + $0x134] sm:$0xf]
        %v940 = vld [vmem:[%s5 + $0x138] sm:$0xf]
        %v941 = vld [vmem:[%s5 + $0x13c] sm:$0xf]
        %v942 = vld [vmem:[%s5 + $0x140] sm:$0xf]
        %v943 = vld [vmem:[%s5 + $0x144] sm:$0xf]
        %v944 = vld [vmem:[%s5 + $0x148] sm:$0xf]
        %v945 = vld [vmem:[%s5 + $0x14c] sm:$0xf]
        %v946 = vld [vmem:[%s5 + $0x150] sm:$0xf]
        %v947 = vld [vmem:[%s5 + $0x154] sm:$0xf]
        %v948 = vld [vmem:[%s5 + $0x158] sm:$0xf]
        %v949 = vld [vmem:[%s5 + $0x15c] sm:$0xf]
        %v950 = vld [vmem:[%s5 + $0x160] sm:$0xf]
        %v951 = vld [vmem:[%s5 + $0x164] sm:$0xf]
        %v952 = vld [vmem:[%s5 + $0x168] sm:$0xf]
        %v953 = vld [vmem:[%s5 + $0x16c] sm:$0xf]
        %v954 = vld [vmem:[%s5 + $0x170] sm:$0xf]
        %v955 = vld [vmem:[%s5 + $0x174] sm:$0xf]
        %v956 = vld [vmem:[%s5 + $0x178] sm:$0xf]
        %v957 = vld [vmem:[%s5 + $0x17c] sm:$0xf]
        %v958 = vld [vmem:[%s5 + $0x180] sm:$0xf]
        %v959 = vld [vmem:[%s5 + $0x184] sm:$0xf]
        %v960 = vld [vmem:[%s5 + $0x188] sm:$0xf]
        %v961 = vld [vmem:[%s5 + $0x18c] sm:$0xf]
        %v962 = vld [vmem:[%s5 + $0x190] sm:$0xf]
        %v963 = vld [vmem:[%s5 + $0x194] sm:$0xf]
        %v964 = vld [vmem:[%s5 + $0x198] sm:$0xf]
        %v965 = vld [vmem:[%s5 + $0x19c] sm:$0xf]
        %v966 = vld [vmem:[%s5 + $0x1a0] sm:$0xf]
        %v967 = vld [vmem:[%s5 + $0x1a4] sm:$0xf]
        %v968 = vld [vmem:[%s5 + $0x1a8] sm:$0xf]
        %v969 = vld [vmem:[%s5 + $0x1ac] sm:$0xf]
        %v970 = vld [vmem:[%s5 + $0x1b0] sm:$0xf]
        %v971 = vld [vmem:[%s5 + $0x1b4] sm:$0xf]
        %v972 = vld [vmem:[%s5 + $0x1b8] sm:$0xf]
        %v973 = vld [vmem:[%s5 + $0x1bc] sm:$0xf]
        %v974 = vld [vmem:[%s5 + $0x1c0] sm:$0xf]
        %v975 = vld [vmem:[%s5 + $0x1c4] sm:$0xf]
        %v976 = vld [vmem:[%s5 + $0x1c8] sm:$0xf]
        %v977 = vld [vmem:[%s5 + $0x1cc] sm:$0xf]
        %v978 = vld [vmem:[%s5 + $0x1d0] sm:$0xf]
        %v979 = vld [vmem:[%s5 + $0x1d4] sm:$0xf]
        %v980 = vld [vmem:[%s5 + $0x1d8] sm:$0xf]
        %v981 = vld [vmem:[%s5 + $0x1dc] sm:$0xf]
        %v982 = vld [vmem:[%s5 + $0x1e0] sm:$0xf]
        %v983 = vld [vmem:[%s5 + $0x1e4] sm:$0xf]
        %v984 = vld [vmem:[%s5 + $0x1e8] sm:$0xf]
        %v985 = vld [vmem:[%s5 + $0x1ec] sm:$0xf]
        %v986 = vld [vmem:[%s5 + $0x1f0] sm:$0xf]
        %v987 = vld [vmem:[%s5 + $0x1f4] sm:$0xf]
        %v988 = vld [vmem:[%s5 + $0x1f8] sm:$0xf]
        %v989 = vld [vmem:[%s5 + $0x1fc] sm:$0xf]
        %v990 = vpack.c.bf16 %v832, %v830
        %v991 = vpack.c.bf16 %v833, %v831
        %v992 = vpack.c.bf16 %v836, %v834
        %v993 = vpack.c.bf16 %v837, %v835
        %v994 = vpack.c.bf16 %v840, %v838
        %v995 = vpack.c.bf16 %v841, %v839
        %v996 = vpack.c.bf16 %v844, %v842
        %v997 = vpack.c.bf16 %v845, %v843
        %v998 = vpack.c.bf16 %v848, %v846
        %v999 = vpack.c.bf16 %v849, %v847
        %v1000 = vpack.c.bf16 %v852, %v850
        %v1001 = vpack.c.bf16 %v853, %v851
        %v1002 = vpack.c.bf16 %v856, %v854
        %v1003 = vpack.c.bf16 %v857, %v855
        %v1004 = vpack.c.bf16 %v860, %v858
        %v1005 = vpack.c.bf16 %v861, %v859
        %v1134 = vunpack.c.l.b16 %v862
        %v1135 = vunpack.c.l.b16 %v863
        %v1136 = vunpack.c.l.b16 %v864
        %v1137 = vunpack.c.l.b16 %v865
        %v1138 = vunpack.c.l.b16 %v866
        %v1139 = vunpack.c.l.b16 %v867
        %v1140 = vunpack.c.l.b16 %v868
        %v1141 = vunpack.c.l.b16 %v869
        %v1142 = vunpack.c.l.b16 %v870
        %v1143 = vunpack.c.l.b16 %v871
        %v1144 = vunpack.c.l.b16 %v872
        %v1145 = vunpack.c.l.b16 %v873
        %v1146 = vunpack.c.l.b16 %v874
        %v1147 = vunpack.c.l.b16 %v875
        %v1148 = vunpack.c.l.b16 %v876
        %v1149 = vunpack.c.l.b16 %v877
        %v1150 = vunpack.c.l.b16 %v878
        %v1151 = vunpack.c.l.b16 %v879
        %v1152 = vunpack.c.l.b16 %v880
        %v1153 = vunpack.c.l.b16 %v881
        %v1154 = vunpack.c.l.b16 %v882
        %v1155 = vunpack.c.l.b16 %v883
        %v1156 = vunpack.c.l.b16 %v884
        %v1157 = vunpack.c.l.b16 %v885
        %v1158 = vunpack.c.l.b16 %v886
        %v1159 = vunpack.c.l.b16 %v887
        %v1160 = vunpack.c.l.b16 %v888
        %v1161 = vunpack.c.l.b16 %v889
        %v1162 = vunpack.c.l.b16 %v890
        %v1163 = vunpack.c.l.b16 %v891
        %v1164 = vunpack.c.l.b16 %v892
        %v1165 = vunpack.c.l.b16 %v893
        %v1166 = vunpack.c.l.b16 %v894
        %v1167 = vunpack.c.l.b16 %v895
        %v1168 = vunpack.c.l.b16 %v896
        %v1169 = vunpack.c.l.b16 %v897
        %v1170 = vunpack.c.l.b16 %v898
        %v1171 = vunpack.c.l.b16 %v899
        %v1172 = vunpack.c.l.b16 %v900
        %v1173 = vunpack.c.l.b16 %v901
        %v1174 = vunpack.c.l.b16 %v902
        %v1175 = vunpack.c.l.b16 %v903
        %v1176 = vunpack.c.l.b16 %v904
        %v1177 = vunpack.c.l.b16 %v905
        %v1178 = vunpack.c.l.b16 %v906
        %v1179 = vunpack.c.l.b16 %v907
        %v1180 = vunpack.c.l.b16 %v908
        %v1181 = vunpack.c.l.b16 %v909
        %v1182 = vunpack.c.l.b16 %v910
        %v1183 = vunpack.c.l.b16 %v911
        %v1184 = vunpack.c.l.b16 %v912
        %v1185 = vunpack.c.l.b16 %v913
        %v1186 = vunpack.c.l.b16 %v914
        %v1187 = vunpack.c.l.b16 %v915
        %v1188 = vunpack.c.l.b16 %v916
        %v1189 = vunpack.c.l.b16 %v917
        %v1190 = vunpack.c.l.b16 %v918
        %v1191 = vunpack.c.l.b16 %v919
        %v1192 = vunpack.c.l.b16 %v920
        %v1193 = vunpack.c.l.b16 %v921
        %v1194 = vunpack.c.l.b16 %v922
        %v1195 = vunpack.c.l.b16 %v923
        %v1196 = vunpack.c.l.b16 %v924
        %v1197 = vunpack.c.l.b16 %v925
        %v1198 = vunpack.c.l.b16 %v926
        %v1199 = vunpack.c.l.b16 %v927
        %v1200 = vunpack.c.l.b16 %v928
        %v1201 = vunpack.c.l.b16 %v929
        %v1202 = vunpack.c.l.b16 %v930
        %v1203 = vunpack.c.l.b16 %v931
        %v1204 = vunpack.c.l.b16 %v932
        %v1205 = vunpack.c.l.b16 %v933
        %v1206 = vunpack.c.l.b16 %v934
        %v1207 = vunpack.c.l.b16 %v935
        %v1208 = vunpack.c.l.b16 %v936
        %v1209 = vunpack.c.l.b16 %v937
        %v1210 = vunpack.c.l.b16 %v938
        %v1211 = vunpack.c.l.b16 %v939
        %v1212 = vunpack.c.l.b16 %v940
        %v1213 = vunpack.c.l.b16 %v941
        %v1214 = vunpack.c.l.b16 %v942
        %v1215 = vunpack.c.l.b16 %v943
        %v1216 = vunpack.c.l.b16 %v944
        %v1217 = vunpack.c.l.b16 %v945
        %v1218 = vunpack.c.l.b16 %v946
        %v1219 = vunpack.c.l.b16 %v947
        %v1220 = vunpack.c.l.b16 %v948
        %v1221 = vunpack.c.l.b16 %v949
        %v1222 = vunpack.c.l.b16 %v950
        %v1223 = vunpack.c.l.b16 %v951
        %v1224 = vunpack.c.l.b16 %v952
        %v1225 = vunpack.c.l.b16 %v953
        %v1226 = vunpack.c.l.b16 %v954
        %v1227 = vunpack.c.l.b16 %v955
        %v1228 = vunpack.c.l.b16 %v956
        %v1229 = vunpack.c.l.b16 %v957
        %v1230 = vunpack.c.l.b16 %v958
        %v1231 = vunpack.c.l.b16 %v959
        %v1232 = vunpack.c.l.b16 %v960
        %v1233 = vunpack.c.l.b16 %v961
        %v1234 = vunpack.c.l.b16 %v962
        %v1235 = vunpack.c.l.b16 %v963
        %v1236 = vunpack.c.l.b16 %v964
        %v1237 = vunpack.c.l.b16 %v965
        %v1238 = vunpack.c.l.b16 %v966
        %v1239 = vunpack.c.l.b16 %v967
        %v1240 = vunpack.c.l.b16 %v968
        %v1241 = vunpack.c.l.b16 %v969
        %v1242 = vunpack.c.l.b16 %v970
        %v1243 = vunpack.c.l.b16 %v971
        %v1244 = vunpack.c.l.b16 %v972
        %v1245 = vunpack.c.l.b16 %v973
        %v1246 = vunpack.c.l.b16 %v974
        %v1247 = vunpack.c.l.b16 %v975
        %v1248 = vunpack.c.l.b16 %v976
        %v1249 = vunpack.c.l.b16 %v977
        %v1250 = vunpack.c.l.b16 %v978
        %v1251 = vunpack.c.l.b16 %v979
        %v1252 = vunpack.c.l.b16 %v980
        %v1253 = vunpack.c.l.b16 %v981
        %v1254 = vunpack.c.l.b16 %v982
        %v1255 = vunpack.c.l.b16 %v983
        %v1256 = vunpack.c.l.b16 %v984
        %v1257 = vunpack.c.l.b16 %v985
        %v1258 = vunpack.c.l.b16 %v986
        %v1259 = vunpack.c.l.b16 %v987
        %v1260 = vunpack.c.l.b16 %v988
        %v1261 = vunpack.c.l.b16 %v989
        %v1262 = vpack.c.b16 %v1135, %v1134
        %v1263 = vpack.c.b16 %v1137, %v1136
        %v1264 = vpack.c.b16 %v1139, %v1138
        %v1265 = vpack.c.b16 %v1141, %v1140
        %v1266 = vpack.c.b16 %v1143, %v1142
        %v1267 = vpack.c.b16 %v1145, %v1144
        %v1268 = vpack.c.b16 %v1147, %v1146
        %v1269 = vpack.c.b16 %v1149, %v1148
        %v1270 = vpack.c.b16 %v1151, %v1150
        %v1271 = vpack.c.b16 %v1153, %v1152
        %v1272 = vpack.c.b16 %v1155, %v1154
        %v1273 = vpack.c.b16 %v1157, %v1156
        %v1274 = vpack.c.b16 %v1159, %v1158
        %v1275 = vpack.c.b16 %v1161, %v1160
        %v1276 = vpack.c.b16 %v1163, %v1162
        %v1277 = vpack.c.b16 %v1165, %v1164
        %v1278 = vpack.c.b16 %v1167, %v1166
        %v1279 = vpack.c.b16 %v1169, %v1168
        %v1280 = vpack.c.b16 %v1171, %v1170
        %v1281 = vpack.c.b16 %v1173, %v1172
        %v1282 = vpack.c.b16 %v1175, %v1174
        %v1283 = vpack.c.b16 %v1177, %v1176
        %v1284 = vpack.c.b16 %v1179, %v1178
        %v1285 = vpack.c.b16 %v1181, %v1180
        %v1286 = vpack.c.b16 %v1183, %v1182
        %v1287 = vpack.c.b16 %v1185, %v1184
        %v1288 = vpack.c.b16 %v1187, %v1186
        %v1289 = vpack.c.b16 %v1189, %v1188
        %v1290 = vpack.c.b16 %v1191, %v1190
        %v1291 = vpack.c.b16 %v1193, %v1192
        %v1292 = vpack.c.b16 %v1195, %v1194
        %v1293 = vpack.c.b16 %v1197, %v1196
        %v1294 = vpack.c.b16 %v1199, %v1198
        %v1295 = vpack.c.b16 %v1201, %v1200
        %v1296 = vpack.c.b16 %v1203, %v1202
        %v1297 = vpack.c.b16 %v1205, %v1204
        %v1298 = vpack.c.b16 %v1207, %v1206
        %v1299 = vpack.c.b16 %v1209, %v1208
        %v1300 = vpack.c.b16 %v1211, %v1210
        %v1301 = vpack.c.b16 %v1213, %v1212
        %v1302 = vpack.c.b16 %v1215, %v1214
        %v1303 = vpack.c.b16 %v1217, %v1216
        %v1304 = vpack.c.b16 %v1219, %v1218
        %v1305 = vpack.c.b16 %v1221, %v1220
        %v1306 = vpack.c.b16 %v1223, %v1222
        %v1307 = vpack.c.b16 %v1225, %v1224
        %v1308 = vpack.c.b16 %v1227, %v1226
        %v1309 = vpack.c.b16 %v1229, %v1228
        %v1310 = vpack.c.b16 %v1231, %v1230
        %v1311 = vpack.c.b16 %v1233, %v1232
        %v1312 = vpack.c.b16 %v1235, %v1234
        %v1313 = vpack.c.b16 %v1237, %v1236
        %v1314 = vpack.c.b16 %v1239, %v1238
        %v1315 = vpack.c.b16 %v1241, %v1240
        %v1316 = vpack.c.b16 %v1243, %v1242
        %v1317 = vpack.c.b16 %v1245, %v1244
        %v1318 = vpack.c.b16 %v1247, %v1246
        %v1319 = vpack.c.b16 %v1249, %v1248
        %v1320 = vpack.c.b16 %v1251, %v1250
        %v1321 = vpack.c.b16 %v1253, %v1252
        %v1322 = vpack.c.b16 %v1255, %v1254
        %v1323 = vpack.c.b16 %v1257, %v1256
        %v1324 = vpack.c.b16 %v1259, %v1258
        %v1325 = vpack.c.b16 %v1261, %v1260
        %1390 = vmatprep.subr.bf16.mxu0 %v991
        %1391 = vmatpush1.bf16.msra.mxu0 %v990
        %1392 = vmatprep.subr.bf16.mxu0 %v993
        %1393 = vmatpush1.bf16.msra.mxu0 %v992
        %1394 = vmatprep.subr.bf16.mxu0 %v995
        %1395 = vmatpush1.bf16.msra.mxu0 %v994
        %1396 = vmatprep.subr.bf16.mxu0 %v997
        %1397 = vmatpush1.bf16.msra.mxu0 %v996
        %1398 = vmatprep.subr.bf16.mxu0 %v999
        %1399 = vmatpush1.bf16.msra.mxu0 %v998
        %1400 = vmatprep.subr.bf16.mxu0 %v1001
        %1401 = vmatpush1.bf16.msra.mxu0 %v1000
        %1402 = vmatprep.subr.bf16.mxu0 %v1003
        %1403 = vmatpush1.bf16.msra.mxu0 %v1002
        %1404 = vmatprep.subr.bf16.mxu0 %v1005
        %1405 = vmatpush1.bf16.msra.mxu0 %v1004
        %1406 = vmatprep.subr.bf16.mxu0 0
        %1407 = vmatpush1.bf16.msra.mxu0 0
        %1408 = vmatprep.subr.bf16.mxu0 0
        %1409 = vmatpush1.bf16.msra.mxu0 0
        %1410 = vmatprep.subr.bf16.mxu0 0
        %1411 = vmatpush1.bf16.msra.mxu0 0
        %1412 = vmatprep.subr.bf16.mxu0 0
        %1413 = vmatpush1.bf16.msra.mxu0 0
        %1414 = vmatprep.subr.bf16.mxu0 0
        %1415 = vmatpush1.bf16.msra.mxu0 0
        %1416 = vmatprep.subr.bf16.mxu0 0
        %1417 = vmatpush1.bf16.msra.mxu0 0
        %1418 = vmatprep.subr.bf16.mxu0 0
        %1419 = vmatpush1.bf16.msra.mxu0 0
        %1420 = vmatprep.subr.bf16.mxu0 0
        %1421 = vmatpush1.bf16.msra.mxu0 0
        %1422 = vmatprep.mubr.bf16.mxu0 0
        %1423 = vmatmul.mubr.bf16.gmra.mrb[0].mxu0 %v1262
        %v1424 = vpop.f32.mrb[0].mxu0
        %v1425 = vadd.f32 0.0, %v1424
        %v1426 = vpop.f32.mrb[0].mxu0
        %v1427 = vadd.f32 0.0, %v1426
        %v1428 = vpop.f32.mrb[0].mxu0
        %v1429 = vadd.f32 0.0, %v1428
        %v1430 = vpop.f32.mrb[0].mxu0
        %v1431 = vadd.f32 0.0, %v1430
        %1432 = vmatprep.mubr.bf16.mxu0 0
        %1433 = vmatmul.mubr.bf16.gmra.mrb[0].mxu0 %v1263
        %v1434 = vpop.f32.mrb[0].mxu0
        %v1435 = vadd.f32 0.0, %v1434
        %v1436 = vpop.f32.mrb[0].mxu0
        %v1437 = vadd.f32 0.0, %v1436
        %v1438 = vpop.f32.mrb[0].mxu0
        %v1439 = vadd.f32 0.0, %v1438
        %v1440 = vpop.f32.mrb[0].mxu0
        %v1441 = vadd.f32 0.0, %v1440
        %1442 = vmatprep.mubr.bf16.mxu0 0
        %1443 = vmatmul.mubr.bf16.gmra.mrb[0].mxu0 %v1264
        %v1444 = vpop.f32.mrb[0].mxu0
        %v1445 = vadd.f32 0.0, %v1444
        %v1446 = vpop.f32.mrb[0].mxu0
        %v1447 = vadd.f32 0.0, %v1446
        %v1448 = vpop.f32.mrb[0].mxu0
        %v1449 = vadd.f32 0.0, %v1448
        %v1450 = vpop.f32.mrb[0].mxu0
        %v1451 = vadd.f32 0.0, %v1450
        %1452 = vmatprep.mubr.bf16.mxu0 0
        %1453 = vmatmul.mubr.bf16.gmra.mrb[0].mxu0 %v1265
        %v1454 = vpop.f32.mrb[0].mxu0
        %v1455 = vadd.f32 0.0, %v1454
        %v1456 = vpop.f32.mrb[0].mxu0
        %v1457 = vadd.f32 0.0, %v1456
        %v1458 = vpop.f32.mrb[0].mxu0
        %v1459 = vadd.f32 0.0, %v1458
        %v1460 = vpop.f32.mrb[0].mxu0
        %v1461 = vadd.f32 0.0, %v1460
        %1462 = vmatprep.mubr.bf16.mxu0 0
        %1463 = vmatmul.mubr.bf16.gmra.mrb[0].mxu0 %v1266
        %v1464 = vpop.f32.mrb[0].mxu0
        %v1465 = vadd.f32 0.0, %v1464
        %v1466 = vpop.f32.mrb[0].mxu0
        %v1467 = vadd.f32 0.0, %v1466
        %v1468 = vpop.f32.mrb[0].mxu0
        %v1469 = vadd.f32 0.0, %v1468
        %v1470 = vpop.f32.mrb[0].mxu0
        %v1471 = vadd.f32 0.0, %v1470
        %1472 = vmatprep.mubr.bf16.mxu0 0
        %1473 = vmatmul.mubr.bf16.gmra.mrb[0].mxu0 %v1267
        %v1474 = vpop.f32.mrb[0].mxu0
        %v1475 = vadd.f32 0.0, %v1474
        %v1476 = vpop.f32.mrb[0].mxu0
        %v1477 = vadd.f32 0.0, %v1476
        %v1478 = vpop.f32.mrb[0].mxu0
        %v1479 = vadd.f32 0.0, %v1478
        %v1480 = vpop.f32.mrb[0].mxu0
        %v1481 = vadd.f32 0.0, %v1480
        %1482 = vmatprep.mubr.bf16.mxu0 0
        %1483 = vmatmul.mubr.bf16.gmra.mrb[0].mxu0 %v1268
        %v1484 = vpop.f32.mrb[0].mxu0
        %v1485 = vadd.f32 0.0, %v1484
        %v1486 = vpop.f32.mrb[0].mxu0
        %v1487 = vadd.f32 0.0, %v1486
        %v1488 = vpop.f32.mrb[0].mxu0
        %v1489 = vadd.f32 0.0, %v1488
        %v1490 = vpop.f32.mrb[0].mxu0
        %v1491 = vadd.f32 0.0, %v1490
        %1492 = vmatprep.mubr.bf16.mxu0 0
        %1493 = vmatmul.mubr.bf16.gmra.mrb[0].mxu0 %v1269
        %v1494 = vpop.f32.mrb[0].mxu0
        %v1495 = vadd.f32 0.0, %v1494
        %v1496 = vpop.f32.mrb[0].mxu0
        %v1497 = vadd.f32 0.0, %v1496
        %v1498 = vpop.f32.mrb[0].mxu0
        %v1499 = vadd.f32 0.0, %v1498
        %v1500 = vpop.f32.mrb[0].mxu0
        %v1501 = vadd.f32 0.0, %v1500
        %1502 = vmatprep.mubr.bf16.mxu0 0
        %1503 = vmatmul.mubr.bf16.gmra.mrb[0].mxu0 %v1270
        %v1504 = vpop.f32.mrb[0].mxu0
        %v1505 = vadd.f32 0.0, %v1504
        %v1506 = vpop.f32.mrb[0].mxu0
        %v1507 = vadd.f32 0.0, %v1506
        %v1508 = vpop.f32.mrb[0].mxu0
        %v1509 = vadd.f32 0.0, %v1508
        %v1510 = vpop.f32.mrb[0].mxu0
        %v1511 = vadd.f32 0.0, %v1510
        %1512 = vmatprep.mubr.bf16.mxu0 0
        %1513 = vmatmul.mubr.bf16.gmra.mrb[0].mxu0 %v1271
        %v1514 = vpop.f32.mrb[0].mxu0
        %v1515 = vadd.f32 0.0, %v1514
        %v1516 = vpop.f32.mrb[0].mxu0
        %v1517 = vadd.f32 0.0, %v1516
        %v1518 = vpop.f32.mrb[0].mxu0
        %v1519 = vadd.f32 0.0, %v1518
        %v1520 = vpop.f32.mrb[0].mxu0
        %v1521 = vadd.f32 0.0, %v1520
        %1522 = vmatprep.mubr.bf16.mxu0 0
        %1523 = vmatmul.mubr.bf16.gmra.mrb[0].mxu0 %v1272
        %v1524 = vpop.f32.mrb[0].mxu0
        %v1525 = vadd.f32 0.0, %v1524
        %v1526 = vpop.f32.mrb[0].mxu0
        %v1527 = vadd.f32 0.0, %v1526
        %v1528 = vpop.f32.mrb[0].mxu0
        %v1529 = vadd.f32 0.0, %v1528
        %v1530 = vpop.f32.mrb[0].mxu0
        %v1531 = vadd.f32 0.0, %v1530
        %1532 = vmatprep.mubr.bf16.mxu0 0
        %1533 = vmatmul.mubr.bf16.gmra.mrb[0].mxu0 %v1273
        %v1534 = vpop.f32.mrb[0].mxu0
        %v1535 = vadd.f32 0.0, %v1534
        %v1536 = vpop.f32.mrb[0].mxu0
        %v1537 = vadd.f32 0.0, %v1536
        %v1538 = vpop.f32.mrb[0].mxu0
        %v1539 = vadd.f32 0.0, %v1538
        %v1540 = vpop.f32.mrb[0].mxu0
        %v1541 = vadd.f32 0.0, %v1540
        %1542 = vmatprep.mubr.bf16.mxu0 0
        %1543 = vmatmul.mubr.bf16.gmra.mrb[0].mxu0 %v1274
        %v1544 = vpop.f32.mrb[0].mxu0
        %v1545 = vadd.f32 0.0, %v1544
        %v1546 = vpop.f32.mrb[0].mxu0
        %v1547 = vadd.f32 0.0, %v1546
        %v1548 = vpop.f32.mrb[0].mxu0
        %v1549 = vadd.f32 0.0, %v1548
        %v1550 = vpop.f32.mrb[0].mxu0
        %v1551 = vadd.f32 0.0, %v1550
        %1552 = vmatprep.mubr.bf16.mxu0 0
        %1553 = vmatmul.mubr.bf16.gmra.mrb[0].mxu0 %v1275
        %v1554 = vpop.f32.mrb[0].mxu0
        %v1555 = vadd.f32 0.0, %v1554
        %v1556 = vpop.f32.mrb[0].mxu0
        %v1557 = vadd.f32 0.0, %v1556
        %v1558 = vpop.f32.mrb[0].mxu0
        %v1559 = vadd.f32 0.0, %v1558
        %v1560 = vpop.f32.mrb[0].mxu0
        %v1561 = vadd.f32 0.0, %v1560
        %1562 = vmatprep.mubr.bf16.mxu0 0
        %1563 = vmatmul.mubr.bf16.gmra.mrb[0].mxu0 %v1276
        %v1564 = vpop.f32.mrb[0].mxu0
        %v1565 = vadd.f32 0.0, %v1564
        %v1566 = vpop.f32.mrb[0].mxu0
        %v1567 = vadd.f32 0.0, %v1566
        %v1568 = vpop.f32.mrb[0].mxu0
        %v1569 = vadd.f32 0.0, %v1568
        %v1570 = vpop.f32.mrb[0].mxu0
        %v1571 = vadd.f32 0.0, %v1570
        %1572 = vmatprep.mubr.bf16.mxu0 0
        %1573 = vmatmul.mubr.bf16.gmra.mrb[0].mxu0 %v1277
        %v1574 = vpop.f32.mrb[0].mxu0
        %v1575 = vadd.f32 0.0, %v1574
        %v1576 = vpop.f32.mrb[0].mxu0
        %v1577 = vadd.f32 0.0, %v1576
        %v1578 = vpop.f32.mrb[0].mxu0
        %v1579 = vadd.f32 0.0, %v1578
        %v1580 = vpop.f32.mrb[0].mxu0
        %v1581 = vadd.f32 0.0, %v1580
        %1582 = vmatprep.mubr.bf16.mxu0 0
        %1583 = vmatmul.mubr.bf16.gmra.mrb[0].mxu0 %v1278
        %v1584 = vpop.f32.mrb[0].mxu0
        %v1585 = vadd.f32 0.0, %v1584
        %v1586 = vpop.f32.mrb[0].mxu0
        %v1587 = vadd.f32 0.0, %v1586
        %v1588 = vpop.f32.mrb[0].mxu0
        %v1589 = vadd.f32 0.0, %v1588
        %v1590 = vpop.f32.mrb[0].mxu0
        %v1591 = vadd.f32 0.0, %v1590
        %1592 = vmatprep.mubr.bf16.mxu0 0
        %1593 = vmatmul.mubr.bf16.gmra.mrb[0].mxu0 %v1279
        %v1594 = vpop.f32.mrb[0].mxu0
        %v1595 = vadd.f32 0.0, %v1594
        %v1596 = vpop.f32.mrb[0].mxu0
        %v1597 = vadd.f32 0.0, %v1596
        %v1598 = vpop.f32.mrb[0].mxu0
        %v1599 = vadd.f32 0.0, %v1598
        %v1600 = vpop.f32.mrb[0].mxu0
        %v1601 = vadd.f32 0.0, %v1600
        %1602 = vmatprep.mubr.bf16.mxu0 0
        %1603 = vmatmul.mubr.bf16.gmra.mrb[0].mxu0 %v1280
        %v1604 = vpop.f32.mrb[0].mxu0
        %v1605 = vadd.f32 0.0, %v1604
        %v1606 = vpop.f32.mrb[0].mxu0
        %v1607 = vadd.f32 0.0, %v1606
        %v1608 = vpop.f32.mrb[0].mxu0
        %v1609 = vadd.f32 0.0, %v1608
        %v1610 = vpop.f32.mrb[0].mxu0
        %v1611 = vadd.f32 0.0, %v1610
        %1612 = vmatprep.mubr.bf16.mxu0 0
        %1613 = vmatmul.mubr.bf16.gmra.mrb[0].mxu0 %v1281
        %v1614 = vpop.f32.mrb[0].mxu0
        %v1615 = vadd.f32 0.0, %v1614
        %v1616 = vpop.f32.mrb[0].mxu0
        %v1617 = vadd.f32 0.0, %v1616
        %v1618 = vpop.f32.mrb[0].mxu0
        %v1619 = vadd.f32 0.0, %v1618
        %v1620 = vpop.f32.mrb[0].mxu0
        %v1621 = vadd.f32 0.0, %v1620
        %1622 = vmatprep.mubr.bf16.mxu0 0
        %1623 = vmatmul.mubr.bf16.gmra.mrb[0].mxu0 %v1282
        %v1624 = vpop.f32.mrb[0].mxu0
        %v1625 = vadd.f32 0.0, %v1624
        %v1626 = vpop.f32.mrb[0].mxu0
        %v1627 = vadd.f32 0.0, %v1626
        %v1628 = vpop.f32.mrb[0].mxu0
        %v1629 = vadd.f32 0.0, %v1628
        %v1630 = vpop.f32.mrb[0].mxu0
        %v1631 = vadd.f32 0.0, %v1630
        %1632 = vmatprep.mubr.bf16.mxu0 0
        %1633 = vmatmul.mubr.bf16.gmra.mrb[0].mxu0 %v1283
        %v1634 = vpop.f32.mrb[0].mxu0
        %v1635 = vadd.f32 0.0, %v1634
        %v1636 = vpop.f32.mrb[0].mxu0
        %v1637 = vadd.f32 0.0, %v1636
        %v1638 = vpop.f32.mrb[0].mxu0
        %v1639 = vadd.f32 0.0, %v1638
        %v1640 = vpop.f32.mrb[0].mxu0
        %v1641 = vadd.f32 0.0, %v1640
        %1642 = vmatprep.mubr.bf16.mxu0 0
        %1643 = vmatmul.mubr.bf16.gmra.mrb[0].mxu0 %v1284
        %v1644 = vpop.f32.mrb[0].mxu0
        %v1645 = vadd.f32 0.0, %v1644
        %v1646 = vpop.f32.mrb[0].mxu0
        %v1647 = vadd.f32 0.0, %v1646
        %v1648 = vpop.f32.mrb[0].mxu0
        %v1649 = vadd.f32 0.0, %v1648
        %v1650 = vpop.f32.mrb[0].mxu0
        %v1651 = vadd.f32 0.0, %v1650
        %1652 = vmatprep.mubr.bf16.mxu0 0
        %1653 = vmatmul.mubr.bf16.gmra.mrb[0].mxu0 %v1285
        %v1654 = vpop.f32.mrb[0].mxu0
        %v1655 = vadd.f32 0.0, %v1654
        %v1656 = vpop.f32.mrb[0].mxu0
        %v1657 = vadd.f32 0.0, %v1656
        %v1658 = vpop.f32.mrb[0].mxu0
        %v1659 = vadd.f32 0.0, %v1658
        %v1660 = vpop.f32.mrb[0].mxu0
        %v1661 = vadd.f32 0.0, %v1660
        %1662 = vmatprep.mubr.bf16.mxu0 0
        %1663 = vmatmul.mubr.bf16.gmra.mrb[0].mxu0 %v1286
        %v1664 = vpop.f32.mrb[0].mxu0
        %v1665 = vadd.f32 0.0, %v1664
        %v1666 = vpop.f32.mrb[0].mxu0
        %v1667 = vadd.f32 0.0, %v1666
        %v1668 = vpop.f32.mrb[0].mxu0
        %v1669 = vadd.f32 0.0, %v1668
        %v1670 = vpop.f32.mrb[0].mxu0
        %v1671 = vadd.f32 0.0, %v1670
        %1672 = vmatprep.mubr.bf16.mxu0 0
        %1673 = vmatmul.mubr.bf16.gmra.mrb[0].mxu0 %v1287
        %v1674 = vpop.f32.mrb[0].mxu0
        %v1675 = vadd.f32 0.0, %v1674
        %v1676 = vpop.f32.mrb[0].mxu0
        %v1677 = vadd.f32 0.0, %v1676
        %v1678 = vpop.f32.mrb[0].mxu0
        %v1679 = vadd.f32 0.0, %v1678
        %v1680 = vpop.f32.mrb[0].mxu0
        %v1681 = vadd.f32 0.0, %v1680
        %1682 = vmatprep.mubr.bf16.mxu0 0
        %1683 = vmatmul.mubr.bf16.gmra.mrb[0].mxu0 %v1288
        %v1684 = vpop.f32.mrb[0].mxu0
        %v1685 = vadd.f32 0.0, %v1684
        %v1686 = vpop.f32.mrb[0].mxu0
        %v1687 = vadd.f32 0.0, %v1686
        %v1688 = vpop.f32.mrb[0].mxu0
        %v1689 = vadd.f32 0.0, %v1688
        %v1690 = vpop.f32.mrb[0].mxu0
        %v1691 = vadd.f32 0.0, %v1690
        %1692 = vmatprep.mubr.bf16.mxu0 0
        %1693 = vmatmul.mubr.bf16.gmra.mrb[0].mxu0 %v1289
        %v1694 = vpop.f32.mrb[0].mxu0
        %v1695 = vadd.f32 0.0, %v1694
        %v1696 = vpop.f32.mrb[0].mxu0
        %v1697 = vadd.f32 0.0, %v1696
        %v1698 = vpop.f32.mrb[0].mxu0
        %v1699 = vadd.f32 0.0, %v1698
        %v1700 = vpop.f32.mrb[0].mxu0
        %v1701 = vadd.f32 0.0, %v1700
        %1702 = vmatprep.mubr.bf16.mxu0 0
        %1703 = vmatmul.mubr.bf16.gmra.mrb[0].mxu0 %v1290
        %v1704 = vpop.f32.mrb[0].mxu0
        %v1705 = vadd.f32 0.0, %v1704
        %v1706 = vpop.f32.mrb[0].mxu0
        %v1707 = vadd.f32 0.0, %v1706
        %v1708 = vpop.f32.mrb[0].mxu0
        %v1709 = vadd.f32 0.0, %v1708
        %v1710 = vpop.f32.mrb[0].mxu0
        %v1711 = vadd.f32 0.0, %v1710
        %1712 = vmatprep.mubr.bf16.mxu0 0
        %1713 = vmatmul.mubr.bf16.gmra.mrb[0].mxu0 %v1291
        %v1714 = vpop.f32.mrb[0].mxu0
        %v1715 = vadd.f32 0.0, %v1714
        %v1716 = vpop.f32.mrb[0].mxu0
        %v1717 = vadd.f32 0.0, %v1716
        %v1718 = vpop.f32.mrb[0].mxu0
        %v1719 = vadd.f32 0.0, %v1718
        %v1720 = vpop.f32.mrb[0].mxu0
        %v1721 = vadd.f32 0.0, %v1720
        %1722 = vmatprep.mubr.bf16.mxu0 0
        %1723 = vmatmul.mubr.bf16.gmra.mrb[0].mxu0 %v1292
        %v1724 = vpop.f32.mrb[0].mxu0
        %v1725 = vadd.f32 0.0, %v1724
        %v1726 = vpop.f32.mrb[0].mxu0
        %v1727 = vadd.f32 0.0, %v1726
        %v1728 = vpop.f32.mrb[0].mxu0
        %v1729 = vadd.f32 0.0, %v1728
        %v1730 = vpop.f32.mrb[0].mxu0
        %v1731 = vadd.f32 0.0, %v1730
        %1732 = vmatprep.mubr.bf16.mxu0 0
        %1733 = vmatmul.mubr.bf16.gmra.mrb[0].mxu0 %v1293
        %v1734 = vpop.f32.mrb[0].mxu0
        %v1735 = vadd.f32 0.0, %v1734
        %v1736 = vpop.f32.mrb[0].mxu0
        %v1737 = vadd.f32 0.0, %v1736
        %v1738 = vpop.f32.mrb[0].mxu0
        %v1739 = vadd.f32 0.0, %v1738
        %v1740 = vpop.f32.mrb[0].mxu0
        %v1741 = vadd.f32 0.0, %v1740
        %1742 = vmatprep.mubr.bf16.mxu0 0
        %1743 = vmatmul.mubr.bf16.gmra.mrb[0].mxu0 %v1294
        %v1744 = vpop.f32.mrb[0].mxu0
        %v1745 = vadd.f32 0.0, %v1744
        %v1746 = vpop.f32.mrb[0].mxu0
        %v1747 = vadd.f32 0.0, %v1746
        %v1748 = vpop.f32.mrb[0].mxu0
        %v1749 = vadd.f32 0.0, %v1748
        %v1750 = vpop.f32.mrb[0].mxu0
        %v1751 = vadd.f32 0.0, %v1750
        %1752 = vmatprep.mubr.bf16.mxu0 0
        %1753 = vmatmul.mubr.bf16.gmra.mrb[0].mxu0 %v1295
        %v1754 = vpop.f32.mrb[0].mxu0
        %v1755 = vadd.f32 0.0, %v1754
        %v1756 = vpop.f32.mrb[0].mxu0
        %v1757 = vadd.f32 0.0, %v1756
        %v1758 = vpop.f32.mrb[0].mxu0
        %v1759 = vadd.f32 0.0, %v1758
        %v1760 = vpop.f32.mrb[0].mxu0
        %v1761 = vadd.f32 0.0, %v1760
        %1762 = vmatprep.mubr.bf16.mxu0 0
        %1763 = vmatmul.mubr.bf16.gmra.mrb[0].mxu0 %v1296
        %v1764 = vpop.f32.mrb[0].mxu0
        %v1765 = vadd.f32 0.0, %v1764
        %v1766 = vpop.f32.mrb[0].mxu0
        %v1767 = vadd.f32 0.0, %v1766
        %v1768 = vpop.f32.mrb[0].mxu0
        %v1769 = vadd.f32 0.0, %v1768
        %v1770 = vpop.f32.mrb[0].mxu0
        %v1771 = vadd.f32 0.0, %v1770
        %1772 = vmatprep.mubr.bf16.mxu0 0
        %1773 = vmatmul.mubr.bf16.gmra.mrb[0].mxu0 %v1297
        %v1774 = vpop.f32.mrb[0].mxu0
        %v1775 = vadd.f32 0.0, %v1774
        %v1776 = vpop.f32.mrb[0].mxu0
        %v1777 = vadd.f32 0.0, %v1776
        %v1778 = vpop.f32.mrb[0].mxu0
        %v1779 = vadd.f32 0.0, %v1778
        %v1780 = vpop.f32.mrb[0].mxu0
        %v1781 = vadd.f32 0.0, %v1780
        %1782 = vmatprep.mubr.bf16.mxu0 0
        %1783 = vmatmul.mubr.bf16.gmra.mrb[0].mxu0 %v1298
        %v1784 = vpop.f32.mrb[0].mxu0
        %v1785 = vadd.f32 0.0, %v1784
        %v1786 = vpop.f32.mrb[0].mxu0
        %v1787 = vadd.f32 0.0, %v1786
        %v1788 = vpop.f32.mrb[0].mxu0
        %v1789 = vadd.f32 0.0, %v1788
        %v1790 = vpop.f32.mrb[0].mxu0
        %v1791 = vadd.f32 0.0, %v1790
        %1792 = vmatprep.mubr.bf16.mxu0 0
        %1793 = vmatmul.mubr.bf16.gmra.mrb[0].mxu0 %v1299
        %v1794 = vpop.f32.mrb[0].mxu0
        %v1795 = vadd.f32 0.0, %v1794
        %v1796 = vpop.f32.mrb[0].mxu0
        %v1797 = vadd.f32 0.0, %v1796
        %v1798 = vpop.f32.mrb[0].mxu0
        %v1799 = vadd.f32 0.0, %v1798
        %v1800 = vpop.f32.mrb[0].mxu0
        %v1801 = vadd.f32 0.0, %v1800
        %1802 = vmatprep.mubr.bf16.mxu0 0
        %1803 = vmatmul.mubr.bf16.gmra.mrb[0].mxu0 %v1300
        %v1804 = vpop.f32.mrb[0].mxu0
        %v1805 = vadd.f32 0.0, %v1804
        %v1806 = vpop.f32.mrb[0].mxu0
        %v1807 = vadd.f32 0.0, %v1806
        %v1808 = vpop.f32.mrb[0].mxu0
        %v1809 = vadd.f32 0.0, %v1808
        %v1810 = vpop.f32.mrb[0].mxu0
        %v1811 = vadd.f32 0.0, %v1810
        %1812 = vmatprep.mubr.bf16.mxu0 0
        %1813 = vmatmul.mubr.bf16.gmra.mrb[0].mxu0 %v1301
        %v1814 = vpop.f32.mrb[0].mxu0
        %v1815 = vadd.f32 0.0, %v1814
        %v1816 = vpop.f32.mrb[0].mxu0
        %v1817 = vadd.f32 0.0, %v1816
        %v1818 = vpop.f32.mrb[0].mxu0
        %v1819 = vadd.f32 0.0, %v1818
        %v1820 = vpop.f32.mrb[0].mxu0
        %v1821 = vadd.f32 0.0, %v1820
        %1822 = vmatprep.mubr.bf16.mxu0 0
        %1823 = vmatmul.mubr.bf16.gmra.mrb[0].mxu0 %v1302
        %v1824 = vpop.f32.mrb[0].mxu0
        %v1825 = vadd.f32 0.0, %v1824
        %v1826 = vpop.f32.mrb[0].mxu0
        %v1827 = vadd.f32 0.0, %v1826
        %v1828 = vpop.f32.mrb[0].mxu0
        %v1829 = vadd.f32 0.0, %v1828
        %v1830 = vpop.f32.mrb[0].mxu0
        %v1831 = vadd.f32 0.0, %v1830
        %1832 = vmatprep.mubr.bf16.mxu0 0
        %1833 = vmatmul.mubr.bf16.gmra.mrb[0].mxu0 %v1303
        %v1834 = vpop.f32.mrb[0].mxu0
        %v1835 = vadd.f32 0.0, %v1834
        %v1836 = vpop.f32.mrb[0].mxu0
        %v1837 = vadd.f32 0.0, %v1836
        %v1838 = vpop.f32.mrb[0].mxu0
        %v1839 = vadd.f32 0.0, %v1838
        %v1840 = vpop.f32.mrb[0].mxu0
        %v1841 = vadd.f32 0.0, %v1840
        %1842 = vmatprep.mubr.bf16.mxu0 0
        %1843 = vmatmul.mubr.bf16.gmra.mrb[0].mxu0 %v1304
        %v1844 = vpop.f32.mrb[0].mxu0
        %v1845 = vadd.f32 0.0, %v1844
        %v1846 = vpop.f32.mrb[0].mxu0
        %v1847 = vadd.f32 0.0, %v1846
        %v1848 = vpop.f32.mrb[0].mxu0
        %v1849 = vadd.f32 0.0, %v1848
        %v1850 = vpop.f32.mrb[0].mxu0
        %v1851 = vadd.f32 0.0, %v1850
        %1852 = vmatprep.mubr.bf16.mxu0 0
        %1853 = vmatmul.mubr.bf16.gmra.mrb[0].mxu0 %v1305
        %v1854 = vpop.f32.mrb[0].mxu0
        %v1855 = vadd.f32 0.0, %v1854
        %v1856 = vpop.f32.mrb[0].mxu0
        %v1857 = vadd.f32 0.0, %v1856
        %v1858 = vpop.f32.mrb[0].mxu0
        %v1859 = vadd.f32 0.0, %v1858
        %v1860 = vpop.f32.mrb[0].mxu0
        %v1861 = vadd.f32 0.0, %v1860
        %1862 = vmatprep.mubr.bf16.mxu0 0
        %1863 = vmatmul.mubr.bf16.gmra.mrb[0].mxu0 %v1306
        %v1864 = vpop.f32.mrb[0].mxu0
        %v1865 = vadd.f32 0.0, %v1864
        %v1866 = vpop.f32.mrb[0].mxu0
        %v1867 = vadd.f32 0.0, %v1866
        %v1868 = vpop.f32.mrb[0].mxu0
        %v1869 = vadd.f32 0.0, %v1868
        %v1870 = vpop.f32.mrb[0].mxu0
        %v1871 = vadd.f32 0.0, %v1870
        %1872 = vmatprep.mubr.bf16.mxu0 0
        %1873 = vmatmul.mubr.bf16.gmra.mrb[0].mxu0 %v1307
        %v1874 = vpop.f32.mrb[0].mxu0
        %v1875 = vadd.f32 0.0, %v1874
        %v1876 = vpop.f32.mrb[0].mxu0
        %v1877 = vadd.f32 0.0, %v1876
        %v1878 = vpop.f32.mrb[0].mxu0
        %v1879 = vadd.f32 0.0, %v1878
        %v1880 = vpop.f32.mrb[0].mxu0
        %v1881 = vadd.f32 0.0, %v1880
        %1882 = vmatprep.mubr.bf16.mxu0 0
        %1883 = vmatmul.mubr.bf16.gmra.mrb[0].mxu0 %v1308
        %v1884 = vpop.f32.mrb[0].mxu0
        %v1885 = vadd.f32 0.0, %v1884
        %v1886 = vpop.f32.mrb[0].mxu0
        %v1887 = vadd.f32 0.0, %v1886
        %v1888 = vpop.f32.mrb[0].mxu0
        %v1889 = vadd.f32 0.0, %v1888
        %v1890 = vpop.f32.mrb[0].mxu0
        %v1891 = vadd.f32 0.0, %v1890
        %1892 = vmatprep.mubr.bf16.mxu0 0
        %1893 = vmatmul.mubr.bf16.gmra.mrb[0].mxu0 %v1309
        %v1894 = vpop.f32.mrb[0].mxu0
        %v1895 = vadd.f32 0.0, %v1894
        %v1896 = vpop.f32.mrb[0].mxu0
        %v1897 = vadd.f32 0.0, %v1896
        %v1898 = vpop.f32.mrb[0].mxu0
        %v1899 = vadd.f32 0.0, %v1898
        %v1900 = vpop.f32.mrb[0].mxu0
        %v1901 = vadd.f32 0.0, %v1900
        %1902 = vmatprep.mubr.bf16.mxu0 0
        %1903 = vmatmul.mubr.bf16.gmra.mrb[0].mxu0 %v1310
        %v1904 = vpop.f32.mrb[0].mxu0
        %v1905 = vadd.f32 0.0, %v1904
        %v1906 = vpop.f32.mrb[0].mxu0
        %v1907 = vadd.f32 0.0, %v1906
        %v1908 = vpop.f32.mrb[0].mxu0
        %v1909 = vadd.f32 0.0, %v1908
        %v1910 = vpop.f32.mrb[0].mxu0
        %v1911 = vadd.f32 0.0, %v1910
        %1912 = vmatprep.mubr.bf16.mxu0 0
        %1913 = vmatmul.mubr.bf16.gmra.mrb[0].mxu0 %v1311
        %v1914 = vpop.f32.mrb[0].mxu0
        %v1915 = vadd.f32 0.0, %v1914
        %v1916 = vpop.f32.mrb[0].mxu0
        %v1917 = vadd.f32 0.0, %v1916
        %v1918 = vpop.f32.mrb[0].mxu0
        %v1919 = vadd.f32 0.0, %v1918
        %v1920 = vpop.f32.mrb[0].mxu0
        %v1921 = vadd.f32 0.0, %v1920
        %1922 = vmatprep.mubr.bf16.mxu0 0
        %1923 = vmatmul.mubr.bf16.gmra.mrb[0].mxu0 %v1312
        %v1924 = vpop.f32.mrb[0].mxu0
        %v1925 = vadd.f32 0.0, %v1924
        %v1926 = vpop.f32.mrb[0].mxu0
        %v1927 = vadd.f32 0.0, %v1926
        %v1928 = vpop.f32.mrb[0].mxu0
        %v1929 = vadd.f32 0.0, %v1928
        %v1930 = vpop.f32.mrb[0].mxu0
        %v1931 = vadd.f32 0.0, %v1930
        %1932 = vmatprep.mubr.bf16.mxu0 0
        %1933 = vmatmul.mubr.bf16.gmra.mrb[0].mxu0 %v1313
        %v1934 = vpop.f32.mrb[0].mxu0
        %v1935 = vadd.f32 0.0, %v1934
        %v1936 = vpop.f32.mrb[0].mxu0
        %v1937 = vadd.f32 0.0, %v1936
        %v1938 = vpop.f32.mrb[0].mxu0
        %v1939 = vadd.f32 0.0, %v1938
        %v1940 = vpop.f32.mrb[0].mxu0
        %v1941 = vadd.f32 0.0, %v1940
        %1942 = vmatprep.mubr.bf16.mxu0 0
        %1943 = vmatmul.mubr.bf16.gmra.mrb[0].mxu0 %v1314
        %v1944 = vpop.f32.mrb[0].mxu0
        %v1945 = vadd.f32 0.0, %v1944
        %v1946 = vpop.f32.mrb[0].mxu0
        %v1947 = vadd.f32 0.0, %v1946
        %v1948 = vpop.f32.mrb[0].mxu0
        %v1949 = vadd.f32 0.0, %v1948
        %v1950 = vpop.f32.mrb[0].mxu0
        %v1951 = vadd.f32 0.0, %v1950
        %1952 = vmatprep.mubr.bf16.mxu0 0
        %1953 = vmatmul.mubr.bf16.gmra.mrb[0].mxu0 %v1315
        %v1954 = vpop.f32.mrb[0].mxu0
        %v1955 = vadd.f32 0.0, %v1954
        %v1956 = vpop.f32.mrb[0].mxu0
        %v1957 = vadd.f32 0.0, %v1956
        %v1958 = vpop.f32.mrb[0].mxu0
        %v1959 = vadd.f32 0.0, %v1958
        %v1960 = vpop.f32.mrb[0].mxu0
        %v1961 = vadd.f32 0.0, %v1960
        %1962 = vmatprep.mubr.bf16.mxu0 0
        %1963 = vmatmul.mubr.bf16.gmra.mrb[0].mxu0 %v1316
        %v1964 = vpop.f32.mrb[0].mxu0
        %v1965 = vadd.f32 0.0, %v1964
        %v1966 = vpop.f32.mrb[0].mxu0
        %v1967 = vadd.f32 0.0, %v1966
        %v1968 = vpop.f32.mrb[0].mxu0
        %v1969 = vadd.f32 0.0, %v1968
        %v1970 = vpop.f32.mrb[0].mxu0
        %v1971 = vadd.f32 0.0, %v1970
        %1972 = vmatprep.mubr.bf16.mxu0 0
        %1973 = vmatmul.mubr.bf16.gmra.mrb[0].mxu0 %v1317
        %v1974 = vpop.f32.mrb[0].mxu0
        %v1975 = vadd.f32 0.0, %v1974
        %v1976 = vpop.f32.mrb[0].mxu0
        %v1977 = vadd.f32 0.0, %v1976
        %v1978 = vpop.f32.mrb[0].mxu0
        %v1979 = vadd.f32 0.0, %v1978
        %v1980 = vpop.f32.mrb[0].mxu0
        %v1981 = vadd.f32 0.0, %v1980
        %1982 = vmatprep.mubr.bf16.mxu0 0
        %1983 = vmatmul.mubr.bf16.gmra.mrb[0].mxu0 %v1318
        %v1984 = vpop.f32.mrb[0].mxu0
        %v1985 = vadd.f32 0.0, %v1984
        %v1986 = vpop.f32.mrb[0].mxu0
        %v1987 = vadd.f32 0.0, %v1986
        %v1988 = vpop.f32.mrb[0].mxu0
        %v1989 = vadd.f32 0.0, %v1988
        %v1990 = vpop.f32.mrb[0].mxu0
        %v1991 = vadd.f32 0.0, %v1990
        %1992 = vmatprep.mubr.bf16.mxu0 0
        %1993 = vmatmul.mubr.bf16.gmra.mrb[0].mxu0 %v1319
        %v1994 = vpop.f32.mrb[0].mxu0
        %v1995 = vadd.f32 0.0, %v1994
        %v1996 = vpop.f32.mrb[0].mxu0
        %v1997 = vadd.f32 0.0, %v1996
        %v1998 = vpop.f32.mrb[0].mxu0
        %v1999 = vadd.f32 0.0, %v1998
        %v2000 = vpop.f32.mrb[0].mxu0
        %v2001 = vadd.f32 0.0, %v2000
        %2002 = vmatprep.mubr.bf16.mxu0 0
        %2003 = vmatmul.mubr.bf16.gmra.mrb[0].mxu0 %v1320
        %v2004 = vpop.f32.mrb[0].mxu0
        %v2005 = vadd.f32 0.0, %v2004
        %v2006 = vpop.f32.mrb[0].mxu0
        %v2007 = vadd.f32 0.0, %v2006
        %v2008 = vpop.f32.mrb[0].mxu0
        %v2009 = vadd.f32 0.0, %v2008
        %v2010 = vpop.f32.mrb[0].mxu0
        %v2011 = vadd.f32 0.0, %v2010
        %2012 = vmatprep.mubr.bf16.mxu0 0
        %2013 = vmatmul.mubr.bf16.gmra.mrb[0].mxu0 %v1321
        %v2014 = vpop.f32.mrb[0].mxu0
        %v2015 = vadd.f32 0.0, %v2014
        %v2016 = vpop.f32.mrb[0].mxu0
        %v2017 = vadd.f32 0.0, %v2016
        %v2018 = vpop.f32.mrb[0].mxu0
        %v2019 = vadd.f32 0.0, %v2018
        %v2020 = vpop.f32.mrb[0].mxu0
        %v2021 = vadd.f32 0.0, %v2020
        %2022 = vmatprep.mubr.bf16.mxu0 0
        %2023 = vmatmul.mubr.bf16.gmra.mrb[0].mxu0 %v1322
        %v2024 = vpop.f32.mrb[0].mxu0
        %v2025 = vadd.f32 0.0, %v2024
        %v2026 = vpop.f32.mrb[0].mxu0
        %v2027 = vadd.f32 0.0, %v2026
        %v2028 = vpop.f32.mrb[0].mxu0
        %v2029 = vadd.f32 0.0, %v2028
        %v2030 = vpop.f32.mrb[0].mxu0
        %v2031 = vadd.f32 0.0, %v2030
        %2032 = vmatprep.mubr.bf16.mxu0 0
        %2033 = vmatmul.mubr.bf16.gmra.mrb[0].mxu0 %v1323
        %v2034 = vpop.f32.mrb[0].mxu0
        %v2035 = vadd.f32 0.0, %v2034
        %v2036 = vpop.f32.mrb[0].mxu0
        %v2037 = vadd.f32 0.0, %v2036
        %v2038 = vpop.f32.mrb[0].mxu0
        %v2039 = vadd.f32 0.0, %v2038
        %v2040 = vpop.f32.mrb[0].mxu0
        %v2041 = vadd.f32 0.0, %v2040
        %2042 = vmatprep.mubr.bf16.mxu0 0
        %2043 = vmatmul.mubr.bf16.gmra.mrb[0].mxu0 %v1324
        %v2044 = vpop.f32.mrb[0].mxu0
        %v2045 = vadd.f32 0.0, %v2044
        %v2046 = vpop.f32.mrb[0].mxu0
        %v2047 = vadd.f32 0.0, %v2046
        %v2048 = vpop.f32.mrb[0].mxu0
        %v2049 = vadd.f32 0.0, %v2048
        %v2050 = vpop.f32.mrb[0].mxu0
        %v2051 = vadd.f32 0.0, %v2050
        %2052 = vmatprep.mubr.bf16.mxu0 0
        %2053 = vmatmul.mubr.bf16.gmra.mrb[0].mxu0 %v1325
        %v2054 = vpop.f32.mrb[0].mxu0
        %v2055 = vadd.f32 0.0, %v2054
        %v2056 = vpop.f32.mrb[0].mxu0
        %v2057 = vadd.f32 0.0, %v2056
        %v2058 = vpop.f32.mrb[0].mxu0
        %v2059 = vadd.f32 0.0, %v2058
        %v2060 = vpop.f32.mrb[0].mxu0
        %v2061 = vadd.f32 0.0, %v2060
        %2062 = vdwg.mxu0
        %v2063 = vmax.f32 %v1425, %v1427
        %v2064 = vmax.f32 %v1429, %v1431
        %v2065 = vmax.f32 %v1435, %v1437
        %v2066 = vmax.f32 %v1439, %v1441
        %v2067 = vmax.f32 %v1445, %v1447
        %v2068 = vmax.f32 %v1449, %v1451
        %v2069 = vmax.f32 %v1455, %v1457
        %v2070 = vmax.f32 %v1459, %v1461
        %v2071 = vmax.f32 %v1465, %v1467
        %v2072 = vmax.f32 %v1469, %v1471
        %v2073 = vmax.f32 %v1475, %v1477
        %v2074 = vmax.f32 %v1479, %v1481
        %v2075 = vmax.f32 %v1485, %v1487
        %v2076 = vmax.f32 %v1489, %v1491
        %v2077 = vmax.f32 %v1495, %v1497
        %v2078 = vmax.f32 %v1499, %v1501
        %v2079 = vmax.f32 %v1505, %v1507
        %v2080 = vmax.f32 %v1509, %v1511
        %v2081 = vmax.f32 %v1515, %v1517
        %v2082 = vmax.f32 %v1519, %v1521
        %v2083 = vmax.f32 %v1525, %v1527
        %v2084 = vmax.f32 %v1529, %v1531
        %v2085 = vmax.f32 %v1535, %v1537
        %v2086 = vmax.f32 %v1539, %v1541
        %v2087 = vmax.f32 %v1545, %v1547
        %v2088 = vmax.f32 %v1549, %v1551
        %v2089 = vmax.f32 %v1555, %v1557
        %v2090 = vmax.f32 %v1559, %v1561
        %v2091 = vmax.f32 %v1565, %v1567
        %v2092 = vmax.f32 %v1569, %v1571
        %v2093 = vmax.f32 %v1575, %v1577
        %v2094 = vmax.f32 %v1579, %v1581
        %v2095 = vmax.f32 %v1585, %v1587
        %v2096 = vmax.f32 %v1589, %v1591
        %v2097 = vmax.f32 %v1595, %v1597
        %v2098 = vmax.f32 %v1599, %v1601
        %v2099 = vmax.f32 %v1605, %v1607
        %v2100 = vmax.f32 %v1609, %v1611
        %v2101 = vmax.f32 %v1615, %v1617
        %v2102 = vmax.f32 %v1619, %v1621
        %v2103 = vmax.f32 %v1625, %v1627
        %v2104 = vmax.f32 %v1629, %v1631
        %v2105 = vmax.f32 %v1635, %v1637
        %v2106 = vmax.f32 %v1639, %v1641
        %v2107 = vmax.f32 %v1645, %v1647
        %v2108 = vmax.f32 %v1649, %v1651
        %v2109 = vmax.f32 %v1655, %v1657
        %v2110 = vmax.f32 %v1659, %v1661
        %v2111 = vmax.f32 %v1665, %v1667
        %v2112 = vmax.f32 %v1669, %v1671
        %v2113 = vmax.f32 %v1675, %v1677
        %v2114 = vmax.f32 %v1679, %v1681
        %v2115 = vmax.f32 %v1685, %v1687
        %v2116 = vmax.f32 %v1689, %v1691
        %v2117 = vmax.f32 %v1695, %v1697
        %v2118 = vmax.f32 %v1699, %v1701
        %v2119 = vmax.f32 %v1705, %v1707
        %v2120 = vmax.f32 %v1709, %v1711
        %v2121 = vmax.f32 %v1715, %v1717
        %v2122 = vmax.f32 %v1719, %v1721
        %v2123 = vmax.f32 %v1725, %v1727
        %v2124 = vmax.f32 %v1729, %v1731
        %v2125 = vmax.f32 %v1735, %v1737
        %v2126 = vmax.f32 %v1739, %v1741
        %v2127 = vmax.f32 %v1745, %v1747
        %v2128 = vmax.f32 %v1749, %v1751
        %v2129 = vmax.f32 %v1755, %v1757
        %v2130 = vmax.f32 %v1759, %v1761
        %v2131 = vmax.f32 %v1765, %v1767
        %v2132 = vmax.f32 %v1769, %v1771
        %v2133 = vmax.f32 %v1775, %v1777
        %v2134 = vmax.f32 %v1779, %v1781
        %v2135 = vmax.f32 %v1785, %v1787
        %v2136 = vmax.f32 %v1789, %v1791
        %v2137 = vmax.f32 %v1795, %v1797
        %v2138 = vmax.f32 %v1799, %v1801
        %v2139 = vmax.f32 %v1805, %v1807
        %v2140 = vmax.f32 %v1809, %v1811
        %v2141 = vmax.f32 %v1815, %v1817
        %v2142 = vmax.f32 %v1819, %v1821
        %v2143 = vmax.f32 %v1825, %v1827
        %v2144 = vmax.f32 %v1829, %v1831
        %v2145 = vmax.f32 %v1835, %v1837
        %v2146 = vmax.f32 %v1839, %v1841
        %v2147 = vmax.f32 %v1845, %v1847
        %v2148 = vmax.f32 %v1849, %v1851
        %v2149 = vmax.f32 %v1855, %v1857
        %v2150 = vmax.f32 %v1859, %v1861
        %v2151 = vmax.f32 %v1865, %v1867
        %v2152 = vmax.f32 %v1869, %v1871
        %v2153 = vmax.f32 %v1875, %v1877
        %v2154 = vmax.f32 %v1879, %v1881
        %v2155 = vmax.f32 %v1885, %v1887
        %v2156 = vmax.f32 %v1889, %v1891
        %v2157 = vmax.f32 %v1895, %v1897
        %v2158 = vmax.f32 %v1899, %v1901
        %v2159 = vmax.f32 %v1905, %v1907
        %v2160 = vmax.f32 %v1909, %v1911
        %v2161 = vmax.f32 %v1915, %v1917
        %v2162 = vmax.f32 %v1919, %v1921
        %v2163 = vmax.f32 %v1925, %v1927
        %v2164 = vmax.f32 %v1929, %v1931
        %v2165 = vmax.f32 %v1935, %v1937
        %v2166 = vmax.f32 %v1939, %v1941
        %v2167 = vmax.f32 %v1945, %v1947
        %v2168 = vmax.f32 %v1949, %v1951
        %v2169 = vmax.f32 %v1955, %v1957
        %v2170 = vmax.f32 %v1959, %v1961
        %v2171 = vmax.f32 %v1965, %v1967
        %v2172 = vmax.f32 %v1969, %v1971
        %v2173 = vmax.f32 %v1975, %v1977
        %v2174 = vmax.f32 %v1979, %v1981
        %v2175 = vmax.f32 %v1985, %v1987
        %v2176 = vmax.f32 %v1989, %v1991
        %v2177 = vmax.f32 %v1995, %v1997
        %v2178 = vmax.f32 %v1999, %v2001
        %v2179 = vmax.f32 %v2005, %v2007
        %v2180 = vmax.f32 %v2009, %v2011
        %v2181 = vmax.f32 %v2015, %v2017
        %v2182 = vmax.f32 %v2019, %v2021
        %v2183 = vmax.f32 %v2025, %v2027
        %v2184 = vmax.f32 %v2029, %v2031
        %v2185 = vmax.f32 %v2035, %v2037
        %v2186 = vmax.f32 %v2039, %v2041
        %v2187 = vmax.f32 %v2045, %v2047
        %v2188 = vmax.f32 %v2049, %v2051
        %v2189 = vmax.f32 %v2055, %v2057
        %v2190 = vmax.f32 %v2059, %v2061
        %p2191 = scmp.eq.s32.totalorder %s25, 0
        // Predicated region
        $region72: #{stnkd_forward.2} parent=66 // pred_check
          %p2192 = pneg %p2191
        $region73: #{stnkd_forward.2} parent=66 // pred_check_branch
          %2194 = sbr.rel (%p2192) target = $region75
        $region74: #{stnkd_forward.2} parent=66 // pred_region
          %2195 = vst [vmem:[#allocation2] sm:$0xff] %v2063
          %2196 = vst [vmem:[#allocation2 + $0x8] sm:$0xff] %v2064
          %2197 = vst [vmem:[#allocation2 + $0x10] sm:$0xff] %v2065
          %2198 = vst [vmem:[#allocation2 + $0x18] sm:$0xff] %v2066
          %2199 = vst [vmem:[#allocation2 + $0x20] sm:$0xff] %v2067
          %2200 = vst [vmem:[#allocation2 + $0x28] sm:$0xff] %v2068
          %2201 = vst [vmem:[#allocation2 + $0x30] sm:$0xff] %v2069
          %2202 = vst [vmem:[#allocation2 + $0x38] sm:$0xff] %v2070
          %2203 = vst [vmem:[#allocation2 + $0x40] sm:$0xff] %v2071
          %2204 = vst [vmem:[#allocation2 + $0x48] sm:$0xff] %v2072
          %2205 = vst [vmem:[#allocation2 + $0x50] sm:$0xff] %v2073
          %2206 = vst [vmem:[#allocation2 + $0x58] sm:$0xff] %v2074
          %2207 = vst [vmem:[#allocation2 + $0x60] sm:$0xff] %v2075
          %2208 = vst [vmem:[#allocation2 + $0x68] sm:$0xff] %v2076
          %2209 = vst [vmem:[#allocation2 + $0x70] sm:$0xff] %v2077
          %2210 = vst [vmem:[#allocation2 + $0x78] sm:$0xff] %v2078
          %2211 = vst [vmem:[#allocation2 + $0x80] sm:$0xff] %v2079
          %2212 = vst [vmem:[#allocation2 + $0x88] sm:$0xff] %v2080
          %2213 = vst [vmem:[#allocation2 + $0x90] sm:$0xff] %v2081
          %2214 = vst [vmem:[#allocation2 + $0x98] sm:$0xff] %v2082
          %2215 = vst [vmem:[#allocation2 + $0xa0] sm:$0xff] %v2083
          %2216 = vst [vmem:[#allocation2 + $0xa8] sm:$0xff] %v2084
          %2217 = vst [vmem:[#allocation2 + $0xb0] sm:$0xff] %v2085
          %2218 = vst [vmem:[#allocation2 + $0xb8] sm:$0xff] %v2086
          %2219 = vst [vmem:[#allocation2 + $0xc0] sm:$0xff] %v2087
          %2220 = vst [vmem:[#allocation2 + $0xc8] sm:$0xff] %v2088
          %2221 = vst [vmem:[#allocation2 + $0xd0] sm:$0xff] %v2089
          %2222 = vst [vmem:[#allocation2 + $0xd8] sm:$0xff] %v2090
          %2223 = vst [vmem:[#allocation2 + $0xe0] sm:$0xff] %v2091
          %2224 = vst [vmem:[#allocation2 + $0xe8] sm:$0xff] %v2092
          %2225 = vst [vmem:[#allocation2 + $0xf0] sm:$0xff] %v2093
          %2226 = vst [vmem:[#allocation2 + $0xf8] sm:$0xff] %v2094
          %2227 = vst [vmem:[#allocation2 + $0x100] sm:$0xff] %v2095
          %2228 = vst [vmem:[#allocation2 + $0x108] sm:$0xff] %v2096
          %2229 = vst [vmem:[#allocation2 + $0x110] sm:$0xff] %v2097
          %2230 = vst [vmem:[#allocation2 + $0x118] sm:$0xff] %v2098
          %2231 = vst [vmem:[#allocation2 + $0x120] sm:$0xff] %v2099
          %2232 = vst [vmem:[#allocation2 + $0x128] sm:$0xff] %v2100
          %2233 = vst [vmem:[#allocation2 + $0x130] sm:$0xff] %v2101
          %2234 = vst [vmem:[#allocation2 + $0x138] sm:$0xff] %v2102
          %2235 = vst [vmem:[#allocation2 + $0x140] sm:$0xff] %v2103
          %2236 = vst [vmem:[#allocation2 + $0x148] sm:$0xff] %v2104
          %2237 = vst [vmem:[#allocation2 + $0x150] sm:$0xff] %v2105
          %2238 = vst [vmem:[#allocation2 + $0x158] sm:$0xff] %v2106
          %2239 = vst [vmem:[#allocation2 + $0x160] sm:$0xff] %v2107
          %2240 = vst [vmem:[#allocation2 + $0x168] sm:$0xff] %v2108
          %2241 = vst [vmem:[#allocation2 + $0x170] sm:$0xff] %v2109
          %2242 = vst [vmem:[#allocation2 + $0x178] sm:$0xff] %v2110
          %2243 = vst [vmem:[#allocation2 + $0x180] sm:$0xff] %v2111
          %2244 = vst [vmem:[#allocation2 + $0x188] sm:$0xff] %v2112
          %2245 = vst [vmem:[#allocation2 + $0x190] sm:$0xff] %v2113
          %2246 = vst [vmem:[#allocation2 + $0x198] sm:$0xff] %v2114
          %2247 = vst [vmem:[#allocation2 + $0x1a0] sm:$0xff] %v2115
          %2248 = vst [vmem:[#allocation2 + $0x1a8] sm:$0xff] %v2116
          %2249 = vst [vmem:[#allocation2 + $0x1b0] sm:$0xff] %v2117
          %2250 = vst [vmem:[#allocation2 + $0x1b8] sm:$0xff] %v2118
          %2251 = vst [vmem:[#allocation2 + $0x1c0] sm:$0xff] %v2119
          %2252 = vst [vmem:[#allocation2 + $0x1c8] sm:$0xff] %v2120
          %2253 = vst [vmem:[#allocation2 + $0x1d0] sm:$0xff] %v2121
          %2254 = vst [vmem:[#allocation2 + $0x1d8] sm:$0xff] %v2122
          %2255 = vst [vmem:[#allocation2 + $0x1e0] sm:$0xff] %v2123
          %2256 = vst [vmem:[#allocation2 + $0x1e8] sm:$0xff] %v2124
          %2257 = vst [vmem:[#allocation2 + $0x1f0] sm:$0xff] %v2125
          %2258 = vst [vmem:[#allocation2 + $0x1f8] sm:$0xff] %v2126
          %2259 = vst [vmem:[#allocation2 + $0x200] sm:$0xff] %v2127
          %2260 = vst [vmem:[#allocation2 + $0x208] sm:$0xff] %v2128
          %2261 = vst [vmem:[#allocation2 + $0x210] sm:$0xff] %v2129
          %2262 = vst [vmem:[#allocation2 + $0x218] sm:$0xff] %v2130
          %2263 = vst [vmem:[#allocation2 + $0x220] sm:$0xff] %v2131
          %2264 = vst [vmem:[#allocation2 + $0x228] sm:$0xff] %v2132
          %2265 = vst [vmem:[#allocation2 + $0x230] sm:$0xff] %v2133
          %2266 = vst [vmem:[#allocation2 + $0x238] sm:$0xff] %v2134
          %2267 = vst [vmem:[#allocation2 + $0x240] sm:$0xff] %v2135
          %2268 = vst [vmem:[#allocation2 + $0x248] sm:$0xff] %v2136
          %2269 = vst [vmem:[#allocation2 + $0x250] sm:$0xff] %v2137
          %2270 = vst [vmem:[#allocation2 + $0x258] sm:$0xff] %v2138
          %2271 = vst [vmem:[#allocation2 + $0x260] sm:$0xff] %v2139
          %2272 = vst [vmem:[#allocation2 + $0x268] sm:$0xff] %v2140
          %2273 = vst [vmem:[#allocation2 + $0x270] sm:$0xff] %v2141
          %2274 = vst [vmem:[#allocation2 + $0x278] sm:$0xff] %v2142
          %2275 = vst [vmem:[#allocation2 + $0x280] sm:$0xff] %v2143
          %2276 = vst [vmem:[#allocation2 + $0x288] sm:$0xff] %v2144
          %2277 = vst [vmem:[#allocation2 + $0x290] sm:$0xff] %v2145
          %2278 = vst [vmem:[#allocation2 + $0x298] sm:$0xff] %v2146
          %2279 = vst [vmem:[#allocation2 + $0x2a0] sm:$0xff] %v2147
          %2280 = vst [vmem:[#allocation2 + $0x2a8] sm:$0xff] %v2148
          %2281 = vst [vmem:[#allocation2 + $0x2b0] sm:$0xff] %v2149
          %2282 = vst [vmem:[#allocation2 + $0x2b8] sm:$0xff] %v2150
          %2283 = vst [vmem:[#allocation2 + $0x2c0] sm:$0xff] %v2151
          %2284 = vst [vmem:[#allocation2 + $0x2c8] sm:$0xff] %v2152
          %2285 = vst [vmem:[#allocation2 + $0x2d0] sm:$0xff] %v2153
          %2286 = vst [vmem:[#allocation2 + $0x2d8] sm:$0xff] %v2154
          %2287 = vst [vmem:[#allocation2 + $0x2e0] sm:$0xff] %v2155
          %2288 = vst [vmem:[#allocation2 + $0x2e8] sm:$0xff] %v2156
          %2289 = vst [vmem:[#allocation2 + $0x2f0] sm:$0xff] %v2157
          %2290 = vst [vmem:[#allocation2 + $0x2f8] sm:$0xff] %v2158
          %2291 = vst [vmem:[#allocation2 + $0x300] sm:$0xff] %v2159
          %2292 = vst [vmem:[#allocation2 + $0x308] sm:$0xff] %v2160
          %2293 = vst [vmem:[#allocation2 + $0x310] sm:$0xff] %v2161
          %2294 = vst [vmem:[#allocation2 + $0x318] sm:$0xff] %v2162
          %2295 = vst [vmem:[#allocation2 + $0x320] sm:$0xff] %v2163
          %2296 = vst [vmem:[#allocation2 + $0x328] sm:$0xff] %v2164
          %2297 = vst [vmem:[#allocation2 + $0x330] sm:$0xff] %v2165
          %2298 = vst [vmem:[#allocation2 + $0x338] sm:$0xff] %v2166
          %2299 = vst [vmem:[#allocation2 + $0x340] sm:$0xff] %v2167
          %2300 = vst [vmem:[#allocation2 + $0x348] sm:$0xff] %v2168
          %2301 = vst [vmem:[#allocation2 + $0x350] sm:$0xff] %v2169
          %2302 = vst [vmem:[#allocation2 + $0x358] sm:$0xff] %v2170
          %2303 = vst [vmem:[#allocation2 + $0x360] sm:$0xff] %v2171
          %2304 = vst [vmem:[#allocation2 + $0x368] sm:$0xff] %v2172
          %2305 = vst [vmem:[#allocation2 + $0x370] sm:$0xff] %v2173
          %2306 = vst [vmem:[#allocation2 + $0x378] sm:$0xff] %v2174
          %2307 = vst [vmem:[#allocation2 + $0x380] sm:$0xff] %v2175
          %2308 = vst [vmem:[#allocation2 + $0x388] sm:$0xff] %v2176
          %2309 = vst [vmem:[#allocation2 + $0x390] sm:$0xff] %v2177
          %2310 = vst [vmem:[#allocation2 + $0x398] sm:$0xff] %v2178
          %2311 = vst [vmem:[#allocation2 + $0x3a0] sm:$0xff] %v2179
          %2312 = vst [vmem:[#allocation2 + $0x3a8] sm:$0xff] %v2180
          %2313 = vst [vmem:[#allocation2 + $0x3b0] sm:$0xff] %v2181
          %2314 = vst [vmem:[#allocation2 + $0x3b8] sm:$0xff] %v2182
          %2315 = vst [vmem:[#allocation2 + $0x3c0] sm:$0xff] %v2183
          %2316 = vst [vmem:[#allocation2 + $0x3c8] sm:$0xff] %v2184
          %2317 = vst [vmem:[#allocation2 + $0x3d0] sm:$0xff] %v2185
          %2318 = vst [vmem:[#allocation2 + $0x3d8] sm:$0xff] %v2186
          %2319 = vst [vmem:[#allocation2 + $0x3e0] sm:$0xff] %v2187
          %2320 = vst [vmem:[#allocation2 + $0x3e8] sm:$0xff] %v2188
          %2321 = vst [vmem:[#allocation2 + $0x3f0] sm:$0xff] %v2189
          %2322 = vst [vmem:[#allocation2 + $0x3f8] sm:$0xff] %v2190
        $region75: #{stnkd_forward.2} parent=66 // pred_fallthru
          _
        %p2323 = scmp.ne.s32.totalorder %s25, 0
        // Predicated region
        $region76: #{stnkd_forward.2} parent=66 // pred_check
          %p2324 = pneg %p2323
        $region77: #{stnkd_forward.2} parent=66 // pred_check_branch
          %2326 = sbr.rel (%p2324) target = $region79
        $region78: #{stnkd_forward.2} parent=66 // pred_region
          %v2327 = vld [vmem:[#allocation2] sm:$0xff]
          %v2328 = vld [vmem:[#allocation2 + $0x8] sm:$0xff]
          %v2329 = vld [vmem:[#allocation2 + $0x10] sm:$0xff]
          %v2330 = vld [vmem:[#allocation2 + $0x18] sm:$0xff]
          %v2331 = vld [vmem:[#allocation2 + $0x20] sm:$0xff]
          %v2332 = vld [vmem:[#allocation2 + $0x28] sm:$0xff]
          %v2333 = vld [vmem:[#allocation2 + $0x30] sm:$0xff]
          %v2334 = vld [vmem:[#allocation2 + $0x38] sm:$0xff]
          %v2335 = vld [vmem:[#allocation2 + $0x40] sm:$0xff]
          %v2336 = vld [vmem:[#allocation2 + $0x48] sm:$0xff]
          %v2337 = vld [vmem:[#allocation2 + $0x50] sm:$0xff]
          %v2338 = vld [vmem:[#allocation2 + $0x58] sm:$0xff]
          %v2339 = vld [vmem:[#allocation2 + $0x60] sm:$0xff]
          %v2340 = vld [vmem:[#allocation2 + $0x68] sm:$0xff]
          %v2341 = vld [vmem:[#allocation2 + $0x70] sm:$0xff]
          %v2342 = vld [vmem:[#allocation2 + $0x78] sm:$0xff]
          %v2343 = vld [vmem:[#allocation2 + $0x80] sm:$0xff]
          %v2344 = vld [vmem:[#allocation2 + $0x88] sm:$0xff]
          %v2345 = vld [vmem:[#allocation2 + $0x90] sm:$0xff]
          %v2346 = vld [vmem:[#allocation2 + $0x98] sm:$0xff]
          %v2347 = vld [vmem:[#allocation2 + $0xa0] sm:$0xff]
          %v2348 = vld [vmem:[#allocation2 + $0xa8] sm:$0xff]
          %v2349 = vld [vmem:[#allocation2 + $0xb0] sm:$0xff]
          %v2350 = vld [vmem:[#allocation2 + $0xb8] sm:$0xff]
          %v2351 = vld [vmem:[#allocation2 + $0xc0] sm:$0xff]
          %v2352 = vld [vmem:[#allocation2 + $0xc8] sm:$0xff]
          %v2353 = vld [vmem:[#allocation2 + $0xd0] sm:$0xff]
          %v2354 = vld [vmem:[#allocation2 + $0xd8] sm:$0xff]
          %v2355 = vld [vmem:[#allocation2 + $0xe0] sm:$0xff]
          %v2356 = vld [vmem:[#allocation2 + $0xe8] sm:$0xff]
          %v2357 = vld [vmem:[#allocation2 + $0xf0] sm:$0xff]
          %v2358 = vld [vmem:[#allocation2 + $0xf8] sm:$0xff]
          %v2359 = vld [vmem:[#allocation2 + $0x100] sm:$0xff]
          %v2360 = vld [vmem:[#allocation2 + $0x108] sm:$0xff]
          %v2361 = vld [vmem:[#allocation2 + $0x110] sm:$0xff]
          %v2362 = vld [vmem:[#allocation2 + $0x118] sm:$0xff]
          %v2363 = vld [vmem:[#allocation2 + $0x120] sm:$0xff]
          %v2364 = vld [vmem:[#allocation2 + $0x128] sm:$0xff]
          %v2365 = vld [vmem:[#allocation2 + $0x130] sm:$0xff]
          %v2366 = vld [vmem:[#allocation2 + $0x138] sm:$0xff]
          %v2367 = vld [vmem:[#allocation2 + $0x140] sm:$0xff]
          %v2368 = vld [vmem:[#allocation2 + $0x148] sm:$0xff]
          %v2369 = vld [vmem:[#allocation2 + $0x150] sm:$0xff]
          %v2370 = vld [vmem:[#allocation2 + $0x158] sm:$0xff]
          %v2371 = vld [vmem:[#allocation2 + $0x160] sm:$0xff]
          %v2372 = vld [vmem:[#allocation2 + $0x168] sm:$0xff]
          %v2373 = vld [vmem:[#allocation2 + $0x170] sm:$0xff]
          %v2374 = vld [vmem:[#allocation2 + $0x178] sm:$0xff]
          %v2375 = vld [vmem:[#allocation2 + $0x180] sm:$0xff]
          %v2376 = vld [vmem:[#allocation2 + $0x188] sm:$0xff]
          %v2377 = vld [vmem:[#allocation2 + $0x190] sm:$0xff]
          %v2378 = vld [vmem:[#allocation2 + $0x198] sm:$0xff]
          %v2379 = vld [vmem:[#allocation2 + $0x1a0] sm:$0xff]
          %v2380 = vld [vmem:[#allocation2 + $0x1a8] sm:$0xff]
          %v2381 = vld [vmem:[#allocation2 + $0x1b0] sm:$0xff]
          %v2382 = vld [vmem:[#allocation2 + $0x1b8] sm:$0xff]
          %v2383 = vld [vmem:[#allocation2 + $0x1c0] sm:$0xff]
          %v2384 = vld [vmem:[#allocation2 + $0x1c8] sm:$0xff]
          %v2385 = vld [vmem:[#allocation2 + $0x1d0] sm:$0xff]
          %v2386 = vld [vmem:[#allocation2 + $0x1d8] sm:$0xff]
          %v2387 = vld [vmem:[#allocation2 + $0x1e0] sm:$0xff]
          %v2388 = vld [vmem:[#allocation2 + $0x1e8] sm:$0xff]
          %v2389 = vld [vmem:[#allocation2 + $0x1f0] sm:$0xff]
          %v2390 = vld [vmem:[#allocation2 + $0x1f8] sm:$0xff]
          %v2391 = vld [vmem:[#allocation2 + $0x200] sm:$0xff]
          %v2392 = vld [vmem:[#allocation2 + $0x208] sm:$0xff]
          %v2393 = vld [vmem:[#allocation2 + $0x210] sm:$0xff]
          %v2394 = vld [vmem:[#allocation2 + $0x218] sm:$0xff]
          %v2395 = vld [vmem:[#allocation2 + $0x220] sm:$0xff]
          %v2396 = vld [vmem:[#allocation2 + $0x228] sm:$0xff]
          %v2397 = vld [vmem:[#allocation2 + $0x230] sm:$0xff]
          %v2398 = vld [vmem:[#allocation2 + $0x238] sm:$0xff]
          %v2399 = vld [vmem:[#allocation2 + $0x240] sm:$0xff]
          %v2400 = vld [vmem:[#allocation2 + $0x248] sm:$0xff]
          %v2401 = vld [vmem:[#allocation2 + $0x250] sm:$0xff]
          %v2402 = vld [vmem:[#allocation2 + $0x258] sm:$0xff]
          %v2403 = vld [vmem:[#allocation2 + $0x260] sm:$0xff]
          %v2404 = vld [vmem:[#allocation2 + $0x268] sm:$0xff]
          %v2405 = vld [vmem:[#allocation2 + $0x270] sm:$0xff]
          %v2406 = vld [vmem:[#allocation2 + $0x278] sm:$0xff]
          %v2407 = vld [vmem:[#allocation2 + $0x280] sm:$0xff]
          %v2408 = vld [vmem:[#allocation2 + $0x288] sm:$0xff]
          %v2409 = vld [vmem:[#allocation2 + $0x290] sm:$0xff]
          %v2410 = vld [vmem:[#allocation2 + $0x298] sm:$0xff]
          %v2411 = vld [vmem:[#allocation2 + $0x2a0] sm:$0xff]
          %v2412 = vld [vmem:[#allocation2 + $0x2a8] sm:$0xff]
          %v2413 = vld [vmem:[#allocation2 + $0x2b0] sm:$0xff]
          %v2414 = vld [vmem:[#allocation2 + $0x2b8] sm:$0xff]
          %v2415 = vld [vmem:[#allocation2 + $0x2c0] sm:$0xff]
          %v2416 = vld [vmem:[#allocation2 + $0x2c8] sm:$0xff]
          %v2417 = vld [vmem:[#allocation2 + $0x2d0] sm:$0xff]
          %v2418 = vld [vmem:[#allocation2 + $0x2d8] sm:$0xff]
          %v2419 = vld [vmem:[#allocation2 + $0x2e0] sm:$0xff]
          %v2420 = vld [vmem:[#allocation2 + $0x2e8] sm:$0xff]
          %v2421 = vld [vmem:[#allocation2 + $0x2f0] sm:$0xff]
          %v2422 = vld [vmem:[#allocation2 + $0x2f8] sm:$0xff]
          %v2423 = vld [vmem:[#allocation2 + $0x300] sm:$0xff]
          %v2424 = vld [vmem:[#allocation2 + $0x308] sm:$0xff]
          %v2425 = vld [vmem:[#allocation2 + $0x310] sm:$0xff]
          %v2426 = vld [vmem:[#allocation2 + $0x318] sm:$0xff]
          %v2427 = vld [vmem:[#allocation2 + $0x320] sm:$0xff]
          %v2428 = vld [vmem:[#allocation2 + $0x328] sm:$0xff]
          %v2429 = vld [vmem:[#allocation2 + $0x330] sm:$0xff]
          %v2430 = vld [vmem:[#allocation2 + $0x338] sm:$0xff]
          %v2431 = vld [vmem:[#allocation2 + $0x340] sm:$0xff]
          %v2432 = vld [vmem:[#allocation2 + $0x348] sm:$0xff]
          %v2433 = vld [vmem:[#allocation2 + $0x350] sm:$0xff]
          %v2434 = vld [vmem:[#allocation2 + $0x358] sm:$0xff]
          %v2435 = vld [vmem:[#allocation2 + $0x360] sm:$0xff]
          %v2436 = vld [vmem:[#allocation2 + $0x368] sm:$0xff]
          %v2437 = vld [vmem:[#allocation2 + $0x370] sm:$0xff]
          %v2438 = vld [vmem:[#allocation2 + $0x378] sm:$0xff]
          %v2439 = vld [vmem:[#allocation2 + $0x380] sm:$0xff]
          %v2440 = vld [vmem:[#allocation2 + $0x388] sm:$0xff]
          %v2441 = vld [vmem:[#allocation2 + $0x390] sm:$0xff]
          %v2442 = vld [vmem:[#allocation2 + $0x398] sm:$0xff]
          %v2443 = vld [vmem:[#allocation2 + $0x3a0] sm:$0xff]
          %v2444 = vld [vmem:[#allocation2 + $0x3a8] sm:$0xff]
          %v2445 = vld [vmem:[#allocation2 + $0x3b0] sm:$0xff]
          %v2446 = vld [vmem:[#allocation2 + $0x3b8] sm:$0xff]
          %v2447 = vld [vmem:[#allocation2 + $0x3c0] sm:$0xff]
          %v2448 = vld [vmem:[#allocation2 + $0x3c8] sm:$0xff]
          %v2449 = vld [vmem:[#allocation2 + $0x3d0] sm:$0xff]
          %v2450 = vld [vmem:[#allocation2 + $0x3d8] sm:$0xff]
          %v2451 = vld [vmem:[#allocation2 + $0x3e0] sm:$0xff]
          %v2452 = vld [vmem:[#allocation2 + $0x3e8] sm:$0xff]
          %v2453 = vld [vmem:[#allocation2 + $0x3f0] sm:$0xff]
          %v2454 = vld [vmem:[#allocation2 + $0x3f8] sm:$0xff]
          %v2455 = vmax.f32 %v2327, %v2063
          %v2456 = vmax.f32 %v2328, %v2064
          %v2457 = vmax.f32 %v2329, %v2065
          %v2458 = vmax.f32 %v2330, %v2066
          %v2459 = vmax.f32 %v2331, %v2067
          %v2460 = vmax.f32 %v2332, %v2068
          %v2461 = vmax.f32 %v2333, %v2069
          %v2462 = vmax.f32 %v2334, %v2070
          %v2463 = vmax.f32 %v2335, %v2071
          %v2464 = vmax.f32 %v2336, %v2072
          %v2465 = vmax.f32 %v2337, %v2073
          %v2466 = vmax.f32 %v2338, %v2074
          %v2467 = vmax.f32 %v2339, %v2075
          %v2468 = vmax.f32 %v2340, %v2076
          %v2469 = vmax.f32 %v2341, %v2077
          %v2470 = vmax.f32 %v2342, %v2078
          %v2471 = vmax.f32 %v2343, %v2079
          %v2472 = vmax.f32 %v2344, %v2080
          %v2473 = vmax.f32 %v2345, %v2081
          %v2474 = vmax.f32 %v2346, %v2082
          %v2475 = vmax.f32 %v2347, %v2083
          %v2476 = vmax.f32 %v2348, %v2084
          %v2477 = vmax.f32 %v2349, %v2085
          %v2478 = vmax.f32 %v2350, %v2086
          %v2479 = vmax.f32 %v2351, %v2087
          %v2480 = vmax.f32 %v2352, %v2088
          %v2481 = vmax.f32 %v2353, %v2089
          %v2482 = vmax.f32 %v2354, %v2090
          %v2483 = vmax.f32 %v2355, %v2091
          %v2484 = vmax.f32 %v2356, %v2092
          %v2485 = vmax.f32 %v2357, %v2093
          %v2486 = vmax.f32 %v2358, %v2094
          %v2487 = vmax.f32 %v2359, %v2095
          %v2488 = vmax.f32 %v2360, %v2096
          %v2489 = vmax.f32 %v2361, %v2097
          %v2490 = vmax.f32 %v2362, %v2098
          %v2491 = vmax.f32 %v2363, %v2099
          %v2492 = vmax.f32 %v2364, %v2100
          %v2493 = vmax.f32 %v2365, %v2101
          %v2494 = vmax.f32 %v2366, %v2102
          %v2495 = vmax.f32 %v2367, %v2103
          %v2496 = vmax.f32 %v2368, %v2104
          %v2497 = vmax.f32 %v2369, %v2105
          %v2498 = vmax.f32 %v2370, %v2106
          %v2499 = vmax.f32 %v2371, %v2107
          %v2500 = vmax.f32 %v2372, %v2108
          %v2501 = vmax.f32 %v2373, %v2109
          %v2502 = vmax.f32 %v2374, %v2110
          %v2503 = vmax.f32 %v2375, %v2111
          %v2504 = vmax.f32 %v2376, %v2112
          %v2505 = vmax.f32 %v2377, %v2113
          %v2506 = vmax.f32 %v2378, %v2114
          %v2507 = vmax.f32 %v2379, %v2115
          %v2508 = vmax.f32 %v2380, %v2116
          %v2509 = vmax.f32 %v2381, %v2117
          %v2510 = vmax.f32 %v2382, %v2118
          %v2511 = vmax.f32 %v2383, %v2119
          %v2512 = vmax.f32 %v2384, %v2120
          %v2513 = vmax.f32 %v2385, %v2121
          %v2514 = vmax.f32 %v2386, %v2122
          %v2515 = vmax.f32 %v2387, %v2123
          %v2516 = vmax.f32 %v2388, %v2124
          %v2517 = vmax.f32 %v2389, %v2125
          %v2518 = vmax.f32 %v2390, %v2126
          %v2519 = vmax.f32 %v2391, %v2127
          %v2520 = vmax.f32 %v2392, %v2128
          %v2521 = vmax.f32 %v2393, %v2129
          %v2522 = vmax.f32 %v2394, %v2130
          %v2523 = vmax.f32 %v2395, %v2131
          %v2524 = vmax.f32 %v2396, %v2132
          %v2525 = vmax.f32 %v2397, %v2133
          %v2526 = vmax.f32 %v2398, %v2134
          %v2527 = vmax.f32 %v2399, %v2135
          %v2528 = vmax.f32 %v2400, %v2136
          %v2529 = vmax.f32 %v2401, %v2137
          %v2530 = vmax.f32 %v2402, %v2138
          %v2531 = vmax.f32 %v2403, %v2139
          %v2532 = vmax.f32 %v2404, %v2140
          %v2533 = vmax.f32 %v2405, %v2141
          %v2534 = vmax.f32 %v2406, %v2142
          %v2535 = vmax.f32 %v2407, %v2143
          %v2536 = vmax.f32 %v2408, %v2144
          %v2537 = vmax.f32 %v2409, %v2145
          %v2538 = vmax.f32 %v2410, %v2146
          %v2539 = vmax.f32 %v2411, %v2147
          %v2540 = vmax.f32 %v2412, %v2148
          %v2541 = vmax.f32 %v2413, %v2149
          %v2542 = vmax.f32 %v2414, %v2150
          %v2543 = vmax.f32 %v2415, %v2151
          %v2544 = vmax.f32 %v2416, %v2152
          %v2545 = vmax.f32 %v2417, %v2153
          %v2546 = vmax.f32 %v2418, %v2154
          %v2547 = vmax.f32 %v2419, %v2155
          %v2548 = vmax.f32 %v2420, %v2156
          %v2549 = vmax.f32 %v2421, %v2157
          %v2550 = vmax.f32 %v2422, %v2158
          %v2551 = vmax.f32 %v2423, %v2159
          %v2552 = vmax.f32 %v2424, %v2160
          %v2553 = vmax.f32 %v2425, %v2161
          %v2554 = vmax.f32 %v2426, %v2162
          %v2555 = vmax.f32 %v2427, %v2163
          %v2556 = vmax.f32 %v2428, %v2164
          %v2557 = vmax.f32 %v2429, %v2165
          %v2558 = vmax.f32 %v2430, %v2166
          %v2559 = vmax.f32 %v2431, %v2167
          %v2560 = vmax.f32 %v2432, %v2168
          %v2561 = vmax.f32 %v2433, %v2169
          %v2562 = vmax.f32 %v2434, %v2170
          %v2563 = vmax.f32 %v2435, %v2171
          %v2564 = vmax.f32 %v2436, %v2172
          %v2565 = vmax.f32 %v2437, %v2173
          %v2566 = vmax.f32 %v2438, %v2174
          %v2567 = vmax.f32 %v2439, %v2175
          %v2568 = vmax.f32 %v2440, %v2176
          %v2569 = vmax.f32 %v2441, %v2177
          %v2570 = vmax.f32 %v2442, %v2178
          %v2571 = vmax.f32 %v2443, %v2179
          %v2572 = vmax.f32 %v2444, %v2180
          %v2573 = vmax.f32 %v2445, %v2181
          %v2574 = vmax.f32 %v2446, %v2182
          %v2575 = vmax.f32 %v2447, %v2183
          %v2576 = vmax.f32 %v2448, %v2184
          %v2577 = vmax.f32 %v2449, %v2185
          %v2578 = vmax.f32 %v2450, %v2186
          %v2579 = vmax.f32 %v2451, %v2187
          %v2580 = vmax.f32 %v2452, %v2188
          %v2581 = vmax.f32 %v2453, %v2189
          %v2582 = vmax.f32 %v2454, %v2190
          %2583 = vst [vmem:[#allocation2] sm:$0xff] %v2455
          %2584 = vst [vmem:[#allocation2 + $0x8] sm:$0xff] %v2456
          %2585 = vst [vmem:[#allocation2 + $0x10] sm:$0xff] %v2457
          %2586 = vst [vmem:[#allocation2 + $0x18] sm:$0xff] %v2458
          %2587 = vst [vmem:[#allocation2 + $0x20] sm:$0xff] %v2459
          %2588 = vst [vmem:[#allocation2 + $0x28] sm:$0xff] %v2460
          %2589 = vst [vmem:[#allocation2 + $0x30] sm:$0xff] %v2461
          %2590 = vst [vmem:[#allocation2 + $0x38] sm:$0xff] %v2462
          %2591 = vst [vmem:[#allocation2 + $0x40] sm:$0xff] %v2463
          %2592 = vst [vmem:[#allocation2 + $0x48] sm:$0xff] %v2464
          %2593 = vst [vmem:[#allocation2 + $0x50] sm:$0xff] %v2465
          %2594 = vst [vmem:[#allocation2 + $0x58] sm:$0xff] %v2466
          %2595 = vst [vmem:[#allocation2 + $0x60] sm:$0xff] %v2467
          %2596 = vst [vmem:[#allocation2 + $0x68] sm:$0xff] %v2468
          %2597 = vst [vmem:[#allocation2 + $0x70] sm:$0xff] %v2469
          %2598 = vst [vmem:[#allocation2 + $0x78] sm:$0xff] %v2470
          %2599 = vst [vmem:[#allocation2 + $0x80] sm:$0xff] %v2471
          %2600 = vst [vmem:[#allocation2 + $0x88] sm:$0xff] %v2472
          %2601 = vst [vmem:[#allocation2 + $0x90] sm:$0xff] %v2473
          %2602 = vst [vmem:[#allocation2 + $0x98] sm:$0xff] %v2474
          %2603 = vst [vmem:[#allocation2 + $0xa0] sm:$0xff] %v2475
          %2604 = vst [vmem:[#allocation2 + $0xa8] sm:$0xff] %v2476
          %2605 = vst [vmem:[#allocation2 + $0xb0] sm:$0xff] %v2477
          %2606 = vst [vmem:[#allocation2 + $0xb8] sm:$0xff] %v2478
          %2607 = vst [vmem:[#allocation2 + $0xc0] sm:$0xff] %v2479
          %2608 = vst [vmem:[#allocation2 + $0xc8] sm:$0xff] %v2480
          %2609 = vst [vmem:[#allocation2 + $0xd0] sm:$0xff] %v2481
          %2610 = vst [vmem:[#allocation2 + $0xd8] sm:$0xff] %v2482
          %2611 = vst [vmem:[#allocation2 + $0xe0] sm:$0xff] %v2483
          %2612 = vst [vmem:[#allocation2 + $0xe8] sm:$0xff] %v2484
          %2613 = vst [vmem:[#allocation2 + $0xf0] sm:$0xff] %v2485
          %2614 = vst [vmem:[#allocation2 + $0xf8] sm:$0xff] %v2486
          %2615 = vst [vmem:[#allocation2 + $0x100] sm:$0xff] %v2487
          %2616 = vst [vmem:[#allocation2 + $0x108] sm:$0xff] %v2488
          %2617 = vst [vmem:[#allocation2 + $0x110] sm:$0xff] %v2489
          %2618 = vst [vmem:[#allocation2 + $0x118] sm:$0xff] %v2490
          %2619 = vst [vmem:[#allocation2 + $0x120] sm:$0xff] %v2491
          %2620 = vst [vmem:[#allocation2 + $0x128] sm:$0xff] %v2492
          %2621 = vst [vmem:[#allocation2 + $0x130] sm:$0xff] %v2493
          %2622 = vst [vmem:[#allocation2 + $0x138] sm:$0xff] %v2494
          %2623 = vst [vmem:[#allocation2 + $0x140] sm:$0xff] %v2495
          %2624 = vst [vmem:[#allocation2 + $0x148] sm:$0xff] %v2496
          %2625 = vst [vmem:[#allocation2 + $0x150] sm:$0xff] %v2497
          %2626 = vst [vmem:[#allocation2 + $0x158] sm:$0xff] %v2498
          %2627 = vst [vmem:[#allocation2 + $0x160] sm:$0xff] %v2499
          %2628 = vst [vmem:[#allocation2 + $0x168] sm:$0xff] %v2500
          %2629 = vst [vmem:[#allocation2 + $0x170] sm:$0xff] %v2501
          %2630 = vst [vmem:[#allocation2 + $0x178] sm:$0xff] %v2502
          %2631 = vst [vmem:[#allocation2 + $0x180] sm:$0xff] %v2503
          %2632 = vst [vmem:[#allocation2 + $0x188] sm:$0xff] %v2504
          %2633 = vst [vmem:[#allocation2 + $0x190] sm:$0xff] %v2505
          %2634 = vst [vmem:[#allocation2 + $0x198] sm:$0xff] %v2506
          %2635 = vst [vmem:[#allocation2 + $0x1a0] sm:$0xff] %v2507
          %2636 = vst [vmem:[#allocation2 + $0x1a8] sm:$0xff] %v2508
          %2637 = vst [vmem:[#allocation2 + $0x1b0] sm:$0xff] %v2509
          %2638 = vst [vmem:[#allocation2 + $0x1b8] sm:$0xff] %v2510
          %2639 = vst [vmem:[#allocation2 + $0x1c0] sm:$0xff] %v2511
          %2640 = vst [vmem:[#allocation2 + $0x1c8] sm:$0xff] %v2512
          %2641 = vst [vmem:[#allocation2 + $0x1d0] sm:$0xff] %v2513
          %2642 = vst [vmem:[#allocation2 + $0x1d8] sm:$0xff] %v2514
          %2643 = vst [vmem:[#allocation2 + $0x1e0] sm:$0xff] %v2515
          %2644 = vst [vmem:[#allocation2 + $0x1e8] sm:$0xff] %v2516
          %2645 = vst [vmem:[#allocation2 + $0x1f0] sm:$0xff] %v2517
          %2646 = vst [vmem:[#allocation2 + $0x1f8] sm:$0xff] %v2518
          %2647 = vst [vmem:[#allocation2 + $0x200] sm:$0xff] %v2519
          %2648 = vst [vmem:[#allocation2 + $0x208] sm:$0xff] %v2520
          %2649 = vst [vmem:[#allocation2 + $0x210] sm:$0xff] %v2521
          %2650 = vst [vmem:[#allocation2 + $0x218] sm:$0xff] %v2522
          %2651 = vst [vmem:[#allocation2 + $0x220] sm:$0xff] %v2523
          %2652 = vst [vmem:[#allocation2 + $0x228] sm:$0xff] %v2524
          %2653 = vst [vmem:[#allocation2 + $0x230] sm:$0xff] %v2525
          %2654 = vst [vmem:[#allocation2 + $0x238] sm:$0xff] %v2526
          %2655 = vst [vmem:[#allocation2 + $0x240] sm:$0xff] %v2527
          %2656 = vst [vmem:[#allocation2 + $0x248] sm:$0xff] %v2528
          %2657 = vst [vmem:[#allocation2 + $0x250] sm:$0xff] %v2529
          %2658 = vst [vmem:[#allocation2 + $0x258] sm:$0xff] %v2530
          %2659 = vst [vmem:[#allocation2 + $0x260] sm:$0xff] %v2531
          %2660 = vst [vmem:[#allocation2 + $0x268] sm:$0xff] %v2532
          %2661 = vst [vmem:[#allocation2 + $0x270] sm:$0xff] %v2533
          %2662 = vst [vmem:[#allocation2 + $0x278] sm:$0xff] %v2534
          %2663 = vst [vmem:[#allocation2 + $0x280] sm:$0xff] %v2535
          %2664 = vst [vmem:[#allocation2 + $0x288] sm:$0xff] %v2536
          %2665 = vst [vmem:[#allocation2 + $0x290] sm:$0xff] %v2537
          %2666 = vst [vmem:[#allocation2 + $0x298] sm:$0xff] %v2538
          %2667 = vst [vmem:[#allocation2 + $0x2a0] sm:$0xff] %v2539
          %2668 = vst [vmem:[#allocation2 + $0x2a8] sm:$0xff] %v2540
          %2669 = vst [vmem:[#allocation2 + $0x2b0] sm:$0xff] %v2541
          %2670 = vst [vmem:[#allocation2 + $0x2b8] sm:$0xff] %v2542
          %2671 = vst [vmem:[#allocation2 + $0x2c0] sm:$0xff] %v2543
          %2672 = vst [vmem:[#allocation2 + $0x2c8] sm:$0xff] %v2544
          %2673 = vst [vmem:[#allocation2 + $0x2d0] sm:$0xff] %v2545
          %2674 = vst [vmem:[#allocation2 + $0x2d8] sm:$0xff] %v2546
          %2675 = vst [vmem:[#allocation2 + $0x2e0] sm:$0xff] %v2547
          %2676 = vst [vmem:[#allocation2 + $0x2e8] sm:$0xff] %v2548
          %2677 = vst [vmem:[#allocation2 + $0x2f0] sm:$0xff] %v2549
          %2678 = vst [vmem:[#allocation2 + $0x2f8] sm:$0xff] %v2550
          %2679 = vst [vmem:[#allocation2 + $0x300] sm:$0xff] %v2551
          %2680 = vst [vmem:[#allocation2 + $0x308] sm:$0xff] %v2552
          %2681 = vst [vmem:[#allocation2 + $0x310] sm:$0xff] %v2553
          %2682 = vst [vmem:[#allocation2 + $0x318] sm:$0xff] %v2554
          %2683 = vst [vmem:[#allocation2 + $0x320] sm:$0xff] %v2555
          %2684 = vst [vmem:[#allocation2 + $0x328] sm:$0xff] %v2556
          %2685 = vst [vmem:[#allocation2 + $0x330] sm:$0xff] %v2557
          %2686 = vst [vmem:[#allocation2 + $0x338] sm:$0xff] %v2558
          %2687 = vst [vmem:[#allocation2 + $0x340] sm:$0xff] %v2559
          %2688 = vst [vmem:[#allocation2 + $0x348] sm:$0xff] %v2560
          %2689 = vst [vmem:[#allocation2 + $0x350] sm:$0xff] %v2561
          %2690 = vst [vmem:[#allocation2 + $0x358] sm:$0xff] %v2562
          %2691 = vst [vmem:[#allocation2 + $0x360] sm:$0xff] %v2563
          %2692 = vst [vmem:[#allocation2 + $0x368] sm:$0xff] %v2564
          %2693 = vst [vmem:[#allocation2 + $0x370] sm:$0xff] %v2565
          %2694 = vst [vmem:[#allocation2 + $0x378] sm:$0xff] %v2566
          %2695 = vst [vmem:[#allocation2 + $0x380] sm:$0xff] %v2567
          %2696 = vst [vmem:[#allocation2 + $0x388] sm:$0xff] %v2568
          %2697 = vst [vmem:[#allocation2 + $0x390] sm:$0xff] %v2569
          %2698 = vst [vmem:[#allocation2 + $0x398] sm:$0xff] %v2570
          %2699 = vst [vmem:[#allocation2 + $0x3a0] sm:$0xff] %v2571
          %2700 = vst [vmem:[#allocation2 + $0x3a8] sm:$0xff] %v2572
          %2701 = vst [vmem:[#allocation2 + $0x3b0] sm:$0xff] %v2573
          %2702 = vst [vmem:[#allocation2 + $0x3b8] sm:$0xff] %v2574
          %2703 = vst [vmem:[#allocation2 + $0x3c0] sm:$0xff] %v2575
          %2704 = vst [vmem:[#allocation2 + $0x3c8] sm:$0xff] %v2576
          %2705 = vst [vmem:[#allocation2 + $0x3d0] sm:$0xff] %v2577
          %2706 = vst [vmem:[#allocation2 + $0x3d8] sm:$0xff] %v2578
          %2707 = vst [vmem:[#allocation2 + $0x3e0] sm:$0xff] %v2579
          %2708 = vst [vmem:[#allocation2 + $0x3e8] sm:$0xff] %v2580
          %2709 = vst [vmem:[#allocation2 + $0x3f0] sm:$0xff] %v2581
          %2710 = vst [vmem:[#allocation2 + $0x3f8] sm:$0xff] %v2582
        $region79: #{stnkd_forward.2} parent=66 // pred_fallthru
          _
        %p2711 = scmp.eq.s32.totalorder %s25, 4
        // Predicated region
        $region80: #{stnkd_forward.2} parent=66 // pred_check
          %p2712 = pneg %p2711
        $region81: #{stnkd_forward.2} parent=66 // pred_check_branch
          %2714 = sbr.rel (%p2712) target = $region83
        $region82: #{stnkd_forward.2} parent=66 // pred_region
          %v2715 = vld [vmem:[#allocation2] sm:$0xff]
          %v2716 = vld [vmem:[#allocation2 + $0x8] sm:$0xff]
          %v2717 = vld [vmem:[#allocation2 + $0x10] sm:$0xff]
          %v2718 = vld [vmem:[#allocation2 + $0x18] sm:$0xff]
          %v2719 = vld [vmem:[#allocation2 + $0x20] sm:$0xff]
          %v2720 = vld [vmem:[#allocation2 + $0x28] sm:$0xff]
          %v2721 = vld [vmem:[#allocation2 + $0x30] sm:$0xff]
          %v2722 = vld [vmem:[#allocation2 + $0x38] sm:$0xff]
          %v2723 = vld [vmem:[#allocation2 + $0x40] sm:$0xff]
          %v2724 = vld [vmem:[#allocation2 + $0x48] sm:$0xff]
          %v2725 = vld [vmem:[#allocation2 + $0x50] sm:$0xff]
          %v2726 = vld [vmem:[#allocation2 + $0x58] sm:$0xff]
          %v2727 = vld [vmem:[#allocation2 + $0x60] sm:$0xff]
          %v2728 = vld [vmem:[#allocation2 + $0x68] sm:$0xff]
          %v2729 = vld [vmem:[#allocation2 + $0x70] sm:$0xff]
          %v2730 = vld [vmem:[#allocation2 + $0x78] sm:$0xff]
          %v2731 = vld [vmem:[#allocation2 + $0x80] sm:$0xff]
          %v2732 = vld [vmem:[#allocation2 + $0x88] sm:$0xff]
          %v2733 = vld [vmem:[#allocation2 + $0x90] sm:$0xff]
          %v2734 = vld [vmem:[#allocation2 + $0x98] sm:$0xff]
          %v2735 = vld [vmem:[#allocation2 + $0xa0] sm:$0xff]
          %v2736 = vld [vmem:[#allocation2 + $0xa8] sm:$0xff]
          %v2737 = vld [vmem:[#allocation2 + $0xb0] sm:$0xff]
          %v2738 = vld [vmem:[#allocation2 + $0xb8] sm:$0xff]
          %v2739 = vld [vmem:[#allocation2 + $0xc0] sm:$0xff]
          %v2740 = vld [vmem:[#allocation2 + $0xc8] sm:$0xff]
          %v2741 = vld [vmem:[#allocation2 + $0xd0] sm:$0xff]
          %v2742 = vld [vmem:[#allocation2 + $0xd8] sm:$0xff]
          %v2743 = vld [vmem:[#allocation2 + $0xe0] sm:$0xff]
          %v2744 = vld [vmem:[#allocation2 + $0xe8] sm:$0xff]
          %v2745 = vld [vmem:[#allocation2 + $0xf0] sm:$0xff]
          %v2746 = vld [vmem:[#allocation2 + $0xf8] sm:$0xff]
          %v2747 = vld [vmem:[#allocation2 + $0x100] sm:$0xff]
          %v2748 = vld [vmem:[#allocation2 + $0x108] sm:$0xff]
          %v2749 = vld [vmem:[#allocation2 + $0x110] sm:$0xff]
          %v2750 = vld [vmem:[#allocation2 + $0x118] sm:$0xff]
          %v2751 = vld [vmem:[#allocation2 + $0x120] sm:$0xff]
          %v2752 = vld [vmem:[#allocation2 + $0x128] sm:$0xff]
          %v2753 = vld [vmem:[#allocation2 + $0x130] sm:$0xff]
          %v2754 = vld [vmem:[#allocation2 + $0x138] sm:$0xff]
          %v2755 = vld [vmem:[#allocation2 + $0x140] sm:$0xff]
          %v2756 = vld [vmem:[#allocation2 + $0x148] sm:$0xff]
          %v2757 = vld [vmem:[#allocation2 + $0x150] sm:$0xff]
          %v2758 = vld [vmem:[#allocation2 + $0x158] sm:$0xff]
          %v2759 = vld [vmem:[#allocation2 + $0x160] sm:$0xff]
          %v2760 = vld [vmem:[#allocation2 + $0x168] sm:$0xff]
          %v2761 = vld [vmem:[#allocation2 + $0x170] sm:$0xff]
          %v2762 = vld [vmem:[#allocation2 + $0x178] sm:$0xff]
          %v2763 = vld [vmem:[#allocation2 + $0x180] sm:$0xff]
          %v2764 = vld [vmem:[#allocation2 + $0x188] sm:$0xff]
          %v2765 = vld [vmem:[#allocation2 + $0x190] sm:$0xff]
          %v2766 = vld [vmem:[#allocation2 + $0x198] sm:$0xff]
          %v2767 = vld [vmem:[#allocation2 + $0x1a0] sm:$0xff]
          %v2768 = vld [vmem:[#allocation2 + $0x1a8] sm:$0xff]
          %v2769 = vld [vmem:[#allocation2 + $0x1b0] sm:$0xff]
          %v2770 = vld [vmem:[#allocation2 + $0x1b8] sm:$0xff]
          %v2771 = vld [vmem:[#allocation2 + $0x1c0] sm:$0xff]
          %v2772 = vld [vmem:[#allocation2 + $0x1c8] sm:$0xff]
          %v2773 = vld [vmem:[#allocation2 + $0x1d0] sm:$0xff]
          %v2774 = vld [vmem:[#allocation2 + $0x1d8] sm:$0xff]
          %v2775 = vld [vmem:[#allocation2 + $0x1e0] sm:$0xff]
          %v2776 = vld [vmem:[#allocation2 + $0x1e8] sm:$0xff]
          %v2777 = vld [vmem:[#allocation2 + $0x1f0] sm:$0xff]
          %v2778 = vld [vmem:[#allocation2 + $0x1f8] sm:$0xff]
          %v2779 = vld [vmem:[#allocation2 + $0x200] sm:$0xff]
          %v2780 = vld [vmem:[#allocation2 + $0x208] sm:$0xff]
          %v2781 = vld [vmem:[#allocation2 + $0x210] sm:$0xff]
          %v2782 = vld [vmem:[#allocation2 + $0x218] sm:$0xff]
          %v2783 = vld [vmem:[#allocation2 + $0x220] sm:$0xff]
          %v2784 = vld [vmem:[#allocation2 + $0x228] sm:$0xff]
          %v2785 = vld [vmem:[#allocation2 + $0x230] sm:$0xff]
          %v2786 = vld [vmem:[#allocation2 + $0x238] sm:$0xff]
          %v2787 = vld [vmem:[#allocation2 + $0x240] sm:$0xff]
          %v2788 = vld [vmem:[#allocation2 + $0x248] sm:$0xff]
          %v2789 = vld [vmem:[#allocation2 + $0x250] sm:$0xff]
          %v2790 = vld [vmem:[#allocation2 + $0x258] sm:$0xff]
          %v2791 = vld [vmem:[#allocation2 + $0x260] sm:$0xff]
          %v2792 = vld [vmem:[#allocation2 + $0x268] sm:$0xff]
          %v2793 = vld [vmem:[#allocation2 + $0x270] sm:$0xff]
          %v2794 = vld [vmem:[#allocation2 + $0x278] sm:$0xff]
          %v2795 = vld [vmem:[#allocation2 + $0x280] sm:$0xff]
          %v2796 = vld [vmem:[#allocation2 + $0x288] sm:$0xff]
          %v2797 = vld [vmem:[#allocation2 + $0x290] sm:$0xff]
          %v2798 = vld [vmem:[#allocation2 + $0x298] sm:$0xff]
          %v2799 = vld [vmem:[#allocation2 + $0x2a0] sm:$0xff]
          %v2800 = vld [vmem:[#allocation2 + $0x2a8] sm:$0xff]
          %v2801 = vld [vmem:[#allocation2 + $0x2b0] sm:$0xff]
          %v2802 = vld [vmem:[#allocation2 + $0x2b8] sm:$0xff]
          %v2803 = vld [vmem:[#allocation2 + $0x2c0] sm:$0xff]
          %v2804 = vld [vmem:[#allocation2 + $0x2c8] sm:$0xff]
          %v2805 = vld [vmem:[#allocation2 + $0x2d0] sm:$0xff]
          %v2806 = vld [vmem:[#allocation2 + $0x2d8] sm:$0xff]
          %v2807 = vld [vmem:[#allocation2 + $0x2e0] sm:$0xff]
          %v2808 = vld [vmem:[#allocation2 + $0x2e8] sm:$0xff]
          %v2809 = vld [vmem:[#allocation2 + $0x2f0] sm:$0xff]
          %v2810 = vld [vmem:[#allocation2 + $0x2f8] sm:$0xff]
          %v2811 = vld [vmem:[#allocation2 + $0x300] sm:$0xff]
          %v2812 = vld [vmem:[#allocation2 + $0x308] sm:$0xff]
          %v2813 = vld [vmem:[#allocation2 + $0x310] sm:$0xff]
          %v2814 = vld [vmem:[#allocation2 + $0x318] sm:$0xff]
          %v2815 = vld [vmem:[#allocation2 + $0x320] sm:$0xff]
          %v2816 = vld [vmem:[#allocation2 + $0x328] sm:$0xff]
          %v2817 = vld [vmem:[#allocation2 + $0x330] sm:$0xff]
          %v2818 = vld [vmem:[#allocation2 + $0x338] sm:$0xff]
          %v2819 = vld [vmem:[#allocation2 + $0x340] sm:$0xff]
          %v2820 = vld [vmem:[#allocation2 + $0x348] sm:$0xff]
          %v2821 = vld [vmem:[#allocation2 + $0x350] sm:$0xff]
          %v2822 = vld [vmem:[#allocation2 + $0x358] sm:$0xff]
          %v2823 = vld [vmem:[#allocation2 + $0x360] sm:$0xff]
          %v2824 = vld [vmem:[#allocation2 + $0x368] sm:$0xff]
          %v2825 = vld [vmem:[#allocation2 + $0x370] sm:$0xff]
          %v2826 = vld [vmem:[#allocation2 + $0x378] sm:$0xff]
          %v2827 = vld [vmem:[#allocation2 + $0x380] sm:$0xff]
          %v2828 = vld [vmem:[#allocation2 + $0x388] sm:$0xff]
          %v2829 = vld [vmem:[#allocation2 + $0x390] sm:$0xff]
          %v2830 = vld [vmem:[#allocation2 + $0x398] sm:$0xff]
          %v2831 = vld [vmem:[#allocation2 + $0x3a0] sm:$0xff]
          %v2832 = vld [vmem:[#allocation2 + $0x3a8] sm:$0xff]
          %v2833 = vld [vmem:[#allocation2 + $0x3b0] sm:$0xff]
          %v2834 = vld [vmem:[#allocation2 + $0x3b8] sm:$0xff]
          %v2835 = vld [vmem:[#allocation2 + $0x3c0] sm:$0xff]
          %v2836 = vld [vmem:[#allocation2 + $0x3c8] sm:$0xff]
          %v2837 = vld [vmem:[#allocation2 + $0x3d0] sm:$0xff]
          %v2838 = vld [vmem:[#allocation2 + $0x3d8] sm:$0xff]
          %v2839 = vld [vmem:[#allocation2 + $0x3e0] sm:$0xff]
          %v2840 = vld [vmem:[#allocation2 + $0x3e8] sm:$0xff]
          %v2841 = vld [vmem:[#allocation2 + $0x3f0] sm:$0xff]
          %v2842 = vld [vmem:[#allocation2 + $0x3f8] sm:$0xff]
          %2843 = vmax.xlane.f32.xlu0 %v2715
          %v2844 = vpop.xlane.xlu0 %2843
          %2845 = vmax.xlane.f32.xlu0 %v2716
          %v2846 = vpop.xlane.xlu0 %2845
          %2847 = vmax.xlane.f32.xlu0 %v2717
          %v2848 = vpop.xlane.xlu0 %2847
          %2849 = vmax.xlane.f32.xlu0 %v2718
          %v2850 = vpop.xlane.xlu0 %2849
          %2851 = vmax.xlane.f32.xlu0 %v2719
          %v2852 = vpop.xlane.xlu0 %2851
          %2853 = vmax.xlane.f32.xlu0 %v2720
          %v2854 = vpop.xlane.xlu0 %2853
          %2855 = vmax.xlane.f32.xlu0 %v2721
          %v2856 = vpop.xlane.xlu0 %2855
          %2857 = vmax.xlane.f32.xlu0 %v2722
          %v2858 = vpop.xlane.xlu0 %2857
          %2859 = vmax.xlane.f32.xlu0 %v2723
          %v2860 = vpop.xlane.xlu0 %2859
          %2861 = vmax.xlane.f32.xlu0 %v2724
          %v2862 = vpop.xlane.xlu0 %2861
          %2863 = vmax.xlane.f32.xlu0 %v2725
          %v2864 = vpop.xlane.xlu0 %2863
          %2865 = vmax.xlane.f32.xlu0 %v2726
          %v2866 = vpop.xlane.xlu0 %2865
          %2867 = vmax.xlane.f32.xlu0 %v2727
          %v2868 = vpop.xlane.xlu0 %2867
          %2869 = vmax.xlane.f32.xlu0 %v2728
          %v2870 = vpop.xlane.xlu0 %2869
          %2871 = vmax.xlane.f32.xlu0 %v2729
          %v2872 = vpop.xlane.xlu0 %2871
          %2873 = vmax.xlane.f32.xlu0 %v2730
          %v2874 = vpop.xlane.xlu0 %2873
          %2875 = vmax.xlane.f32.xlu0 %v2731
          %v2876 = vpop.xlane.xlu0 %2875
          %2877 = vmax.xlane.f32.xlu0 %v2732
          %v2878 = vpop.xlane.xlu0 %2877
          %2879 = vmax.xlane.f32.xlu0 %v2733
          %v2880 = vpop.xlane.xlu0 %2879
          %2881 = vmax.xlane.f32.xlu0 %v2734
          %v2882 = vpop.xlane.xlu0 %2881
          %2883 = vmax.xlane.f32.xlu0 %v2735
          %v2884 = vpop.xlane.xlu0 %2883
          %2885 = vmax.xlane.f32.xlu0 %v2736
          %v2886 = vpop.xlane.xlu0 %2885
          %2887 = vmax.xlane.f32.xlu0 %v2737
          %v2888 = vpop.xlane.xlu0 %2887
          %2889 = vmax.xlane.f32.xlu0 %v2738
          %v2890 = vpop.xlane.xlu0 %2889
          %2891 = vmax.xlane.f32.xlu0 %v2739
          %v2892 = vpop.xlane.xlu0 %2891
          %2893 = vmax.xlane.f32.xlu0 %v2740
          %v2894 = vpop.xlane.xlu0 %2893
          %2895 = vmax.xlane.f32.xlu0 %v2741
          %v2896 = vpop.xlane.xlu0 %2895
          %2897 = vmax.xlane.f32.xlu0 %v2742
          %v2898 = vpop.xlane.xlu0 %2897
          %2899 = vmax.xlane.f32.xlu0 %v2743
          %v2900 = vpop.xlane.xlu0 %2899
          %2901 = vmax.xlane.f32.xlu0 %v2744
          %v2902 = vpop.xlane.xlu0 %2901
          %2903 = vmax.xlane.f32.xlu0 %v2745
          %v2904 = vpop.xlane.xlu0 %2903
          %2905 = vmax.xlane.f32.xlu0 %v2746
          %v2906 = vpop.xlane.xlu0 %2905
          %2907 = vmax.xlane.f32.xlu0 %v2747
          %v2908 = vpop.xlane.xlu0 %2907
          %2909 = vmax.xlane.f32.xlu0 %v2748
          %v2910 = vpop.xlane.xlu0 %2909
          %2911 = vmax.xlane.f32.xlu0 %v2749
          %v2912 = vpop.xlane.xlu0 %2911
          %2913 = vmax.xlane.f32.xlu0 %v2750
          %v2914 = vpop.xlane.xlu0 %2913
          %2915 = vmax.xlane.f32.xlu0 %v2751
          %v2916 = vpop.xlane.xlu0 %2915
          %2917 = vmax.xlane.f32.xlu0 %v2752
          %v2918 = vpop.xlane.xlu0 %2917
          %2919 = vmax.xlane.f32.xlu0 %v2753
          %v2920 = vpop.xlane.xlu0 %2919
          %2921 = vmax.xlane.f32.xlu0 %v2754
          %v2922 = vpop.xlane.xlu0 %2921
          %2923 = vmax.xlane.f32.xlu0 %v2755
          %v2924 = vpop.xlane.xlu0 %2923
          %2925 = vmax.xlane.f32.xlu0 %v2756
          %v2926 = vpop.xlane.xlu0 %2925
          %2927 = vmax.xlane.f32.xlu0 %v2757
          %v2928 = vpop.xlane.xlu0 %2927
          %2929 = vmax.xlane.f32.xlu0 %v2758
          %v2930 = vpop.xlane.xlu0 %2929
          %2931 = vmax.xlane.f32.xlu0 %v2759
          %v2932 = vpop.xlane.xlu0 %2931
          %2933 = vmax.xlane.f32.xlu0 %v2760
          %v2934 = vpop.xlane.xlu0 %2933
          %2935 = vmax.xlane.f32.xlu0 %v2761
          %v2936 = vpop.xlane.xlu0 %2935
          %2937 = vmax.xlane.f32.xlu0 %v2762
          %v2938 = vpop.xlane.xlu0 %2937
          %2939 = vmax.xlane.f32.xlu0 %v2763
          %v2940 = vpop.xlane.xlu0 %2939
          %2941 = vmax.xlane.f32.xlu0 %v2764
          %v2942 = vpop.xlane.xlu0 %2941
          %2943 = vmax.xlane.f32.xlu0 %v2765
          %v2944 = vpop.xlane.xlu0 %2943
          %2945 = vmax.xlane.f32.xlu0 %v2766
          %v2946 = vpop.xlane.xlu0 %2945
          %2947 = vmax.xlane.f32.xlu0 %v2767
          %v2948 = vpop.xlane.xlu0 %2947
          %2949 = vmax.xlane.f32.xlu0 %v2768
          %v2950 = vpop.xlane.xlu0 %2949
          %2951 = vmax.xlane.f32.xlu0 %v2769
          %v2952 = vpop.xlane.xlu0 %2951
          %2953 = vmax.xlane.f32.xlu0 %v2770
          %v2954 = vpop.xlane.xlu0 %2953
          %2955 = vmax.xlane.f32.xlu0 %v2771
          %v2956 = vpop.xlane.xlu0 %2955
          %2957 = vmax.xlane.f32.xlu0 %v2772
          %v2958 = vpop.xlane.xlu0 %2957
          %2959 = vmax.xlane.f32.xlu0 %v2773
          %v2960 = vpop.xlane.xlu0 %2959
          %2961 = vmax.xlane.f32.xlu0 %v2774
          %v2962 = vpop.xlane.xlu0 %2961
          %2963 = vmax.xlane.f32.xlu0 %v2775
          %v2964 = vpop.xlane.xlu0 %2963
          %2965 = vmax.xlane.f32.xlu0 %v2776
          %v2966 = vpop.xlane.xlu0 %2965
          %2967 = vmax.xlane.f32.xlu0 %v2777
          %v2968 = vpop.xlane.xlu0 %2967
          %2969 = vmax.xlane.f32.xlu0 %v2778
          %v2970 = vpop.xlane.xlu0 %2969
          %2971 = vmax.xlane.f32.xlu0 %v2779
          %v2972 = vpop.xlane.xlu0 %2971
          %2973 = vmax.xlane.f32.xlu0 %v2780
          %v2974 = vpop.xlane.xlu0 %2973
          %2975 = vmax.xlane.f32.xlu0 %v2781
          %v2976 = vpop.xlane.xlu0 %2975
          %2977 = vmax.xlane.f32.xlu0 %v2782
          %v2978 = vpop.xlane.xlu0 %2977
          %2979 = vmax.xlane.f32.xlu0 %v2783
          %v2980 = vpop.xlane.xlu0 %2979
          %2981 = vmax.xlane.f32.xlu0 %v2784
          %v2982 = vpop.xlane.xlu0 %2981
          %2983 = vmax.xlane.f32.xlu0 %v2785
          %v2984 = vpop.xlane.xlu0 %2983
          %2985 = vmax.xlane.f32.xlu0 %v2786
          %v2986 = vpop.xlane.xlu0 %2985
          %2987 = vmax.xlane.f32.xlu0 %v2787
          %v2988 = vpop.xlane.xlu0 %2987
          %2989 = vmax.xlane.f32.xlu0 %v2788
          %v2990 = vpop.xlane.xlu0 %2989
          %2991 = vmax.xlane.f32.xlu0 %v2789
          %v2992 = vpop.xlane.xlu0 %2991
          %2993 = vmax.xlane.f32.xlu0 %v2790
          %v2994 = vpop.xlane.xlu0 %2993
          %2995 = vmax.xlane.f32.xlu0 %v2791
          %v2996 = vpop.xlane.xlu0 %2995
          %2997 = vmax.xlane.f32.xlu0 %v2792
          %v2998 = vpop.xlane.xlu0 %2997
          %2999 = vmax.xlane.f32.xlu0 %v2793
          %v3000 = vpop.xlane.xlu0 %2999
          %3001 = vmax.xlane.f32.xlu0 %v2794
          %v3002 = vpop.xlane.xlu0 %3001
          %3003 = vmax.xlane.f32.xlu0 %v2795
          %v3004 = vpop.xlane.xlu0 %3003
          %3005 = vmax.xlane.f32.xlu0 %v2796
          %v3006 = vpop.xlane.xlu0 %3005
          %3007 = vmax.xlane.f32.xlu0 %v2797
          %v3008 = vpop.xlane.xlu0 %3007
          %3009 = vmax.xlane.f32.xlu0 %v2798
          %v3010 = vpop.xlane.xlu0 %3009
          %3011 = vmax.xlane.f32.xlu0 %v2799
          %v3012 = vpop.xlane.xlu0 %3011
          %3013 = vmax.xlane.f32.xlu0 %v2800
          %v3014 = vpop.xlane.xlu0 %3013
          %3015 = vmax.xlane.f32.xlu0 %v2801
          %v3016 = vpop.xlane.xlu0 %3015
          %3017 = vmax.xlane.f32.xlu0 %v2802
          %v3018 = vpop.xlane.xlu0 %3017
          %3019 = vmax.xlane.f32.xlu0 %v2803
          %v3020 = vpop.xlane.xlu0 %3019
          %3021 = vmax.xlane.f32.xlu0 %v2804
          %v3022 = vpop.xlane.xlu0 %3021
          %3023 = vmax.xlane.f32.xlu0 %v2805
          %v3024 = vpop.xlane.xlu0 %3023
          %3025 = vmax.xlane.f32.xlu0 %v2806
          %v3026 = vpop.xlane.xlu0 %3025
          %3027 = vmax.xlane.f32.xlu0 %v2807
          %v3028 = vpop.xlane.xlu0 %3027
          %3029 = vmax.xlane.f32.xlu0 %v2808
          %v3030 = vpop.xlane.xlu0 %3029
          %3031 = vmax.xlane.f32.xlu0 %v2809
          %v3032 = vpop.xlane.xlu0 %3031
          %3033 = vmax.xlane.f32.xlu0 %v2810
          %v3034 = vpop.xlane.xlu0 %3033
          %3035 = vmax.xlane.f32.xlu0 %v2811
          %v3036 = vpop.xlane.xlu0 %3035
          %3037 = vmax.xlane.f32.xlu0 %v2812
          %v3038 = vpop.xlane.xlu0 %3037
          %3039 = vmax.xlane.f32.xlu0 %v2813
          %v3040 = vpop.xlane.xlu0 %3039
          %3041 = vmax.xlane.f32.xlu0 %v2814
          %v3042 = vpop.xlane.xlu0 %3041
          %3043 = vmax.xlane.f32.xlu0 %v2815
          %v3044 = vpop.xlane.xlu0 %3043
          %3045 = vmax.xlane.f32.xlu0 %v2816
          %v3046 = vpop.xlane.xlu0 %3045
          %3047 = vmax.xlane.f32.xlu0 %v2817
          %v3048 = vpop.xlane.xlu0 %3047
          %3049 = vmax.xlane.f32.xlu0 %v2818
          %v3050 = vpop.xlane.xlu0 %3049
          %3051 = vmax.xlane.f32.xlu0 %v2819
          %v3052 = vpop.xlane.xlu0 %3051
          %3053 = vmax.xlane.f32.xlu0 %v2820
          %v3054 = vpop.xlane.xlu0 %3053
          %3055 = vmax.xlane.f32.xlu0 %v2821
          %v3056 = vpop.xlane.xlu0 %3055
          %3057 = vmax.xlane.f32.xlu0 %v2822
          %v3058 = vpop.xlane.xlu0 %3057
          %3059 = vmax.xlane.f32.xlu0 %v2823
          %v3060 = vpop.xlane.xlu0 %3059
          %3061 = vmax.xlane.f32.xlu0 %v2824
          %v3062 = vpop.xlane.xlu0 %3061
          %3063 = vmax.xlane.f32.xlu0 %v2825
          %v3064 = vpop.xlane.xlu0 %3063
          %3065 = vmax.xlane.f32.xlu0 %v2826
          %v3066 = vpop.xlane.xlu0 %3065
          %3067 = vmax.xlane.f32.xlu0 %v2827
          %v3068 = vpop.xlane.xlu0 %3067
          %3069 = vmax.xlane.f32.xlu0 %v2828
          %v3070 = vpop.xlane.xlu0 %3069
          %3071 = vmax.xlane.f32.xlu0 %v2829
          %v3072 = vpop.xlane.xlu0 %3071
          %3073 = vmax.xlane.f32.xlu0 %v2830
          %v3074 = vpop.xlane.xlu0 %3073
          %3075 = vmax.xlane.f32.xlu0 %v2831
          %v3076 = vpop.xlane.xlu0 %3075
          %3077 = vmax.xlane.f32.xlu0 %v2832
          %v3078 = vpop.xlane.xlu0 %3077
          %3079 = vmax.xlane.f32.xlu0 %v2833
          %v3080 = vpop.xlane.xlu0 %3079
          %3081 = vmax.xlane.f32.xlu0 %v2834
          %v3082 = vpop.xlane.xlu0 %3081
          %3083 = vmax.xlane.f32.xlu0 %v2835
          %v3084 = vpop.xlane.xlu0 %3083
          %3085 = vmax.xlane.f32.xlu0 %v2836
          %v3086 = vpop.xlane.xlu0 %3085
          %3087 = vmax.xlane.f32.xlu0 %v2837
          %v3088 = vpop.xlane.xlu0 %3087
          %3089 = vmax.xlane.f32.xlu0 %v2838
          %v3090 = vpop.xlane.xlu0 %3089
          %3091 = vmax.xlane.f32.xlu0 %v2839
          %v3092 = vpop.xlane.xlu0 %3091
          %3093 = vmax.xlane.f32.xlu0 %v2840
          %v3094 = vpop.xlane.xlu0 %3093
          %3095 = vmax.xlane.f32.xlu0 %v2841
          %v3096 = vpop.xlane.xlu0 %3095
          %3097 = vmax.xlane.f32.xlu0 %v2842
          %v3098 = vpop.xlane.xlu0 %3097
          %v3099 = vld [vmem:[%s6] sm:$0xff]
          %v3100 = vld [vmem:[%s6 + $0x8] sm:$0xff]
          %v3101 = vld [vmem:[%s6 + $0x10] sm:$0xff]
          %v3102 = vld [vmem:[%s6 + $0x18] sm:$0xff]
          %v3103 = vld [vmem:[%s6 + $0x20] sm:$0xff]
          %v3104 = vld [vmem:[%s6 + $0x28] sm:$0xff]
          %v3105 = vld [vmem:[%s6 + $0x30] sm:$0xff]
          %v3106 = vld [vmem:[%s6 + $0x38] sm:$0xff]
          %v3107 = vld [vmem:[%s6 + $0x40] sm:$0xff]
          %v3108 = vld [vmem:[%s6 + $0x48] sm:$0xff]
          %v3109 = vld [vmem:[%s6 + $0x50] sm:$0xff]
          %v3110 = vld [vmem:[%s6 + $0x58] sm:$0xff]
          %v3111 = vld [vmem:[%s6 + $0x60] sm:$0xff]
          %v3112 = vld [vmem:[%s6 + $0x68] sm:$0xff]
          %v3113 = vld [vmem:[%s6 + $0x70] sm:$0xff]
          %v3114 = vld [vmem:[%s6 + $0x78] sm:$0xff]
          %v3115 = vld [vmem:[%s6 + $0x80] sm:$0xff]
          %v3116 = vld [vmem:[%s6 + $0x88] sm:$0xff]
          %v3117 = vld [vmem:[%s6 + $0x90] sm:$0xff]
          %v3118 = vld [vmem:[%s6 + $0x98] sm:$0xff]
          %v3119 = vld [vmem:[%s6 + $0xa0] sm:$0xff]
          %v3120 = vld [vmem:[%s6 + $0xa8] sm:$0xff]
          %v3121 = vld [vmem:[%s6 + $0xb0] sm:$0xff]
          %v3122 = vld [vmem:[%s6 + $0xb8] sm:$0xff]
          %v3123 = vld [vmem:[%s6 + $0xc0] sm:$0xff]
          %v3124 = vld [vmem:[%s6 + $0xc8] sm:$0xff]
          %v3125 = vld [vmem:[%s6 + $0xd0] sm:$0xff]
          %v3126 = vld [vmem:[%s6 + $0xd8] sm:$0xff]
          %v3127 = vld [vmem:[%s6 + $0xe0] sm:$0xff]
          %v3128 = vld [vmem:[%s6 + $0xe8] sm:$0xff]
          %v3129 = vld [vmem:[%s6 + $0xf0] sm:$0xff]
          %v3130 = vld [vmem:[%s6 + $0xf8] sm:$0xff]
          %v3131 = vld [vmem:[%s6 + $0x100] sm:$0xff]
          %v3132 = vld [vmem:[%s6 + $0x108] sm:$0xff]
          %v3133 = vld [vmem:[%s6 + $0x110] sm:$0xff]
          %v3134 = vld [vmem:[%s6 + $0x118] sm:$0xff]
          %v3135 = vld [vmem:[%s6 + $0x120] sm:$0xff]
          %v3136 = vld [vmem:[%s6 + $0x128] sm:$0xff]
          %v3137 = vld [vmem:[%s6 + $0x130] sm:$0xff]
          %v3138 = vld [vmem:[%s6 + $0x138] sm:$0xff]
          %v3139 = vld [vmem:[%s6 + $0x140] sm:$0xff]
          %v3140 = vld [vmem:[%s6 + $0x148] sm:$0xff]
          %v3141 = vld [vmem:[%s6 + $0x150] sm:$0xff]
          %v3142 = vld [vmem:[%s6 + $0x158] sm:$0xff]
          %v3143 = vld [vmem:[%s6 + $0x160] sm:$0xff]
          %v3144 = vld [vmem:[%s6 + $0x168] sm:$0xff]
          %v3145 = vld [vmem:[%s6 + $0x170] sm:$0xff]
          %v3146 = vld [vmem:[%s6 + $0x178] sm:$0xff]
          %v3147 = vld [vmem:[%s6 + $0x180] sm:$0xff]
          %v3148 = vld [vmem:[%s6 + $0x188] sm:$0xff]
          %v3149 = vld [vmem:[%s6 + $0x190] sm:$0xff]
          %v3150 = vld [vmem:[%s6 + $0x198] sm:$0xff]
          %v3151 = vld [vmem:[%s6 + $0x1a0] sm:$0xff]
          %v3152 = vld [vmem:[%s6 + $0x1a8] sm:$0xff]
          %v3153 = vld [vmem:[%s6 + $0x1b0] sm:$0xff]
          %v3154 = vld [vmem:[%s6 + $0x1b8] sm:$0xff]
          %v3155 = vld [vmem:[%s6 + $0x1c0] sm:$0xff]
          %v3156 = vld [vmem:[%s6 + $0x1c8] sm:$0xff]
          %v3157 = vld [vmem:[%s6 + $0x1d0] sm:$0xff]
          %v3158 = vld [vmem:[%s6 + $0x1d8] sm:$0xff]
          %v3159 = vld [vmem:[%s6 + $0x1e0] sm:$0xff]
          %v3160 = vld [vmem:[%s6 + $0x1e8] sm:$0xff]
          %v3161 = vld [vmem:[%s6 + $0x1f0] sm:$0xff]
          %v3162 = vld [vmem:[%s6 + $0x1f8] sm:$0xff]
          %v3163 = vld [vmem:[%s6 + $0x200] sm:$0xff]
          %v3164 = vld [vmem:[%s6 + $0x208] sm:$0xff]
          %v3165 = vld [vmem:[%s6 + $0x210] sm:$0xff]
          %v3166 = vld [vmem:[%s6 + $0x218] sm:$0xff]
          %v3167 = vld [vmem:[%s6 + $0x220] sm:$0xff]
          %v3168 = vld [vmem:[%s6 + $0x228] sm:$0xff]
          %v3169 = vld [vmem:[%s6 + $0x230] sm:$0xff]
          %v3170 = vld [vmem:[%s6 + $0x238] sm:$0xff]
          %v3171 = vld [vmem:[%s6 + $0x240] sm:$0xff]
          %v3172 = vld [vmem:[%s6 + $0x248] sm:$0xff]
          %v3173 = vld [vmem:[%s6 + $0x250] sm:$0xff]
          %v3174 = vld [vmem:[%s6 + $0x258] sm:$0xff]
          %v3175 = vld [vmem:[%s6 + $0x260] sm:$0xff]
          %v3176 = vld [vmem:[%s6 + $0x268] sm:$0xff]
          %v3177 = vld [vmem:[%s6 + $0x270] sm:$0xff]
          %v3178 = vld [vmem:[%s6 + $0x278] sm:$0xff]
          %v3179 = vld [vmem:[%s6 + $0x280] sm:$0xff]
          %v3180 = vld [vmem:[%s6 + $0x288] sm:$0xff]
          %v3181 = vld [vmem:[%s6 + $0x290] sm:$0xff]
          %v3182 = vld [vmem:[%s6 + $0x298] sm:$0xff]
          %v3183 = vld [vmem:[%s6 + $0x2a0] sm:$0xff]
          %v3184 = vld [vmem:[%s6 + $0x2a8] sm:$0xff]
          %v3185 = vld [vmem:[%s6 + $0x2b0] sm:$0xff]
          %v3186 = vld [vmem:[%s6 + $0x2b8] sm:$0xff]
          %v3187 = vld [vmem:[%s6 + $0x2c0] sm:$0xff]
          %v3188 = vld [vmem:[%s6 + $0x2c8] sm:$0xff]
          %v3189 = vld [vmem:[%s6 + $0x2d0] sm:$0xff]
          %v3190 = vld [vmem:[%s6 + $0x2d8] sm:$0xff]
          %v3191 = vld [vmem:[%s6 + $0x2e0] sm:$0xff]
          %v3192 = vld [vmem:[%s6 + $0x2e8] sm:$0xff]
          %v3193 = vld [vmem:[%s6 + $0x2f0] sm:$0xff]
          %v3194 = vld [vmem:[%s6 + $0x2f8] sm:$0xff]
          %v3195 = vld [vmem:[%s6 + $0x300] sm:$0xff]
          %v3196 = vld [vmem:[%s6 + $0x308] sm:$0xff]
          %v3197 = vld [vmem:[%s6 + $0x310] sm:$0xff]
          %v3198 = vld [vmem:[%s6 + $0x318] sm:$0xff]
          %v3199 = vld [vmem:[%s6 + $0x320] sm:$0xff]
          %v3200 = vld [vmem:[%s6 + $0x328] sm:$0xff]
          %v3201 = vld [vmem:[%s6 + $0x330] sm:$0xff]
          %v3202 = vld [vmem:[%s6 + $0x338] sm:$0xff]
          %v3203 = vld [vmem:[%s6 + $0x340] sm:$0xff]
          %v3204 = vld [vmem:[%s6 + $0x348] sm:$0xff]
          %v3205 = vld [vmem:[%s6 + $0x350] sm:$0xff]
          %v3206 = vld [vmem:[%s6 + $0x358] sm:$0xff]
          %v3207 = vld [vmem:[%s6 + $0x360] sm:$0xff]
          %v3208 = vld [vmem:[%s6 + $0x368] sm:$0xff]
          %v3209 = vld [vmem:[%s6 + $0x370] sm:$0xff]
          %v3210 = vld [vmem:[%s6 + $0x378] sm:$0xff]
          %v3211 = vld [vmem:[%s6 + $0x380] sm:$0xff]
          %v3212 = vld [vmem:[%s6 + $0x388] sm:$0xff]
          %v3213 = vld [vmem:[%s6 + $0x390] sm:$0xff]
          %v3214 = vld [vmem:[%s6 + $0x398] sm:$0xff]
          %v3215 = vld [vmem:[%s6 + $0x3a0] sm:$0xff]
          %v3216 = vld [vmem:[%s6 + $0x3a8] sm:$0xff]
          %v3217 = vld [vmem:[%s6 + $0x3b0] sm:$0xff]
          %v3218 = vld [vmem:[%s6 + $0x3b8] sm:$0xff]
          %v3219 = vld [vmem:[%s6 + $0x3c0] sm:$0xff]
          %v3220 = vld [vmem:[%s6 + $0x3c8] sm:$0xff]
          %v3221 = vld [vmem:[%s6 + $0x3d0] sm:$0xff]
          %v3222 = vld [vmem:[%s6 + $0x3d8] sm:$0xff]
          %v3223 = vld [vmem:[%s6 + $0x3e0] sm:$0xff]
          %v3224 = vld [vmem:[%s6 + $0x3e8] sm:$0xff]
          %v3225 = vld [vmem:[%s6 + $0x3f0] sm:$0xff]
          %v3226 = vld [vmem:[%s6 + $0x3f8] sm:$0xff]
          %v3227 = vadd.f32 %v2844, %v3099
          %v3228 = vadd.f32 %v2846, %v3100
          %v3229 = vadd.f32 %v2848, %v3101
          %v3230 = vadd.f32 %v2850, %v3102
          %v3231 = vadd.f32 %v2852, %v3103
          %v3232 = vadd.f32 %v2854, %v3104
          %v3233 = vadd.f32 %v2856, %v3105
          %v3234 = vadd.f32 %v2858, %v3106
          %v3235 = vadd.f32 %v2860, %v3107
          %v3236 = vadd.f32 %v2862, %v3108
          %v3237 = vadd.f32 %v2864, %v3109
          %v3238 = vadd.f32 %v2866, %v3110
          %v3239 = vadd.f32 %v2868, %v3111
          %v3240 = vadd.f32 %v2870, %v3112
          %v3241 = vadd.f32 %v2872, %v3113
          %v3242 = vadd.f32 %v2874, %v3114
          %v3243 = vadd.f32 %v2876, %v3115
          %v3244 = vadd.f32 %v2878, %v3116
          %v3245 = vadd.f32 %v2880, %v3117
          %v3246 = vadd.f32 %v2882, %v3118
          %v3247 = vadd.f32 %v2884, %v3119
          %v3248 = vadd.f32 %v2886, %v3120
          %v3249 = vadd.f32 %v2888, %v3121
          %v3250 = vadd.f32 %v2890, %v3122
          %v3251 = vadd.f32 %v2892, %v3123
          %v3252 = vadd.f32 %v2894, %v3124
          %v3253 = vadd.f32 %v2896, %v3125
          %v3254 = vadd.f32 %v2898, %v3126
          %v3255 = vadd.f32 %v2900, %v3127
          %v3256 = vadd.f32 %v2902, %v3128
          %v3257 = vadd.f32 %v2904, %v3129
          %v3258 = vadd.f32 %v2906, %v3130
          %v3259 = vadd.f32 %v2908, %v3131
          %v3260 = vadd.f32 %v2910, %v3132
          %v3261 = vadd.f32 %v2912, %v3133
          %v3262 = vadd.f32 %v2914, %v3134
          %v3263 = vadd.f32 %v2916, %v3135
          %v3264 = vadd.f32 %v2918, %v3136
          %v3265 = vadd.f32 %v2920, %v3137
          %v3266 = vadd.f32 %v2922, %v3138
          %v3267 = vadd.f32 %v2924, %v3139
          %v3268 = vadd.f32 %v2926, %v3140
          %v3269 = vadd.f32 %v2928, %v3141
          %v3270 = vadd.f32 %v2930, %v3142
          %v3271 = vadd.f32 %v2932, %v3143
          %v3272 = vadd.f32 %v2934, %v3144
          %v3273 = vadd.f32 %v2936, %v3145
          %v3274 = vadd.f32 %v2938, %v3146
          %v3275 = vadd.f32 %v2940, %v3147
          %v3276 = vadd.f32 %v2942, %v3148
          %v3277 = vadd.f32 %v2944, %v3149
          %v3278 = vadd.f32 %v2946, %v3150
          %v3279 = vadd.f32 %v2948, %v3151
          %v3280 = vadd.f32 %v2950, %v3152
          %v3281 = vadd.f32 %v2952, %v3153
          %v3282 = vadd.f32 %v2954, %v3154
          %v3283 = vadd.f32 %v2956, %v3155
          %v3284 = vadd.f32 %v2958, %v3156
          %v3285 = vadd.f32 %v2960, %v3157
          %v3286 = vadd.f32 %v2962, %v3158
          %v3287 = vadd.f32 %v2964, %v3159
          %v3288 = vadd.f32 %v2966, %v3160
          %v3289 = vadd.f32 %v2968, %v3161
          %v3290 = vadd.f32 %v2970, %v3162
          %v3291 = vadd.f32 %v2972, %v3163
          %v3292 = vadd.f32 %v2974, %v3164
          %v3293 = vadd.f32 %v2976, %v3165
          %v3294 = vadd.f32 %v2978, %v3166
          %v3295 = vadd.f32 %v2980, %v3167
          %v3296 = vadd.f32 %v2982, %v3168
          %v3297 = vadd.f32 %v2984, %v3169
          %v3298 = vadd.f32 %v2986, %v3170
          %v3299 = vadd.f32 %v2988, %v3171
          %v3300 = vadd.f32 %v2990, %v3172
          %v3301 = vadd.f32 %v2992, %v3173
          %v3302 = vadd.f32 %v2994, %v3174
          %v3303 = vadd.f32 %v2996, %v3175
          %v3304 = vadd.f32 %v2998, %v3176
          %v3305 = vadd.f32 %v3000, %v3177
          %v3306 = vadd.f32 %v3002, %v3178
          %v3307 = vadd.f32 %v3004, %v3179
          %v3308 = vadd.f32 %v3006, %v3180
          %v3309 = vadd.f32 %v3008, %v3181
          %v3310 = vadd.f32 %v3010, %v3182
          %v3311 = vadd.f32 %v3012, %v3183
          %v3312 = vadd.f32 %v3014, %v3184
          %v3313 = vadd.f32 %v3016, %v3185
          %v3314 = vadd.f32 %v3018, %v3186
          %v3315 = vadd.f32 %v3020, %v3187
          %v3316 = vadd.f32 %v3022, %v3188
          %v3317 = vadd.f32 %v3024, %v3189
          %v3318 = vadd.f32 %v3026, %v3190
          %v3319 = vadd.f32 %v3028, %v3191
          %v3320 = vadd.f32 %v3030, %v3192
          %v3321 = vadd.f32 %v3032, %v3193
          %v3322 = vadd.f32 %v3034, %v3194
          %v3323 = vadd.f32 %v3036, %v3195
          %v3324 = vadd.f32 %v3038, %v3196
          %v3325 = vadd.f32 %v3040, %v3197
          %v3326 = vadd.f32 %v3042, %v3198
          %v3327 = vadd.f32 %v3044, %v3199
          %v3328 = vadd.f32 %v3046, %v3200
          %v3329 = vadd.f32 %v3048, %v3201
          %v3330 = vadd.f32 %v3050, %v3202
          %v3331 = vadd.f32 %v3052, %v3203
          %v3332 = vadd.f32 %v3054, %v3204
          %v3333 = vadd.f32 %v3056, %v3205
          %v3334 = vadd.f32 %v3058, %v3206
          %v3335 = vadd.f32 %v3060, %v3207
          %v3336 = vadd.f32 %v3062, %v3208
          %v3337 = vadd.f32 %v3064, %v3209
          %v3338 = vadd.f32 %v3066, %v3210
          %v3339 = vadd.f32 %v3068, %v3211
          %v3340 = vadd.f32 %v3070, %v3212
          %v3341 = vadd.f32 %v3072, %v3213
          %v3342 = vadd.f32 %v3074, %v3214
          %v3343 = vadd.f32 %v3076, %v3215
          %v3344 = vadd.f32 %v3078, %v3216
          %v3345 = vadd.f32 %v3080, %v3217
          %v3346 = vadd.f32 %v3082, %v3218
          %v3347 = vadd.f32 %v3084, %v3219
          %v3348 = vadd.f32 %v3086, %v3220
          %v3349 = vadd.f32 %v3088, %v3221
          %v3350 = vadd.f32 %v3090, %v3222
          %v3351 = vadd.f32 %v3092, %v3223
          %v3352 = vadd.f32 %v3094, %v3224
          %v3353 = vadd.f32 %v3096, %v3225
          %v3354 = vadd.f32 %v3098, %v3226
          %v3355 = vmax.f32 %v3227, 0.0
          %v3356 = vmax.f32 %v3228, 0.0
          %v3357 = vmax.f32 %v3229, 0.0
          %v3358 = vmax.f32 %v3230, 0.0
          %v3359 = vmax.f32 %v3231, 0.0
          %v3360 = vmax.f32 %v3232, 0.0
          %v3361 = vmax.f32 %v3233, 0.0
          %v3362 = vmax.f32 %v3234, 0.0
          %v3363 = vmax.f32 %v3235, 0.0
          %v3364 = vmax.f32 %v3236, 0.0
          %v3365 = vmax.f32 %v3237, 0.0
          %v3366 = vmax.f32 %v3238, 0.0
          %v3367 = vmax.f32 %v3239, 0.0
          %v3368 = vmax.f32 %v3240, 0.0
          %v3369 = vmax.f32 %v3241, 0.0
          %v3370 = vmax.f32 %v3242, 0.0
          %v3371 = vmax.f32 %v3243, 0.0
          %v3372 = vmax.f32 %v3244, 0.0
          %v3373 = vmax.f32 %v3245, 0.0
          %v3374 = vmax.f32 %v3246, 0.0
          %v3375 = vmax.f32 %v3247, 0.0
          %v3376 = vmax.f32 %v3248, 0.0
          %v3377 = vmax.f32 %v3249, 0.0
          %v3378 = vmax.f32 %v3250, 0.0
          %v3379 = vmax.f32 %v3251, 0.0
          %v3380 = vmax.f32 %v3252, 0.0
          %v3381 = vmax.f32 %v3253, 0.0
          %v3382 = vmax.f32 %v3254, 0.0
          %v3383 = vmax.f32 %v3255, 0.0
          %v3384 = vmax.f32 %v3256, 0.0
          %v3385 = vmax.f32 %v3257, 0.0
          %v3386 = vmax.f32 %v3258, 0.0
          %v3387 = vmax.f32 %v3259, 0.0
          %v3388 = vmax.f32 %v3260, 0.0
          %v3389 = vmax.f32 %v3261, 0.0
          %v3390 = vmax.f32 %v3262, 0.0
          %v3391 = vmax.f32 %v3263, 0.0
          %v3392 = vmax.f32 %v3264, 0.0
          %v3393 = vmax.f32 %v3265, 0.0
          %v3394 = vmax.f32 %v3266, 0.0
          %v3395 = vmax.f32 %v3267, 0.0
          %v3396 = vmax.f32 %v3268, 0.0
          %v3397 = vmax.f32 %v3269, 0.0
          %v3398 = vmax.f32 %v3270, 0.0
          %v3399 = vmax.f32 %v3271, 0.0
          %v3400 = vmax.f32 %v3272, 0.0
          %v3401 = vmax.f32 %v3273, 0.0
          %v3402 = vmax.f32 %v3274, 0.0
          %v3403 = vmax.f32 %v3275, 0.0
          %v3404 = vmax.f32 %v3276, 0.0
          %v3405 = vmax.f32 %v3277, 0.0
          %v3406 = vmax.f32 %v3278, 0.0
          %v3407 = vmax.f32 %v3279, 0.0
          %v3408 = vmax.f32 %v3280, 0.0
          %v3409 = vmax.f32 %v3281, 0.0
          %v3410 = vmax.f32 %v3282, 0.0
          %v3411 = vmax.f32 %v3283, 0.0
          %v3412 = vmax.f32 %v3284, 0.0
          %v3413 = vmax.f32 %v3285, 0.0
          %v3414 = vmax.f32 %v3286, 0.0
          %v3415 = vmax.f32 %v3287, 0.0
          %v3416 = vmax.f32 %v3288, 0.0
          %v3417 = vmax.f32 %v3289, 0.0
          %v3418 = vmax.f32 %v3290, 0.0
          %v3419 = vmax.f32 %v3291, 0.0
          %v3420 = vmax.f32 %v3292, 0.0
          %v3421 = vmax.f32 %v3293, 0.0
          %v3422 = vmax.f32 %v3294, 0.0
          %v3423 = vmax.f32 %v3295, 0.0
          %v3424 = vmax.f32 %v3296, 0.0
          %v3425 = vmax.f32 %v3297, 0.0
          %v3426 = vmax.f32 %v3298, 0.0
          %v3427 = vmax.f32 %v3299, 0.0
          %v3428 = vmax.f32 %v3300, 0.0
          %v3429 = vmax.f32 %v3301, 0.0
          %v3430 = vmax.f32 %v3302, 0.0
          %v3431 = vmax.f32 %v3303, 0.0
          %v3432 = vmax.f32 %v3304, 0.0
          %v3433 = vmax.f32 %v3305, 0.0
          %v3434 = vmax.f32 %v3306, 0.0
          %v3435 = vmax.f32 %v3307, 0.0
          %v3436 = vmax.f32 %v3308, 0.0
          %v3437 = vmax.f32 %v3309, 0.0
          %v3438 = vmax.f32 %v3310, 0.0
          %v3439 = vmax.f32 %v3311, 0.0
          %v3440 = vmax.f32 %v3312, 0.0
          %v3441 = vmax.f32 %v3313, 0.0
          %v3442 = vmax.f32 %v3314, 0.0
          %v3443 = vmax.f32 %v3315, 0.0
          %v3444 = vmax.f32 %v3316, 0.0
          %v3445 = vmax.f32 %v3317, 0.0
          %v3446 = vmax.f32 %v3318, 0.0
          %v3447 = vmax.f32 %v3319, 0.0
          %v3448 = vmax.f32 %v3320, 0.0
          %v3449 = vmax.f32 %v3321, 0.0
          %v3450 = vmax.f32 %v3322, 0.0
          %v3451 = vmax.f32 %v3323, 0.0
          %v3452 = vmax.f32 %v3324, 0.0
          %v3453 = vmax.f32 %v3325, 0.0
          %v3454 = vmax.f32 %v3326, 0.0
          %v3455 = vmax.f32 %v3327, 0.0
          %v3456 = vmax.f32 %v3328, 0.0
          %v3457 = vmax.f32 %v3329, 0.0
          %v3458 = vmax.f32 %v3330, 0.0
          %v3459 = vmax.f32 %v3331, 0.0
          %v3460 = vmax.f32 %v3332, 0.0
          %v3461 = vmax.f32 %v3333, 0.0
          %v3462 = vmax.f32 %v3334, 0.0
          %v3463 = vmax.f32 %v3335, 0.0
          %v3464 = vmax.f32 %v3336, 0.0
          %v3465 = vmax.f32 %v3337, 0.0
          %v3466 = vmax.f32 %v3338, 0.0
          %v3467 = vmax.f32 %v3339, 0.0
          %v3468 = vmax.f32 %v3340, 0.0
          %v3469 = vmax.f32 %v3341, 0.0
          %v3470 = vmax.f32 %v3342, 0.0
          %v3471 = vmax.f32 %v3343, 0.0
          %v3472 = vmax.f32 %v3344, 0.0
          %v3473 = vmax.f32 %v3345, 0.0
          %v3474 = vmax.f32 %v3346, 0.0
          %v3475 = vmax.f32 %v3347, 0.0
          %v3476 = vmax.f32 %v3348, 0.0
          %v3477 = vmax.f32 %v3349, 0.0
          %v3478 = vmax.f32 %v3350, 0.0
          %v3479 = vmax.f32 %v3351, 0.0
          %v3480 = vmax.f32 %v3352, 0.0
          %v3481 = vmax.f32 %v3353, 0.0
          %v3482 = vmax.f32 %v3354, 0.0
          %vm3483 = vcmask 7168
          %3484 = vst.msk [vmem:[%s346] sm:$0xff] %vm3483, %v3355
          %3485 = vst.msk [vmem:[%s346 + $0x8] sm:$0xff] %vm3483, %v3356
          %3486 = vst.msk [vmem:[%s346 + $0x10] sm:$0xff] %vm3483, %v3357
          %3487 = vst.msk [vmem:[%s346 + $0x18] sm:$0xff] %vm3483, %v3358
          %3488 = vst.msk [vmem:[%s346 + $0x20] sm:$0xff] %vm3483, %v3359
          %3489 = vst.msk [vmem:[%s346 + $0x28] sm:$0xff] %vm3483, %v3360
          %3490 = vst.msk [vmem:[%s346 + $0x30] sm:$0xff] %vm3483, %v3361
          %3491 = vst.msk [vmem:[%s346 + $0x38] sm:$0xff] %vm3483, %v3362
          %3492 = vst.msk [vmem:[%s346 + $0x40] sm:$0xff] %vm3483, %v3363
          %3493 = vst.msk [vmem:[%s346 + $0x48] sm:$0xff] %vm3483, %v3364
          %3494 = vst.msk [vmem:[%s346 + $0x50] sm:$0xff] %vm3483, %v3365
          %3495 = vst.msk [vmem:[%s346 + $0x58] sm:$0xff] %vm3483, %v3366
          %3496 = vst.msk [vmem:[%s346 + $0x60] sm:$0xff] %vm3483, %v3367
          %3497 = vst.msk [vmem:[%s346 + $0x68] sm:$0xff] %vm3483, %v3368
          %3498 = vst.msk [vmem:[%s346 + $0x70] sm:$0xff] %vm3483, %v3369
          %3499 = vst.msk [vmem:[%s346 + $0x78] sm:$0xff] %vm3483, %v3370
          %3500 = vst.msk [vmem:[%s346 + $0x80] sm:$0xff] %vm3483, %v3371
          %3501 = vst.msk [vmem:[%s346 + $0x88] sm:$0xff] %vm3483, %v3372
          %3502 = vst.msk [vmem:[%s346 + $0x90] sm:$0xff] %vm3483, %v3373
          %3503 = vst.msk [vmem:[%s346 + $0x98] sm:$0xff] %vm3483, %v3374
          %3504 = vst.msk [vmem:[%s346 + $0xa0] sm:$0xff] %vm3483, %v3375
          %3505 = vst.msk [vmem:[%s346 + $0xa8] sm:$0xff] %vm3483, %v3376
          %3506 = vst.msk [vmem:[%s346 + $0xb0] sm:$0xff] %vm3483, %v3377
          %3507 = vst.msk [vmem:[%s346 + $0xb8] sm:$0xff] %vm3483, %v3378
          %3508 = vst.msk [vmem:[%s346 + $0xc0] sm:$0xff] %vm3483, %v3379
          %3509 = vst.msk [vmem:[%s346 + $0xc8] sm:$0xff] %vm3483, %v3380
          %3510 = vst.msk [vmem:[%s346 + $0xd0] sm:$0xff] %vm3483, %v3381
          %3511 = vst.msk [vmem:[%s346 + $0xd8] sm:$0xff] %vm3483, %v3382
          %3512 = vst.msk [vmem:[%s346 + $0xe0] sm:$0xff] %vm3483, %v3383
          %3513 = vst.msk [vmem:[%s346 + $0xe8] sm:$0xff] %vm3483, %v3384
          %3514 = vst.msk [vmem:[%s346 + $0xf0] sm:$0xff] %vm3483, %v3385
          %3515 = vst.msk [vmem:[%s346 + $0xf8] sm:$0xff] %vm3483, %v3386
          %3516 = vst.msk [vmem:[%s346 + $0x100] sm:$0xff] %vm3483, %v3387
          %3517 = vst.msk [vmem:[%s346 + $0x108] sm:$0xff] %vm3483, %v3388
          %3518 = vst.msk [vmem:[%s346 + $0x110] sm:$0xff] %vm3483, %v3389
          %3519 = vst.msk [vmem:[%s346 + $0x118] sm:$0xff] %vm3483, %v3390
          %3520 = vst.msk [vmem:[%s346 + $0x120] sm:$0xff] %vm3483, %v3391
          %3521 = vst.msk [vmem:[%s346 + $0x128] sm:$0xff] %vm3483, %v3392
          %3522 = vst.msk [vmem:[%s346 + $0x130] sm:$0xff] %vm3483, %v3393
          %3523 = vst.msk [vmem:[%s346 + $0x138] sm:$0xff] %vm3483, %v3394
          %3524 = vst.msk [vmem:[%s346 + $0x140] sm:$0xff] %vm3483, %v3395
          %3525 = vst.msk [vmem:[%s346 + $0x148] sm:$0xff] %vm3483, %v3396
          %3526 = vst.msk [vmem:[%s346 + $0x150] sm:$0xff] %vm3483, %v3397
          %3527 = vst.msk [vmem:[%s346 + $0x158] sm:$0xff] %vm3483, %v3398
          %3528 = vst.msk [vmem:[%s346 + $0x160] sm:$0xff] %vm3483, %v3399
          %3529 = vst.msk [vmem:[%s346 + $0x168] sm:$0xff] %vm3483, %v3400
          %3530 = vst.msk [vmem:[%s346 + $0x170] sm:$0xff] %vm3483, %v3401
          %3531 = vst.msk [vmem:[%s346 + $0x178] sm:$0xff] %vm3483, %v3402
          %3532 = vst.msk [vmem:[%s346 + $0x180] sm:$0xff] %vm3483, %v3403
          %3533 = vst.msk [vmem:[%s346 + $0x188] sm:$0xff] %vm3483, %v3404
          %3534 = vst.msk [vmem:[%s346 + $0x190] sm:$0xff] %vm3483, %v3405
          %3535 = vst.msk [vmem:[%s346 + $0x198] sm:$0xff] %vm3483, %v3406
          %3536 = vst.msk [vmem:[%s346 + $0x1a0] sm:$0xff] %vm3483, %v3407
          %3537 = vst.msk [vmem:[%s346 + $0x1a8] sm:$0xff] %vm3483, %v3408
          %3538 = vst.msk [vmem:[%s346 + $0x1b0] sm:$0xff] %vm3483, %v3409
          %3539 = vst.msk [vmem:[%s346 + $0x1b8] sm:$0xff] %vm3483, %v3410
          %3540 = vst.msk [vmem:[%s346 + $0x1c0] sm:$0xff] %vm3483, %v3411
          %3541 = vst.msk [vmem:[%s346 + $0x1c8] sm:$0xff] %vm3483, %v3412
          %3542 = vst.msk [vmem:[%s346 + $0x1d0] sm:$0xff] %vm3483, %v3413
          %3543 = vst.msk [vmem:[%s346 + $0x1d8] sm:$0xff] %vm3483, %v3414
          %3544 = vst.msk [vmem:[%s346 + $0x1e0] sm:$0xff] %vm3483, %v3415
          %3545 = vst.msk [vmem:[%s346 + $0x1e8] sm:$0xff] %vm3483, %v3416
          %3546 = vst.msk [vmem:[%s346 + $0x1f0] sm:$0xff] %vm3483, %v3417
          %3547 = vst.msk [vmem:[%s346 + $0x1f8] sm:$0xff] %vm3483, %v3418
          %3548 = vst.msk [vmem:[%s346 + $0x200] sm:$0xff] %vm3483, %v3419
          %3549 = vst.msk [vmem:[%s346 + $0x208] sm:$0xff] %vm3483, %v3420
          %3550 = vst.msk [vmem:[%s346 + $0x210] sm:$0xff] %vm3483, %v3421
          %3551 = vst.msk [vmem:[%s346 + $0x218] sm:$0xff] %vm3483, %v3422
          %3552 = vst.msk [vmem:[%s346 + $0x220] sm:$0xff] %vm3483, %v3423
          %3553 = vst.msk [vmem:[%s346 + $0x228] sm:$0xff] %vm3483, %v3424
          %3554 = vst.msk [vmem:[%s346 + $0x230] sm:$0xff] %vm3483, %v3425
          %3555 = vst.msk [vmem:[%s346 + $0x238] sm:$0xff] %vm3483, %v3426
          %3556 = vst.msk [vmem:[%s346 + $0x240] sm:$0xff] %vm3483, %v3427
          %3557 = vst.msk [vmem:[%s346 + $0x248] sm:$0xff] %vm3483, %v3428
          %3558 = vst.msk [vmem:[%s346 + $0x250] sm:$0xff] %vm3483, %v3429
          %3559 = vst.msk [vmem:[%s346 + $0x258] sm:$0xff] %vm3483, %v3430
          %3560 = vst.msk [vmem:[%s346 + $0x260] sm:$0xff] %vm3483, %v3431
          %3561 = vst.msk [vmem:[%s346 + $0x268] sm:$0xff] %vm3483, %v3432
          %3562 = vst.msk [vmem:[%s346 + $0x270] sm:$0xff] %vm3483, %v3433
          %3563 = vst.msk [vmem:[%s346 + $0x278] sm:$0xff] %vm3483, %v3434
          %3564 = vst.msk [vmem:[%s346 + $0x280] sm:$0xff] %vm3483, %v3435
          %3565 = vst.msk [vmem:[%s346 + $0x288] sm:$0xff] %vm3483, %v3436
          %3566 = vst.msk [vmem:[%s346 + $0x290] sm:$0xff] %vm3483, %v3437
          %3567 = vst.msk [vmem:[%s346 + $0x298] sm:$0xff] %vm3483, %v3438
          %3568 = vst.msk [vmem:[%s346 + $0x2a0] sm:$0xff] %vm3483, %v3439
          %3569 = vst.msk [vmem:[%s346 + $0x2a8] sm:$0xff] %vm3483, %v3440
          %3570 = vst.msk [vmem:[%s346 + $0x2b0] sm:$0xff] %vm3483, %v3441
          %3571 = vst.msk [vmem:[%s346 + $0x2b8] sm:$0xff] %vm3483, %v3442
          %3572 = vst.msk [vmem:[%s346 + $0x2c0] sm:$0xff] %vm3483, %v3443
          %3573 = vst.msk [vmem:[%s346 + $0x2c8] sm:$0xff] %vm3483, %v3444
          %3574 = vst.msk [vmem:[%s346 + $0x2d0] sm:$0xff] %vm3483, %v3445
          %3575 = vst.msk [vmem:[%s346 + $0x2d8] sm:$0xff] %vm3483, %v3446
          %3576 = vst.msk [vmem:[%s346 + $0x2e0] sm:$0xff] %vm3483, %v3447
          %3577 = vst.msk [vmem:[%s346 + $0x2e8] sm:$0xff] %vm3483, %v3448
          %3578 = vst.msk [vmem:[%s346 + $0x2f0] sm:$0xff] %vm3483, %v3449
          %3579 = vst.msk [vmem:[%s346 + $0x2f8] sm:$0xff] %vm3483, %v3450
          %3580 = vst.msk [vmem:[%s346 + $0x300] sm:$0xff] %vm3483, %v3451
          %3581 = vst.msk [vmem:[%s346 + $0x308] sm:$0xff] %vm3483, %v3452
          %3582 = vst.msk [vmem:[%s346 + $0x310] sm:$0xff] %vm3483, %v3453
          %3583 = vst.msk [vmem:[%s346 + $0x318] sm:$0xff] %vm3483, %v3454
          %3584 = vst.msk [vmem:[%s346 + $0x320] sm:$0xff] %vm3483, %v3455
          %3585 = vst.msk [vmem:[%s346 + $0x328] sm:$0xff] %vm3483, %v3456
          %3586 = vst.msk [vmem:[%s346 + $0x330] sm:$0xff] %vm3483, %v3457
          %3587 = vst.msk [vmem:[%s346 + $0x338] sm:$0xff] %vm3483, %v3458
          %3588 = vst.msk [vmem:[%s346 + $0x340] sm:$0xff] %vm3483, %v3459
          %3589 = vst.msk [vmem:[%s346 + $0x348] sm:$0xff] %vm3483, %v3460
          %3590 = vst.msk [vmem:[%s346 + $0x350] sm:$0xff] %vm3483, %v3461
          %3591 = vst.msk [vmem:[%s346 + $0x358] sm:$0xff] %vm3483, %v3462
          %3592 = vst.msk [vmem:[%s346 + $0x360] sm:$0xff] %vm3483, %v3463
          %3593 = vst.msk [vmem:[%s346 + $0x368] sm:$0xff] %vm3483, %v3464
          %3594 = vst.msk [vmem:[%s346 + $0x370] sm:$0xff] %vm3483, %v3465
          %3595 = vst.msk [vmem:[%s346 + $0x378] sm:$0xff] %vm3483, %v3466
          %3596 = vst.msk [vmem:[%s346 + $0x380] sm:$0xff] %vm3483, %v3467
          %3597 = vst.msk [vmem:[%s346 + $0x388] sm:$0xff] %vm3483, %v3468
          %3598 = vst.msk [vmem:[%s346 + $0x390] sm:$0xff] %vm3483, %v3469
          %3599 = vst.msk [vmem:[%s346 + $0x398] sm:$0xff] %vm3483, %v3470
          %3600 = vst.msk [vmem:[%s346 + $0x3a0] sm:$0xff] %vm3483, %v3471
          %3601 = vst.msk [vmem:[%s346 + $0x3a8] sm:$0xff] %vm3483, %v3472
          %3602 = vst.msk [vmem:[%s346 + $0x3b0] sm:$0xff] %vm3483, %v3473
          %3603 = vst.msk [vmem:[%s346 + $0x3b8] sm:$0xff] %vm3483, %v3474
          %3604 = vst.msk [vmem:[%s346 + $0x3c0] sm:$0xff] %vm3483, %v3475
          %3605 = vst.msk [vmem:[%s346 + $0x3c8] sm:$0xff] %vm3483, %v3476
          %3606 = vst.msk [vmem:[%s346 + $0x3d0] sm:$0xff] %vm3483, %v3477
          %3607 = vst.msk [vmem:[%s346 + $0x3d8] sm:$0xff] %vm3483, %v3478
          %3608 = vst.msk [vmem:[%s346 + $0x3e0] sm:$0xff] %vm3483, %v3479
          %3609 = vst.msk [vmem:[%s346 + $0x3e8] sm:$0xff] %vm3483, %v3480
          %3610 = vst.msk [vmem:[%s346 + $0x3f0] sm:$0xff] %vm3483, %v3481
          %3611 = vst.msk [vmem:[%s346 + $0x3f8] sm:$0xff] %vm3483, %v3482
        $region83: #{stnkd_forward.2} parent=66 // pred_fallthru
          _
        %p3612 = scmp.lt.s32.totalorder %s23, 0
        %s3613 = scalar_select %p3612, %s23, 0
        %p3614 = scmp.lt.s32.totalorder %s24, 1
        %s3615 = scalar_select %p3614, %s24, 1
        %s3616 = smul.addr %s3615, 128
        %s3617 = smul.addr %s3613, 256
        %s3618 = sadd.s32 %s3616, %s3617
        %s3619 = smul.addr %s3618, 8
        %s3620 = scalar_lea.vmem %s7, %s3619
        // Predicated region
        $region84: #{stnkd_forward.2} parent=66 // pred_check
          %p3621 = pneg %p215
        $region85: #{stnkd_forward.2} parent=66 // pred_check_branch
          %3623 = sbr.rel (%p3621) target = $region87
        $region86: #{stnkd_forward.2} parent=66 // pred_region
          _
        $region87: #{stnkd_forward.2} parent=66 // pred_fallthru
          _
      $region67: #{stnkd_forward.2} parent=5 // pred_fallthru
        _
      %p3624 = scmp.le.s32.totalorder 2, %s13
      // Predicated region
      $region88: #{stnkd_forward.2} parent=5 // pred_check
        %p3625 = pneg %p3624
      $region89: #{stnkd_forward.2} parent=5 // pred_check_branch
        %3627 = sbr.rel (%p3625) target = $region91
      $region90: #{stnkd_forward.2} parent=5 // pred_region
        %s3628 = ssub.s32 %s13, 2
        // Predicated region
        $region92: #{stnkd_forward.2} parent=90 // pred_check
          %p3629 = pneg %p221
        $region93: #{stnkd_forward.2} parent=90 // pred_check_branch
          %3631 = sbr.rel (%p3629) target = $region95
        $region94: #{stnkd_forward.2} parent=90 // pred_region
          %p3632 = scmp.lt.s32.totalorder %s26, 0
          %s3633 = scalar_select %p3632, %s26, 0
          %p3634 = scmp.lt.s32.totalorder %s27, 1
          %s3635 = scalar_select %p3634, %s27, 1
          %s3636 = smul.addr %s3635, 128
          %s3637 = smul.addr %s3633, 256
          %s3638 = sadd.s32 %s3636, %s3637
          %s3639 = smul.addr %s3638, 8
          %s3640 = scalar_lea.vmem %s7, %s3639
        $region95: #{stnkd_forward.2} parent=90 // pred_fallthru
          _
      $region91: #{stnkd_forward.2} parent=5 // pred_fallthru
        _
    $region6: #{stnkd_forward.2} parent=1 // loop_footer
      %s17 = sadd.s32 1, %s13
    $region7: #{stnkd_forward.2} parent=1 // loop_footer_branch
      %12 = sbr.rel target = $region3
    $region8: #{stnkd_forward.2} parent=1 // loop_exit
      _

// kernel: stnkd_forward.3
$region0: #{stnkd_forward.3}
  #allocation0 [shape = 'u32[]', space=smem, size = 0x4, offset = 0x4, fixed_abs, tag = 'smem constant byte address 0x4 - core index']
  #allocation1 [shape = 'u32[144,128]{1,0:T(1,128)}', space=vmem, size = 0x12000, scoped, tag = 'internal scratch']
  %s0 = inlined_call_operand.vmem [shape: f32[2,1024], index: 0, kind: input, shape index: {}]
  %s1 = inlined_call_operand.vmem [shape: f32[1024,512], index: 1, kind: input, shape index: {}]
  %s2 = inlined_call_operand.vmem [shape: f32[1,512], index: 2, kind: input, shape index: {}]
  %s3 = inlined_call_operand.vmem [shape: f32[512,256], index: 3, kind: input, shape index: {}]
  %s4 = inlined_call_operand.vmem [shape: f32[1,256], index: 4, kind: input, shape index: {}]
  %s5 = inlined_call_operand.vmem [shape: f32[256,256], index: 5, kind: input, shape index: {}]
  %s6 = inlined_call_operand.vmem [shape: f32[1,256], index: 6, kind: input, shape index: {}]
  %s7 = inlined_call_operand.vmem [shape: f32[2,256], index: 7, kind: output, shape index: {}]
  %s8 = sld [smem:[#allocation0]]
  $region38: #{stnkd_forward.3} parent=0
    _
  %s10 = ssub.s32 1, %s8
  %s11 = scalar_select 0, %s10, %s8
  // Predicated region
  $region2: #{stnkd_forward.3} parent=0 // pred_check
    _
  $region3: #{stnkd_forward.3} parent=0 // pred_check_branch
    %13 = sbr.rel (0) target = $region5
  $region4: #{stnkd_forward.3} parent=0 // pred_region
    _
  $region5: #{stnkd_forward.3} parent=0 // pred_fallthru
    _
  // Predicated region
  $region6: #{stnkd_forward.3} parent=0 // pred_check
    _
  $region7: #{stnkd_forward.3} parent=0 // pred_check_branch
    %15 = sbr.rel (0) target = $region9
  $region8: #{stnkd_forward.3} parent=0 // pred_region
    _
  $region9: #{stnkd_forward.3} parent=0 // pred_fallthru
    _
  // Predicated region
  $region10: #{stnkd_forward.3} parent=0 // pred_check
    _
  $region11: #{stnkd_forward.3} parent=0 // pred_check_branch
    %17 = sbr.rel (0) target = $region13
  $region12: #{stnkd_forward.3} parent=0 // pred_region
    _
  $region13: #{stnkd_forward.3} parent=0 // pred_fallthru
    _
  // Predicated region
  $region14: #{stnkd_forward.3} parent=0 // pred_check
    _
  $region15: #{stnkd_forward.3} parent=0 // pred_check_branch
    %19 = sbr.rel (0) target = $region17
  $region16: #{stnkd_forward.3} parent=0 // pred_region
    _
  $region17: #{stnkd_forward.3} parent=0 // pred_fallthru
    _
  // Predicated region
  $region18: #{stnkd_forward.3} parent=0 // pred_check
    _
  $region19: #{stnkd_forward.3} parent=0 // pred_check_branch
    %21 = sbr.rel (0) target = $region21
  $region20: #{stnkd_forward.3} parent=0 // pred_region
    _
  $region21: #{stnkd_forward.3} parent=0 // pred_fallthru
    _
  // Predicated region
  $region22: #{stnkd_forward.3} parent=0 // pred_check
    _
  $region23: #{stnkd_forward.3} parent=0 // pred_check_branch
    %23 = sbr.rel (0) target = $region25
  $region24: #{stnkd_forward.3} parent=0 // pred_region
    _
  $region25: #{stnkd_forward.3} parent=0 // pred_fallthru
    _
  // Predicated region
  $region26: #{stnkd_forward.3} parent=0 // pred_check
    _
  $region27: #{stnkd_forward.3} parent=0 // pred_check_branch
    %25 = sbr.rel (0) target = $region29
  $region28: #{stnkd_forward.3} parent=0 // pred_region
    _
  $region29: #{stnkd_forward.3} parent=0 // pred_fallthru
    _
  %v26 = vld [vmem:[%s0] sm:$0xff]
  %v27 = vld [vmem:[%s0 + $0x8] sm:$0xff]
  %v28 = vld [vmem:[%s1] sm:$0xff]
  %v29 = vld [vmem:[%s1 + $0x8] sm:$0xff]
  %v30 = vld [vmem:[%s1 + $0x10] sm:$0xff]
  %v31 = vld [vmem:[%s1 + $0x18] sm:$0xff]
  %v32 = vld [vmem:[%s1 + $0x20] sm:$0xff]
  %v33 = vld [vmem:[%s1 + $0x28] sm:$0xff]
  %v34 = vld [vmem:[%s1 + $0x30] sm:$0xff]
  %v35 = vld [vmem:[%s1 + $0x38] sm:$0xff]
  %v36 = vld [vmem:[%s1 + $0x40] sm:$0xff]
  %v37 = vld [vmem:[%s1 + $0x48] sm:$0xff]
  %v38 = vld [vmem:[%s1 + $0x50] sm:$0xff]
  %v39 = vld [vmem:[%s1 + $0x58] sm:$0xff]
  %v40 = vld [vmem:[%s1 + $0x60] sm:$0xff]
  %v41 = vld [vmem:[%s1 + $0x68] sm:$0xff]
  %v42 = vld [vmem:[%s1 + $0x70] sm:$0xff]
  %v43 = vld [vmem:[%s1 + $0x78] sm:$0xff]
  %v44 = vld [vmem:[%s1 + $0x80] sm:$0xff]
  %v45 = vld [vmem:[%s1 + $0x88] sm:$0xff]
  %v46 = vld [vmem:[%s1 + $0x90] sm:$0xff]
  %v47 = vld [vmem:[%s1 + $0x98] sm:$0xff]
  %v48 = vld [vmem:[%s1 + $0xa0] sm:$0xff]
  %v49 = vld [vmem:[%s1 + $0xa8] sm:$0xff]
  %v50 = vld [vmem:[%s1 + $0xb0] sm:$0xff]
  %v51 = vld [vmem:[%s1 + $0xb8] sm:$0xff]
  %v52 = vld [vmem:[%s1 + $0xc0] sm:$0xff]
  %v53 = vld [vmem:[%s1 + $0xc8] sm:$0xff]
  %v54 = vld [vmem:[%s1 + $0xd0] sm:$0xff]
  %v55 = vld [vmem:[%s1 + $0xd8] sm:$0xff]
  %v56 = vld [vmem:[%s1 + $0xe0] sm:$0xff]
  %v57 = vld [vmem:[%s1 + $0xe8] sm:$0xff]
  %v58 = vld [vmem:[%s1 + $0xf0] sm:$0xff]
  %v59 = vld [vmem:[%s1 + $0xf8] sm:$0xff]
  %v60 = vld [vmem:[%s1 + $0x100] sm:$0xff]
  %v61 = vld [vmem:[%s1 + $0x108] sm:$0xff]
  %v62 = vld [vmem:[%s1 + $0x110] sm:$0xff]
  %v63 = vld [vmem:[%s1 + $0x118] sm:$0xff]
  %v64 = vld [vmem:[%s1 + $0x120] sm:$0xff]
  %v65 = vld [vmem:[%s1 + $0x128] sm:$0xff]
  %v66 = vld [vmem:[%s1 + $0x130] sm:$0xff]
  %v67 = vld [vmem:[%s1 + $0x138] sm:$0xff]
  %v68 = vld [vmem:[%s1 + $0x140] sm:$0xff]
  %v69 = vld [vmem:[%s1 + $0x148] sm:$0xff]
  %v70 = vld [vmem:[%s1 + $0x150] sm:$0xff]
  %v71 = vld [vmem:[%s1 + $0x158] sm:$0xff]
  %v72 = vld [vmem:[%s1 + $0x160] sm:$0xff]
  %v73 = vld [vmem:[%s1 + $0x168] sm:$0xff]
  %v74 = vld [vmem:[%s1 + $0x170] sm:$0xff]
  %v75 = vld [vmem:[%s1 + $0x178] sm:$0xff]
  %v76 = vld [vmem:[%s1 + $0x180] sm:$0xff]
  %v77 = vld [vmem:[%s1 + $0x188] sm:$0xff]
  %v78 = vld [vmem:[%s1 + $0x190] sm:$0xff]
  %v79 = vld [vmem:[%s1 + $0x198] sm:$0xff]
  %v80 = vld [vmem:[%s1 + $0x1a0] sm:$0xff]
  %v81 = vld [vmem:[%s1 + $0x1a8] sm:$0xff]
  %v82 = vld [vmem:[%s1 + $0x1b0] sm:$0xff]
  %v83 = vld [vmem:[%s1 + $0x1b8] sm:$0xff]
  %v84 = vld [vmem:[%s1 + $0x1c0] sm:$0xff]
  %v85 = vld [vmem:[%s1 + $0x1c8] sm:$0xff]
  %v86 = vld [vmem:[%s1 + $0x1d0] sm:$0xff]
  %v87 = vld [vmem:[%s1 + $0x1d8] sm:$0xff]
  %v88 = vld [vmem:[%s1 + $0x1e0] sm:$0xff]
  %v89 = vld [vmem:[%s1 + $0x1e8] sm:$0xff]
  %v90 = vld [vmem:[%s1 + $0x1f0] sm:$0xff]
  %v91 = vld [vmem:[%s1 + $0x1f8] sm:$0xff]
  %v92 = vld [vmem:[%s1 + $0x200] sm:$0xff]
  %v93 = vld [vmem:[%s1 + $0x208] sm:$0xff]
  %v94 = vld [vmem:[%s1 + $0x210] sm:$0xff]
  %v95 = vld [vmem:[%s1 + $0x218] sm:$0xff]
  %v96 = vld [vmem:[%s1 + $0x220] sm:$0xff]
  %v97 = vld [vmem:[%s1 + $0x228] sm:$0xff]
  %v98 = vld [vmem:[%s1 + $0x230] sm:$0xff]
  %v99 = vld [vmem:[%s1 + $0x238] sm:$0xff]
  %v100 = vld [vmem:[%s1 + $0x240] sm:$0xff]
  %v101 = vld [vmem:[%s1 + $0x248] sm:$0xff]
  %v102 = vld [vmem:[%s1 + $0x250] sm:$0xff]
  %v103 = vld [vmem:[%s1 + $0x258] sm:$0xff]
  %v104 = vld [vmem:[%s1 + $0x260] sm:$0xff]
  %v105 = vld [vmem:[%s1 + $0x268] sm:$0xff]
  %v106 = vld [vmem:[%s1 + $0x270] sm:$0xff]
  %v107 = vld [vmem:[%s1 + $0x278] sm:$0xff]
  %v108 = vld [vmem:[%s1 + $0x280] sm:$0xff]
  %v109 = vld [vmem:[%s1 + $0x288] sm:$0xff]
  %v110 = vld [vmem:[%s1 + $0x290] sm:$0xff]
  %v111 = vld [vmem:[%s1 + $0x298] sm:$0xff]
  %v112 = vld [vmem:[%s1 + $0x2a0] sm:$0xff]
  %v113 = vld [vmem:[%s1 + $0x2a8] sm:$0xff]
  %v114 = vld [vmem:[%s1 + $0x2b0] sm:$0xff]
  %v115 = vld [vmem:[%s1 + $0x2b8] sm:$0xff]
  %v116 = vld [vmem:[%s1 + $0x2c0] sm:$0xff]
  %v117 = vld [vmem:[%s1 + $0x2c8] sm:$0xff]
  %v118 = vld [vmem:[%s1 + $0x2d0] sm:$0xff]
  %v119 = vld [vmem:[%s1 + $0x2d8] sm:$0xff]
  %v120 = vld [vmem:[%s1 + $0x2e0] sm:$0xff]
  %v121 = vld [vmem:[%s1 + $0x2e8] sm:$0xff]
  %v122 = vld [vmem:[%s1 + $0x2f0] sm:$0xff]
  %v123 = vld [vmem:[%s1 + $0x2f8] sm:$0xff]
  %v124 = vld [vmem:[%s1 + $0x300] sm:$0xff]
  %v125 = vld [vmem:[%s1 + $0x308] sm:$0xff]
  %v126 = vld [vmem:[%s1 + $0x310] sm:$0xff]
  %v127 = vld [vmem:[%s1 + $0x318] sm:$0xff]
  %v128 = vld [vmem:[%s1 + $0x320] sm:$0xff]
  %v129 = vld [vmem:[%s1 + $0x328] sm:$0xff]
  %v130 = vld [vmem:[%s1 + $0x330] sm:$0xff]
  %v131 = vld [vmem:[%s1 + $0x338] sm:$0xff]
  %v132 = vld [vmem:[%s1 + $0x340] sm:$0xff]
  %v133 = vld [vmem:[%s1 + $0x348] sm:$0xff]
  %v134 = vld [vmem:[%s1 + $0x350] sm:$0xff]
  %v135 = vld [vmem:[%s1 + $0x358] sm:$0xff]
  %v136 = vld [vmem:[%s1 + $0x360] sm:$0xff]
  %v137 = vld [vmem:[%s1 + $0x368] sm:$0xff]
  %v138 = vld [vmem:[%s1 + $0x370] sm:$0xff]
  %v139 = vld [vmem:[%s1 + $0x378] sm:$0xff]
  %v140 = vld [vmem:[%s1 + $0x380] sm:$0xff]
  %v141 = vld [vmem:[%s1 + $0x388] sm:$0xff]
  %v142 = vld [vmem:[%s1 + $0x390] sm:$0xff]
  %v143 = vld [vmem:[%s1 + $0x398] sm:$0xff]
  %v144 = vld [vmem:[%s1 + $0x3a0] sm:$0xff]
  %v145 = vld [vmem:[%s1 + $0x3a8] sm:$0xff]
  %v146 = vld [vmem:[%s1 + $0x3b0] sm:$0xff]
  %v147 = vld [vmem:[%s1 + $0x3b8] sm:$0xff]
  %v148 = vld [vmem:[%s1 + $0x3c0] sm:$0xff]
  %v149 = vld [vmem:[%s1 + $0x3c8] sm:$0xff]
  %v150 = vld [vmem:[%s1 + $0x3d0] sm:$0xff]
  %v151 = vld [vmem:[%s1 + $0x3d8] sm:$0xff]
  %v152 = vld [vmem:[%s1 + $0x3e0] sm:$0xff]
  %v153 = vld [vmem:[%s1 + $0x3e8] sm:$0xff]
  %v154 = vld [vmem:[%s1 + $0x3f0] sm:$0xff]
  %v155 = vld [vmem:[%s1 + $0x3f8] sm:$0xff]
  %v156 = vld [vmem:[%s1 + $0x400] sm:$0xff]
  %v157 = vld [vmem:[%s1 + $0x408] sm:$0xff]
  %v158 = vld [vmem:[%s1 + $0x410] sm:$0xff]
  %v159 = vld [vmem:[%s1 + $0x418] sm:$0xff]
  %v160 = vld [vmem:[%s1 + $0x420] sm:$0xff]
  %v161 = vld [vmem:[%s1 + $0x428] sm:$0xff]
  %v162 = vld [vmem:[%s1 + $0x430] sm:$0xff]
  %v163 = vld [vmem:[%s1 + $0x438] sm:$0xff]
  %v164 = vld [vmem:[%s1 + $0x440] sm:$0xff]
  %v165 = vld [vmem:[%s1 + $0x448] sm:$0xff]
  %v166 = vld [vmem:[%s1 + $0x450] sm:$0xff]
  %v167 = vld [vmem:[%s1 + $0x458] sm:$0xff]
  %v168 = vld [vmem:[%s1 + $0x460] sm:$0xff]
  %v169 = vld [vmem:[%s1 + $0x468] sm:$0xff]
  %v170 = vld [vmem:[%s1 + $0x470] sm:$0xff]
  %v171 = vld [vmem:[%s1 + $0x478] sm:$0xff]
  %v172 = vld [vmem:[%s1 + $0x480] sm:$0xff]
  %v173 = vld [vmem:[%s1 + $0x488] sm:$0xff]
  %v174 = vld [vmem:[%s1 + $0x490] sm:$0xff]
  %v175 = vld [vmem:[%s1 + $0x498] sm:$0xff]
  %v176 = vld [vmem:[%s1 + $0x4a0] sm:$0xff]
  %v177 = vld [vmem:[%s1 + $0x4a8] sm:$0xff]
  %v178 = vld [vmem:[%s1 + $0x4b0] sm:$0xff]
  %v179 = vld [vmem:[%s1 + $0x4b8] sm:$0xff]
  %v180 = vld [vmem:[%s1 + $0x4c0] sm:$0xff]
  %v181 = vld [vmem:[%s1 + $0x4c8] sm:$0xff]
  %v182 = vld [vmem:[%s1 + $0x4d0] sm:$0xff]
  %v183 = vld [vmem:[%s1 + $0x4d8] sm:$0xff]
  %v184 = vld [vmem:[%s1 + $0x4e0] sm:$0xff]
  %v185 = vld [vmem:[%s1 + $0x4e8] sm:$0xff]
  %v186 = vld [vmem:[%s1 + $0x4f0] sm:$0xff]
  %v187 = vld [vmem:[%s1 + $0x4f8] sm:$0xff]
  %v188 = vld [vmem:[%s1 + $0x500] sm:$0xff]
  %v189 = vld [vmem:[%s1 + $0x508] sm:$0xff]
  %v190 = vld [vmem:[%s1 + $0x510] sm:$0xff]
  %v191 = vld [vmem:[%s1 + $0x518] sm:$0xff]
  %v192 = vld [vmem:[%s1 + $0x520] sm:$0xff]
  %v193 = vld [vmem:[%s1 + $0x528] sm:$0xff]
  %v194 = vld [vmem:[%s1 + $0x530] sm:$0xff]
  %v195 = vld [vmem:[%s1 + $0x538] sm:$0xff]
  %v196 = vld [vmem:[%s1 + $0x540] sm:$0xff]
  %v197 = vld [vmem:[%s1 + $0x548] sm:$0xff]
  %v198 = vld [vmem:[%s1 + $0x550] sm:$0xff]
  %v199 = vld [vmem:[%s1 + $0x558] sm:$0xff]
  %v200 = vld [vmem:[%s1 + $0x560] sm:$0xff]
  %v201 = vld [vmem:[%s1 + $0x568] sm:$0xff]
  %v202 = vld [vmem:[%s1 + $0x570] sm:$0xff]
  %v203 = vld [vmem:[%s1 + $0x578] sm:$0xff]
  %v204 = vld [vmem:[%s1 + $0x580] sm:$0xff]
  %v205 = vld [vmem:[%s1 + $0x588] sm:$0xff]
  %v206 = vld [vmem:[%s1 + $0x590] sm:$0xff]
  %v207 = vld [vmem:[%s1 + $0x598] sm:$0xff]
  %v208 = vld [vmem:[%s1 + $0x5a0] sm:$0xff]
  %v209 = vld [vmem:[%s1 + $0x5a8] sm:$0xff]
  %v210 = vld [vmem:[%s1 + $0x5b0] sm:$0xff]
  %v211 = vld [vmem:[%s1 + $0x5b8] sm:$0xff]
  %v212 = vld [vmem:[%s1 + $0x5c0] sm:$0xff]
  %v213 = vld [vmem:[%s1 + $0x5c8] sm:$0xff]
  %v214 = vld [vmem:[%s1 + $0x5d0] sm:$0xff]
  %v215 = vld [vmem:[%s1 + $0x5d8] sm:$0xff]
  %v216 = vld [vmem:[%s1 + $0x5e0] sm:$0xff]
  %v217 = vld [vmem:[%s1 + $0x5e8] sm:$0xff]
  %v218 = vld [vmem:[%s1 + $0x5f0] sm:$0xff]
  %v219 = vld [vmem:[%s1 + $0x5f8] sm:$0xff]
  %v220 = vld [vmem:[%s1 + $0x600] sm:$0xff]
  %v221 = vld [vmem:[%s1 + $0x608] sm:$0xff]
  %v222 = vld [vmem:[%s1 + $0x610] sm:$0xff]
  %v223 = vld [vmem:[%s1 + $0x618] sm:$0xff]
  %v224 = vld [vmem:[%s1 + $0x620] sm:$0xff]
  %v225 = vld [vmem:[%s1 + $0x628] sm:$0xff]
  %v226 = vld [vmem:[%s1 + $0x630] sm:$0xff]
  %v227 = vld [vmem:[%s1 + $0x638] sm:$0xff]
  %v228 = vld [vmem:[%s1 + $0x640] sm:$0xff]
  %v229 = vld [vmem:[%s1 + $0x648] sm:$0xff]
  %v230 = vld [vmem:[%s1 + $0x650] sm:$0xff]
  %v231 = vld [vmem:[%s1 + $0x658] sm:$0xff]
  %v232 = vld [vmem:[%s1 + $0x660] sm:$0xff]
  %v233 = vld [vmem:[%s1 + $0x668] sm:$0xff]
  %v234 = vld [vmem:[%s1 + $0x670] sm:$0xff]
  %v235 = vld [vmem:[%s1 + $0x678] sm:$0xff]
  %v236 = vld [vmem:[%s1 + $0x680] sm:$0xff]
  %v237 = vld [vmem:[%s1 + $0x688] sm:$0xff]
  %v238 = vld [vmem:[%s1 + $0x690] sm:$0xff]
  %v239 = vld [vmem:[%s1 + $0x698] sm:$0xff]
  %v240 = vld [vmem:[%s1 + $0x6a0] sm:$0xff]
  %v241 = vld [vmem:[%s1 + $0x6a8] sm:$0xff]
  %v242 = vld [vmem:[%s1 + $0x6b0] sm:$0xff]
  %v243 = vld [vmem:[%s1 + $0x6b8] sm:$0xff]
  %v244 = vld [vmem:[%s1 + $0x6c0] sm:$0xff]
  %v245 = vld [vmem:[%s1 + $0x6c8] sm:$0xff]
  %v246 = vld [vmem:[%s1 + $0x6d0] sm:$0xff]
  %v247 = vld [vmem:[%s1 + $0x6d8] sm:$0xff]
  %v248 = vld [vmem:[%s1 + $0x6e0] sm:$0xff]
  %v249 = vld [vmem:[%s1 + $0x6e8] sm:$0xff]
  %v250 = vld [vmem:[%s1 + $0x6f0] sm:$0xff]
  %v251 = vld [vmem:[%s1 + $0x6f8] sm:$0xff]
  %v252 = vld [vmem:[%s1 + $0x700] sm:$0xff]
  %v253 = vld [vmem:[%s1 + $0x708] sm:$0xff]
  %v254 = vld [vmem:[%s1 + $0x710] sm:$0xff]
  %v255 = vld [vmem:[%s1 + $0x718] sm:$0xff]
  %v256 = vld [vmem:[%s1 + $0x720] sm:$0xff]
  %v257 = vld [vmem:[%s1 + $0x728] sm:$0xff]
  %v258 = vld [vmem:[%s1 + $0x730] sm:$0xff]
  %v259 = vld [vmem:[%s1 + $0x738] sm:$0xff]
  %v260 = vld [vmem:[%s1 + $0x740] sm:$0xff]
  %v261 = vld [vmem:[%s1 + $0x748] sm:$0xff]
  %v262 = vld [vmem:[%s1 + $0x750] sm:$0xff]
  %v263 = vld [vmem:[%s1 + $0x758] sm:$0xff]
  %v264 = vld [vmem:[%s1 + $0x760] sm:$0xff]
  %v265 = vld [vmem:[%s1 + $0x768] sm:$0xff]
  %v266 = vld [vmem:[%s1 + $0x770] sm:$0xff]
  %v267 = vld [vmem:[%s1 + $0x778] sm:$0xff]
  %v268 = vld [vmem:[%s1 + $0x780] sm:$0xff]
  %v269 = vld [vmem:[%s1 + $0x788] sm:$0xff]
  %v270 = vld [vmem:[%s1 + $0x790] sm:$0xff]
  %v271 = vld [vmem:[%s1 + $0x798] sm:$0xff]
  %v272 = vld [vmem:[%s1 + $0x7a0] sm:$0xff]
  %v273 = vld [vmem:[%s1 + $0x7a8] sm:$0xff]
  %v274 = vld [vmem:[%s1 + $0x7b0] sm:$0xff]
  %v275 = vld [vmem:[%s1 + $0x7b8] sm:$0xff]
  %v276 = vld [vmem:[%s1 + $0x7c0] sm:$0xff]
  %v277 = vld [vmem:[%s1 + $0x7c8] sm:$0xff]
  %v278 = vld [vmem:[%s1 + $0x7d0] sm:$0xff]
  %v279 = vld [vmem:[%s1 + $0x7d8] sm:$0xff]
  %v280 = vld [vmem:[%s1 + $0x7e0] sm:$0xff]
  %v281 = vld [vmem:[%s1 + $0x7e8] sm:$0xff]
  %v282 = vld [vmem:[%s1 + $0x7f0] sm:$0xff]
  %v283 = vld [vmem:[%s1 + $0x7f8] sm:$0xff]
  %v284 = vld [vmem:[%s1 + $0x800] sm:$0xff]
  %v285 = vld [vmem:[%s1 + $0x808] sm:$0xff]
  %v286 = vld [vmem:[%s1 + $0x810] sm:$0xff]
  %v287 = vld [vmem:[%s1 + $0x818] sm:$0xff]
  %v288 = vld [vmem:[%s1 + $0x820] sm:$0xff]
  %v289 = vld [vmem:[%s1 + $0x828] sm:$0xff]
  %v290 = vld [vmem:[%s1 + $0x830] sm:$0xff]
  %v291 = vld [vmem:[%s1 + $0x838] sm:$0xff]
  %v292 = vld [vmem:[%s1 + $0x840] sm:$0xff]
  %v293 = vld [vmem:[%s1 + $0x848] sm:$0xff]
  %v294 = vld [vmem:[%s1 + $0x850] sm:$0xff]
  %v295 = vld [vmem:[%s1 + $0x858] sm:$0xff]
  %v296 = vld [vmem:[%s1 + $0x860] sm:$0xff]
  %v297 = vld [vmem:[%s1 + $0x868] sm:$0xff]
  %v298 = vld [vmem:[%s1 + $0x870] sm:$0xff]
  %v299 = vld [vmem:[%s1 + $0x878] sm:$0xff]
  %v300 = vld [vmem:[%s1 + $0x880] sm:$0xff]
  %v301 = vld [vmem:[%s1 + $0x888] sm:$0xff]
  %v302 = vld [vmem:[%s1 + $0x890] sm:$0xff]
  %v303 = vld [vmem:[%s1 + $0x898] sm:$0xff]
  %v304 = vld [vmem:[%s1 + $0x8a0] sm:$0xff]
  %v305 = vld [vmem:[%s1 + $0x8a8] sm:$0xff]
  %v306 = vld [vmem:[%s1 + $0x8b0] sm:$0xff]
  %v307 = vld [vmem:[%s1 + $0x8b8] sm:$0xff]
  %v308 = vld [vmem:[%s1 + $0x8c0] sm:$0xff]
  %v309 = vld [vmem:[%s1 + $0x8c8] sm:$0xff]
  %v310 = vld [vmem:[%s1 + $0x8d0] sm:$0xff]
  %v311 = vld [vmem:[%s1 + $0x8d8] sm:$0xff]
  %v312 = vld [vmem:[%s1 + $0x8e0] sm:$0xff]
  %v313 = vld [vmem:[%s1 + $0x8e8] sm:$0xff]
  %v314 = vld [vmem:[%s1 + $0x8f0] sm:$0xff]
  %v315 = vld [vmem:[%s1 + $0x8f8] sm:$0xff]
  %v316 = vld [vmem:[%s1 + $0x900] sm:$0xff]
  %v317 = vld [vmem:[%s1 + $0x908] sm:$0xff]
  %v318 = vld [vmem:[%s1 + $0x910] sm:$0xff]
  %v319 = vld [vmem:[%s1 + $0x918] sm:$0xff]
  %v320 = vld [vmem:[%s1 + $0x920] sm:$0xff]
  %v321 = vld [vmem:[%s1 + $0x928] sm:$0xff]
  %v322 = vld [vmem:[%s1 + $0x930] sm:$0xff]
  %v323 = vld [vmem:[%s1 + $0x938] sm:$0xff]
  %v324 = vld [vmem:[%s1 + $0x940] sm:$0xff]
  %v325 = vld [vmem:[%s1 + $0x948] sm:$0xff]
  %v326 = vld [vmem:[%s1 + $0x950] sm:$0xff]
  %v327 = vld [vmem:[%s1 + $0x958] sm:$0xff]
  %v328 = vld [vmem:[%s1 + $0x960] sm:$0xff]
  %v329 = vld [vmem:[%s1 + $0x968] sm:$0xff]
  %v330 = vld [vmem:[%s1 + $0x970] sm:$0xff]
  %v331 = vld [vmem:[%s1 + $0x978] sm:$0xff]
  %v332 = vld [vmem:[%s1 + $0x980] sm:$0xff]
  %v333 = vld [vmem:[%s1 + $0x988] sm:$0xff]
  %v334 = vld [vmem:[%s1 + $0x990] sm:$0xff]
  %v335 = vld [vmem:[%s1 + $0x998] sm:$0xff]
  %v336 = vld [vmem:[%s1 + $0x9a0] sm:$0xff]
  %v337 = vld [vmem:[%s1 + $0x9a8] sm:$0xff]
  %v338 = vld [vmem:[%s1 + $0x9b0] sm:$0xff]
  %v339 = vld [vmem:[%s1 + $0x9b8] sm:$0xff]
  %v340 = vld [vmem:[%s1 + $0x9c0] sm:$0xff]
  %v341 = vld [vmem:[%s1 + $0x9c8] sm:$0xff]
  %v342 = vld [vmem:[%s1 + $0x9d0] sm:$0xff]
  %v343 = vld [vmem:[%s1 + $0x9d8] sm:$0xff]
  %v344 = vld [vmem:[%s1 + $0x9e0] sm:$0xff]
  %v345 = vld [vmem:[%s1 + $0x9e8] sm:$0xff]
  %v346 = vld [vmem:[%s1 + $0x9f0] sm:$0xff]
  %v347 = vld [vmem:[%s1 + $0x9f8] sm:$0xff]
  %v348 = vld [vmem:[%s1 + $0xa00] sm:$0xff]
  %v349 = vld [vmem:[%s1 + $0xa08] sm:$0xff]
  %v350 = vld [vmem:[%s1 + $0xa10] sm:$0xff]
  %v351 = vld [vmem:[%s1 + $0xa18] sm:$0xff]
  %v352 = vld [vmem:[%s1 + $0xa20] sm:$0xff]
  %v353 = vld [vmem:[%s1 + $0xa28] sm:$0xff]
  %v354 = vld [vmem:[%s1 + $0xa30] sm:$0xff]
  %v355 = vld [vmem:[%s1 + $0xa38] sm:$0xff]
  %v356 = vld [vmem:[%s1 + $0xa40] sm:$0xff]
  %v357 = vld [vmem:[%s1 + $0xa48] sm:$0xff]
  %v358 = vld [vmem:[%s1 + $0xa50] sm:$0xff]
  %v359 = vld [vmem:[%s1 + $0xa58] sm:$0xff]
  %v360 = vld [vmem:[%s1 + $0xa60] sm:$0xff]
  %v361 = vld [vmem:[%s1 + $0xa68] sm:$0xff]
  %v362 = vld [vmem:[%s1 + $0xa70] sm:$0xff]
  %v363 = vld [vmem:[%s1 + $0xa78] sm:$0xff]
  %v364 = vld [vmem:[%s1 + $0xa80] sm:$0xff]
  %v365 = vld [vmem:[%s1 + $0xa88] sm:$0xff]
  %v366 = vld [vmem:[%s1 + $0xa90] sm:$0xff]
  %v367 = vld [vmem:[%s1 + $0xa98] sm:$0xff]
  %v368 = vld [vmem:[%s1 + $0xaa0] sm:$0xff]
  %v369 = vld [vmem:[%s1 + $0xaa8] sm:$0xff]
  %v370 = vld [vmem:[%s1 + $0xab0] sm:$0xff]
  %v371 = vld [vmem:[%s1 + $0xab8] sm:$0xff]
  %v372 = vld [vmem:[%s1 + $0xac0] sm:$0xff]
  %v373 = vld [vmem:[%s1 + $0xac8] sm:$0xff]
  %v374 = vld [vmem:[%s1 + $0xad0] sm:$0xff]
  %v375 = vld [vmem:[%s1 + $0xad8] sm:$0xff]
  %v376 = vld [vmem:[%s1 + $0xae0] sm:$0xff]
  %v377 = vld [vmem:[%s1 + $0xae8] sm:$0xff]
  %v378 = vld [vmem:[%s1 + $0xaf0] sm:$0xff]
  %v379 = vld [vmem:[%s1 + $0xaf8] sm:$0xff]
  %v380 = vld [vmem:[%s1 + $0xb00] sm:$0xff]
  %v381 = vld [vmem:[%s1 + $0xb08] sm:$0xff]
  %v382 = vld [vmem:[%s1 + $0xb10] sm:$0xff]
  %v383 = vld [vmem:[%s1 + $0xb18] sm:$0xff]
  %v384 = vld [vmem:[%s1 + $0xb20] sm:$0xff]
  %v385 = vld [vmem:[%s1 + $0xb28] sm:$0xff]
  %v386 = vld [vmem:[%s1 + $0xb30] sm:$0xff]
  %v387 = vld [vmem:[%s1 + $0xb38] sm:$0xff]
  %v388 = vld [vmem:[%s1 + $0xb40] sm:$0xff]
  %v389 = vld [vmem:[%s1 + $0xb48] sm:$0xff]
  %v390 = vld [vmem:[%s1 + $0xb50] sm:$0xff]
  %v391 = vld [vmem:[%s1 + $0xb58] sm:$0xff]
  %v392 = vld [vmem:[%s1 + $0xb60] sm:$0xff]
  %v393 = vld [vmem:[%s1 + $0xb68] sm:$0xff]
  %v394 = vld [vmem:[%s1 + $0xb70] sm:$0xff]
  %v395 = vld [vmem:[%s1 + $0xb78] sm:$0xff]
  %v396 = vld [vmem:[%s1 + $0xb80] sm:$0xff]
  %v397 = vld [vmem:[%s1 + $0xb88] sm:$0xff]
  %v398 = vld [vmem:[%s1 + $0xb90] sm:$0xff]
  %v399 = vld [vmem:[%s1 + $0xb98] sm:$0xff]
  %v400 = vld [vmem:[%s1 + $0xba0] sm:$0xff]
  %v401 = vld [vmem:[%s1 + $0xba8] sm:$0xff]
  %v402 = vld [vmem:[%s1 + $0xbb0] sm:$0xff]
  %v403 = vld [vmem:[%s1 + $0xbb8] sm:$0xff]
  %v404 = vld [vmem:[%s1 + $0xbc0] sm:$0xff]
  %v405 = vld [vmem:[%s1 + $0xbc8] sm:$0xff]
  %v406 = vld [vmem:[%s1 + $0xbd0] sm:$0xff]
  %v407 = vld [vmem:[%s1 + $0xbd8] sm:$0xff]
  %v408 = vld [vmem:[%s1 + $0xbe0] sm:$0xff]
  %v409 = vld [vmem:[%s1 + $0xbe8] sm:$0xff]
  %v410 = vld [vmem:[%s1 + $0xbf0] sm:$0xff]
  %v411 = vld [vmem:[%s1 + $0xbf8] sm:$0xff]
  %v412 = vld [vmem:[%s1 + $0xc00] sm:$0xff]
  %v413 = vld [vmem:[%s1 + $0xc08] sm:$0xff]
  %v414 = vld [vmem:[%s1 + $0xc10] sm:$0xff]
  %v415 = vld [vmem:[%s1 + $0xc18] sm:$0xff]
  %v416 = vld [vmem:[%s1 + $0xc20] sm:$0xff]
  %v417 = vld [vmem:[%s1 + $0xc28] sm:$0xff]
  %v418 = vld [vmem:[%s1 + $0xc30] sm:$0xff]
  %v419 = vld [vmem:[%s1 + $0xc38] sm:$0xff]
  %v420 = vld [vmem:[%s1 + $0xc40] sm:$0xff]
  %v421 = vld [vmem:[%s1 + $0xc48] sm:$0xff]
  %v422 = vld [vmem:[%s1 + $0xc50] sm:$0xff]
  %v423 = vld [vmem:[%s1 + $0xc58] sm:$0xff]
  %v424 = vld [vmem:[%s1 + $0xc60] sm:$0xff]
  %v425 = vld [vmem:[%s1 + $0xc68] sm:$0xff]
  %v426 = vld [vmem:[%s1 + $0xc70] sm:$0xff]
  %v427 = vld [vmem:[%s1 + $0xc78] sm:$0xff]
  %v428 = vld [vmem:[%s1 + $0xc80] sm:$0xff]
  %v429 = vld [vmem:[%s1 + $0xc88] sm:$0xff]
  %v430 = vld [vmem:[%s1 + $0xc90] sm:$0xff]
  %v431 = vld [vmem:[%s1 + $0xc98] sm:$0xff]
  %v432 = vld [vmem:[%s1 + $0xca0] sm:$0xff]
  %v433 = vld [vmem:[%s1 + $0xca8] sm:$0xff]
  %v434 = vld [vmem:[%s1 + $0xcb0] sm:$0xff]
  %v435 = vld [vmem:[%s1 + $0xcb8] sm:$0xff]
  %v436 = vld [vmem:[%s1 + $0xcc0] sm:$0xff]
  %v437 = vld [vmem:[%s1 + $0xcc8] sm:$0xff]
  %v438 = vld [vmem:[%s1 + $0xcd0] sm:$0xff]
  %v439 = vld [vmem:[%s1 + $0xcd8] sm:$0xff]
  %v440 = vld [vmem:[%s1 + $0xce0] sm:$0xff]
  %v441 = vld [vmem:[%s1 + $0xce8] sm:$0xff]
  %v442 = vld [vmem:[%s1 + $0xcf0] sm:$0xff]
  %v443 = vld [vmem:[%s1 + $0xcf8] sm:$0xff]
  %v444 = vld [vmem:[%s1 + $0xd00] sm:$0xff]
  %v445 = vld [vmem:[%s1 + $0xd08] sm:$0xff]
  %v446 = vld [vmem:[%s1 + $0xd10] sm:$0xff]
  %v447 = vld [vmem:[%s1 + $0xd18] sm:$0xff]
  %v448 = vld [vmem:[%s1 + $0xd20] sm:$0xff]
  %v449 = vld [vmem:[%s1 + $0xd28] sm:$0xff]
  %v450 = vld [vmem:[%s1 + $0xd30] sm:$0xff]
  %v451 = vld [vmem:[%s1 + $0xd38] sm:$0xff]
  %v452 = vld [vmem:[%s1 + $0xd40] sm:$0xff]
  %v453 = vld [vmem:[%s1 + $0xd48] sm:$0xff]
  %v454 = vld [vmem:[%s1 + $0xd50] sm:$0xff]
  %v455 = vld [vmem:[%s1 + $0xd58] sm:$0xff]
  %v456 = vld [vmem:[%s1 + $0xd60] sm:$0xff]
  %v457 = vld [vmem:[%s1 + $0xd68] sm:$0xff]
  %v458 = vld [vmem:[%s1 + $0xd70] sm:$0xff]
  %v459 = vld [vmem:[%s1 + $0xd78] sm:$0xff]
  %v460 = vld [vmem:[%s1 + $0xd80] sm:$0xff]
  %v461 = vld [vmem:[%s1 + $0xd88] sm:$0xff]
  %v462 = vld [vmem:[%s1 + $0xd90] sm:$0xff]
  %v463 = vld [vmem:[%s1 + $0xd98] sm:$0xff]
  %v464 = vld [vmem:[%s1 + $0xda0] sm:$0xff]
  %v465 = vld [vmem:[%s1 + $0xda8] sm:$0xff]
  %v466 = vld [vmem:[%s1 + $0xdb0] sm:$0xff]
  %v467 = vld [vmem:[%s1 + $0xdb8] sm:$0xff]
  %v468 = vld [vmem:[%s1 + $0xdc0] sm:$0xff]
  %v469 = vld [vmem:[%s1 + $0xdc8] sm:$0xff]
  %v470 = vld [vmem:[%s1 + $0xdd0] sm:$0xff]
  %v471 = vld [vmem:[%s1 + $0xdd8] sm:$0xff]
  %v472 = vld [vmem:[%s1 + $0xde0] sm:$0xff]
  %v473 = vld [vmem:[%s1 + $0xde8] sm:$0xff]
  %v474 = vld [vmem:[%s1 + $0xdf0] sm:$0xff]
  %v475 = vld [vmem:[%s1 + $0xdf8] sm:$0xff]
  %v476 = vld [vmem:[%s1 + $0xe00] sm:$0xff]
  %v477 = vld [vmem:[%s1 + $0xe08] sm:$0xff]
  %v478 = vld [vmem:[%s1 + $0xe10] sm:$0xff]
  %v479 = vld [vmem:[%s1 + $0xe18] sm:$0xff]
  %v480 = vld [vmem:[%s1 + $0xe20] sm:$0xff]
  %v481 = vld [vmem:[%s1 + $0xe28] sm:$0xff]
  %v482 = vld [vmem:[%s1 + $0xe30] sm:$0xff]
  %v483 = vld [vmem:[%s1 + $0xe38] sm:$0xff]
  %v484 = vld [vmem:[%s1 + $0xe40] sm:$0xff]
  %v485 = vld [vmem:[%s1 + $0xe48] sm:$0xff]
  %v486 = vld [vmem:[%s1 + $0xe50] sm:$0xff]
  %v487 = vld [vmem:[%s1 + $0xe58] sm:$0xff]
  %v488 = vld [vmem:[%s1 + $0xe60] sm:$0xff]
  %v489 = vld [vmem:[%s1 + $0xe68] sm:$0xff]
  %v490 = vld [vmem:[%s1 + $0xe70] sm:$0xff]
  %v491 = vld [vmem:[%s1 + $0xe78] sm:$0xff]
  %v492 = vld [vmem:[%s1 + $0xe80] sm:$0xff]
  %v493 = vld [vmem:[%s1 + $0xe88] sm:$0xff]
  %v494 = vld [vmem:[%s1 + $0xe90] sm:$0xff]
  %v495 = vld [vmem:[%s1 + $0xe98] sm:$0xff]
  %v496 = vld [vmem:[%s1 + $0xea0] sm:$0xff]
  %v497 = vld [vmem:[%s1 + $0xea8] sm:$0xff]
  %v498 = vld [vmem:[%s1 + $0xeb0] sm:$0xff]
  %v499 = vld [vmem:[%s1 + $0xeb8] sm:$0xff]
  %v500 = vld [vmem:[%s1 + $0xec0] sm:$0xff]
  %v501 = vld [vmem:[%s1 + $0xec8] sm:$0xff]
  %v502 = vld [vmem:[%s1 + $0xed0] sm:$0xff]
  %v503 = vld [vmem:[%s1 + $0xed8] sm:$0xff]
  %v504 = vld [vmem:[%s1 + $0xee0] sm:$0xff]
  %v505 = vld [vmem:[%s1 + $0xee8] sm:$0xff]
  %v506 = vld [vmem:[%s1 + $0xef0] sm:$0xff]
  %v507 = vld [vmem:[%s1 + $0xef8] sm:$0xff]
  %v508 = vld [vmem:[%s1 + $0xf00] sm:$0xff]
  %v509 = vld [vmem:[%s1 + $0xf08] sm:$0xff]
  %v510 = vld [vmem:[%s1 + $0xf10] sm:$0xff]
  %v511 = vld [vmem:[%s1 + $0xf18] sm:$0xff]
  %v512 = vld [vmem:[%s1 + $0xf20] sm:$0xff]
  %v513 = vld [vmem:[%s1 + $0xf28] sm:$0xff]
  %v514 = vld [vmem:[%s1 + $0xf30] sm:$0xff]
  %v515 = vld [vmem:[%s1 + $0xf38] sm:$0xff]
  %v516 = vld [vmem:[%s1 + $0xf40] sm:$0xff]
  %v517 = vld [vmem:[%s1 + $0xf48] sm:$0xff]
  %v518 = vld [vmem:[%s1 + $0xf50] sm:$0xff]
  %v519 = vld [vmem:[%s1 + $0xf58] sm:$0xff]
  %v520 = vld [vmem:[%s1 + $0xf60] sm:$0xff]
  %v521 = vld [vmem:[%s1 + $0xf68] sm:$0xff]
  %v522 = vld [vmem:[%s1 + $0xf70] sm:$0xff]
  %v523 = vld [vmem:[%s1 + $0xf78] sm:$0xff]
  %v524 = vld [vmem:[%s1 + $0xf80] sm:$0xff]
  %v525 = vld [vmem:[%s1 + $0xf88] sm:$0xff]
  %v526 = vld [vmem:[%s1 + $0xf90] sm:$0xff]
  %v527 = vld [vmem:[%s1 + $0xf98] sm:$0xff]
  %v528 = vld [vmem:[%s1 + $0xfa0] sm:$0xff]
  %v529 = vld [vmem:[%s1 + $0xfa8] sm:$0xff]
  %v530 = vld [vmem:[%s1 + $0xfb0] sm:$0xff]
  %v531 = vld [vmem:[%s1 + $0xfb8] sm:$0xff]
  %v532 = vld [vmem:[%s1 + $0xfc0] sm:$0xff]
  %v533 = vld [vmem:[%s1 + $0xfc8] sm:$0xff]
  %v534 = vld [vmem:[%s1 + $0xfd0] sm:$0xff]
  %v535 = vld [vmem:[%s1 + $0xfd8] sm:$0xff]
  %v536 = vld [vmem:[%s1 + $0xfe0] sm:$0xff]
  %v537 = vld [vmem:[%s1 + $0xfe8] sm:$0xff]
  %v538 = vld [vmem:[%s1 + $0xff0] sm:$0xff]
  %v539 = vld [vmem:[%s1 + $0xff8] sm:$0xff]
  %v540 = vld [vmem:[%s2] sm:$0xf]
  %v542 = vlaneseq
  %v543 = vshrl.u32 %v542, 7
  %v544 = vsub.s32 0, %v543
  %v545 = vrot.slane %v540, %v544
  %v546 = vlaneseq
  %v547 = vshrl.u32 %v546, 7
  %v548 = vsub.s32 1, %v547
  %v549 = vrot.slane %v540, %v548
  %v550 = vlaneseq
  %v551 = vshrl.u32 %v550, 7
  %v552 = vsub.s32 2, %v551
  %v553 = vrot.slane %v540, %v552
  %v554 = vlaneseq
  %v555 = vshrl.u32 %v554, 7
  %v556 = vsub.s32 3, %v555
  %v557 = vrot.slane %v540, %v556
  %v564 = vcombine.high %v26, %v26
  %v566 = vunpack.c.l.s4 1983009808
  %v567 = vunpack.c.0.s8 %v566
  %v568 = vlaneseq
  %v569 = vshrl.u32 %v568, 7
  %v570 = vsub.s32 %v567, %v569
  %v571 = vrot.slane %v26, %v570
  %v573 = vunpack.c.l.s4 1983009808
  %v574 = vunpack.c.0.s8 %v573
  %v575 = vlaneseq
  %v576 = vshrl.u32 %v575, 7
  %v577 = vsub.s32 %v574, %v576
  %v578 = vrot.slane %v564, %v577
  %v579 = vcombine.high %v571, %v571
  %v580 = vcombine.high %v578, %v578
  %v581 = vcombine.high %v27, %v27
  %v583 = vunpack.c.l.s4 1983009808
  %v584 = vunpack.c.0.s8 %v583
  %v585 = vlaneseq
  %v586 = vshrl.u32 %v585, 7
  %v587 = vsub.s32 %v584, %v586
  %v588 = vrot.slane %v27, %v587
  %v590 = vunpack.c.l.s4 1983009808
  %v591 = vunpack.c.0.s8 %v590
  %v592 = vlaneseq
  %v593 = vshrl.u32 %v592, 7
  %v594 = vsub.s32 %v591, %v593
  %v595 = vrot.slane %v581, %v594
  %v596 = vcombine.high %v588, %v588
  %v597 = vcombine.high %v595, %v595
  %606 = vmatprep.subr.mxu0 %v29
  %607 = vmatpush1.msra.mxu0 %v28
  %608 = vmatprep.subr.mxu0 %v33
  %609 = vmatpush1.msra.mxu0 %v32
  %610 = vmatprep.subr.mxu0 %v37
  %611 = vmatpush1.msra.mxu0 %v36
  %612 = vmatprep.subr.mxu0 %v41
  %613 = vmatpush1.msra.mxu0 %v40
  %614 = vmatprep.subr.mxu0 %v45
  %615 = vmatpush1.msra.mxu0 %v44
  %616 = vmatprep.subr.mxu0 %v49
  %617 = vmatpush1.msra.mxu0 %v48
  %618 = vmatprep.subr.mxu0 %v53
  %619 = vmatpush1.msra.mxu0 %v52
  %620 = vmatprep.subr.mxu0 %v57
  %621 = vmatpush1.msra.mxu0 %v56
  %622 = vmatprep.subr.mxu0 %v61
  %623 = vmatpush1.msra.mxu0 %v60
  %624 = vmatprep.subr.mxu0 %v65
  %625 = vmatpush1.msra.mxu0 %v64
  %626 = vmatprep.subr.mxu0 %v69
  %627 = vmatpush1.msra.mxu0 %v68
  %628 = vmatprep.subr.mxu0 %v73
  %629 = vmatpush1.msra.mxu0 %v72
  %630 = vmatprep.subr.mxu0 %v77
  %631 = vmatpush1.msra.mxu0 %v76
  %632 = vmatprep.subr.mxu0 %v81
  %633 = vmatpush1.msra.mxu0 %v80
  %634 = vmatprep.subr.mxu0 %v85
  %635 = vmatpush1.msra.mxu0 %v84
  %636 = vmatprep.subr.mxu0 %v89
  %637 = vmatpush1.msra.mxu0 %v88
  %638 = vmatprep.subr.mxu0 %v93
  %639 = vmatpush1.msra.mxu0 %v92
  %640 = vmatprep.subr.mxu0 %v97
  %641 = vmatpush1.msra.mxu0 %v96
  %642 = vmatprep.subr.mxu0 %v101
  %643 = vmatpush1.msra.mxu0 %v100
  %644 = vmatprep.subr.mxu0 %v105
  %645 = vmatpush1.msra.mxu0 %v104
  %646 = vmatprep.subr.mxu0 %v109
  %647 = vmatpush1.msra.mxu0 %v108
  %648 = vmatprep.subr.mxu0 %v113
  %649 = vmatpush1.msra.mxu0 %v112
  %650 = vmatprep.subr.mxu0 %v117
  %651 = vmatpush1.msra.mxu0 %v116
  %652 = vmatprep.subr.mxu0 %v121
  %653 = vmatpush1.msra.mxu0 %v120
  %654 = vmatprep.subr.mxu0 %v125
  %655 = vmatpush1.msra.mxu0 %v124
  %656 = vmatprep.subr.mxu0 %v129
  %657 = vmatpush1.msra.mxu0 %v128
  %658 = vmatprep.subr.mxu0 %v133
  %659 = vmatpush1.msra.mxu0 %v132
  %660 = vmatprep.subr.mxu0 %v137
  %661 = vmatpush1.msra.mxu0 %v136
  %662 = vmatprep.subr.mxu0 %v141
  %663 = vmatpush1.msra.mxu0 %v140
  %664 = vmatprep.subr.mxu0 %v145
  %665 = vmatpush1.msra.mxu0 %v144
  %666 = vmatprep.subr.mxu0 %v149
  %667 = vmatpush1.msra.mxu0 %v148
  %668 = vmatprep.subr.mxu0 %v153
  %669 = vmatpush1.msra.mxu0 %v152
  %670 = vmatprep.mubr.f32.mxu0 %v579
  %671 = vmatmul.mubr.f32.gmra.mrb[0].mxu0 %v571
  %v672 = vpop.f32.mrb[0].mxu0
  %v673 = vadd.f32 %v545, %v672
  %v674 = vpop.f32.mrb[0].mxu0
  %v675 = vadd.f32 %v549, %v674
  %676 = vdwg.mxu0
  %677 = vmatprep.subr.mxu0 %v157
  %678 = vmatpush1.msra.mxu0 %v156
  %679 = vmatprep.subr.mxu0 %v161
  %680 = vmatpush1.msra.mxu0 %v160
  %681 = vmatprep.subr.mxu0 %v165
  %682 = vmatpush1.msra.mxu0 %v164
  %683 = vmatprep.subr.mxu0 %v169
  %684 = vmatpush1.msra.mxu0 %v168
  %685 = vmatprep.subr.mxu0 %v173
  %686 = vmatpush1.msra.mxu0 %v172
  %687 = vmatprep.subr.mxu0 %v177
  %688 = vmatpush1.msra.mxu0 %v176
  %689 = vmatprep.subr.mxu0 %v181
  %690 = vmatpush1.msra.mxu0 %v180
  %691 = vmatprep.subr.mxu0 %v185
  %692 = vmatpush1.msra.mxu0 %v184
  %693 = vmatprep.subr.mxu0 %v189
  %694 = vmatpush1.msra.mxu0 %v188
  %695 = vmatprep.subr.mxu0 %v193
  %696 = vmatpush1.msra.mxu0 %v192
  %697 = vmatprep.subr.mxu0 %v197
  %698 = vmatpush1.msra.mxu0 %v196
  %699 = vmatprep.subr.mxu0 %v201
  %700 = vmatpush1.msra.mxu0 %v200
  %701 = vmatprep.subr.mxu0 %v205
  %702 = vmatpush1.msra.mxu0 %v204
  %703 = vmatprep.subr.mxu0 %v209
  %704 = vmatpush1.msra.mxu0 %v208
  %705 = vmatprep.subr.mxu0 %v213
  %706 = vmatpush1.msra.mxu0 %v212
  %707 = vmatprep.subr.mxu0 %v217
  %708 = vmatpush1.msra.mxu0 %v216
  %709 = vmatprep.subr.mxu0 %v221
  %710 = vmatpush1.msra.mxu0 %v220
  %711 = vmatprep.subr.mxu0 %v225
  %712 = vmatpush1.msra.mxu0 %v224
  %713 = vmatprep.subr.mxu0 %v229
  %714 = vmatpush1.msra.mxu0 %v228
  %715 = vmatprep.subr.mxu0 %v233
  %716 = vmatpush1.msra.mxu0 %v232
  %717 = vmatprep.subr.mxu0 %v237
  %718 = vmatpush1.msra.mxu0 %v236
  %719 = vmatprep.subr.mxu0 %v241
  %720 = vmatpush1.msra.mxu0 %v240
  %721 = vmatprep.subr.mxu0 %v245
  %722 = vmatpush1.msra.mxu0 %v244
  %723 = vmatprep.subr.mxu0 %v249
  %724 = vmatpush1.msra.mxu0 %v248
  %725 = vmatprep.subr.mxu0 %v253
  %726 = vmatpush1.msra.mxu0 %v252
  %727 = vmatprep.subr.mxu0 %v257
  %728 = vmatpush1.msra.mxu0 %v256
  %729 = vmatprep.subr.mxu0 %v261
  %730 = vmatpush1.msra.mxu0 %v260
  %731 = vmatprep.subr.mxu0 %v265
  %732 = vmatpush1.msra.mxu0 %v264
  %733 = vmatprep.subr.mxu0 %v269
  %734 = vmatpush1.msra.mxu0 %v268
  %735 = vmatprep.subr.mxu0 %v273
  %736 = vmatpush1.msra.mxu0 %v272
  %737 = vmatprep.subr.mxu0 %v277
  %738 = vmatpush1.msra.mxu0 %v276
  %739 = vmatprep.subr.mxu0 %v281
  %740 = vmatpush1.msra.mxu0 %v280
  %741 = vmatprep.mubr.f32.mxu0 %v580
  %742 = vmatmul.mubr.f32.gmra.mrb[0].mxu0 %v578
  %v743 = vpop.f32.mrb[0].mxu0
  %v744 = vadd.f32 %v673, %v743
  %v745 = vpop.f32.mrb[0].mxu0
  %v746 = vadd.f32 %v675, %v745
  %747 = vdwg.mxu0
  %748 = vmatprep.subr.mxu0 %v285
  %749 = vmatpush1.msra.mxu0 %v284
  %750 = vmatprep.subr.mxu0 %v289
  %751 = vmatpush1.msra.mxu0 %v288
  %752 = vmatprep.subr.mxu0 %v293
  %753 = vmatpush1.msra.mxu0 %v292
  %754 = vmatprep.subr.mxu0 %v297
  %755 = vmatpush1.msra.mxu0 %v296
  %756 = vmatprep.subr.mxu0 %v301
  %757 = vmatpush1.msra.mxu0 %v300
  %758 = vmatprep.subr.mxu0 %v305
  %759 = vmatpush1.msra.mxu0 %v304
  %760 = vmatprep.subr.mxu0 %v309
  %761 = vmatpush1.msra.mxu0 %v308
  %762 = vmatprep.subr.mxu0 %v313
  %763 = vmatpush1.msra.mxu0 %v312
  %764 = vmatprep.subr.mxu0 %v317
  %765 = vmatpush1.msra.mxu0 %v316
  %766 = vmatprep.subr.mxu0 %v321
  %767 = vmatpush1.msra.mxu0 %v320
  %768 = vmatprep.subr.mxu0 %v325
  %769 = vmatpush1.msra.mxu0 %v324
  %770 = vmatprep.subr.mxu0 %v329
  %771 = vmatpush1.msra.mxu0 %v328
  %772 = vmatprep.subr.mxu0 %v333
  %773 = vmatpush1.msra.mxu0 %v332
  %774 = vmatprep.subr.mxu0 %v337
  %775 = vmatpush1.msra.mxu0 %v336
  %776 = vmatprep.subr.mxu0 %v341
  %777 = vmatpush1.msra.mxu0 %v340
  %778 = vmatprep.subr.mxu0 %v345
  %779 = vmatpush1.msra.mxu0 %v344
  %780 = vmatprep.subr.mxu0 %v349
  %781 = vmatpush1.msra.mxu0 %v348
  %782 = vmatprep.subr.mxu0 %v353
  %783 = vmatpush1.msra.mxu0 %v352
  %784 = vmatprep.subr.mxu0 %v357
  %785 = vmatpush1.msra.mxu0 %v356
  %786 = vmatprep.subr.mxu0 %v361
  %787 = vmatpush1.msra.mxu0 %v360
  %788 = vmatprep.subr.mxu0 %v365
  %789 = vmatpush1.msra.mxu0 %v364
  %790 = vmatprep.subr.mxu0 %v369
  %791 = vmatpush1.msra.mxu0 %v368
  %792 = vmatprep.subr.mxu0 %v373
  %793 = vmatpush1.msra.mxu0 %v372
  %794 = vmatprep.subr.mxu0 %v377
  %795 = vmatpush1.msra.mxu0 %v376
  %796 = vmatprep.subr.mxu0 %v381
  %797 = vmatpush1.msra.mxu0 %v380
  %798 = vmatprep.subr.mxu0 %v385
  %799 = vmatpush1.msra.mxu0 %v384
  %800 = vmatprep.subr.mxu0 %v389
  %801 = vmatpush1.msra.mxu0 %v388
  %802 = vmatprep.subr.mxu0 %v393
  %803 = vmatpush1.msra.mxu0 %v392
  %804 = vmatprep.subr.mxu0 %v397
  %805 = vmatpush1.msra.mxu0 %v396
  %806 = vmatprep.subr.mxu0 %v401
  %807 = vmatpush1.msra.mxu0 %v400
  %808 = vmatprep.subr.mxu0 %v405
  %809 = vmatpush1.msra.mxu0 %v404
  %810 = vmatprep.subr.mxu0 %v409
  %811 = vmatpush1.msra.mxu0 %v408
  %812 = vmatprep.mubr.f32.mxu0 %v596
  %813 = vmatmul.mubr.f32.gmra.mrb[0].mxu0 %v588
  %v814 = vpop.f32.mrb[0].mxu0
  %v815 = vadd.f32 %v744, %v814
  %v816 = vpop.f32.mrb[0].mxu0
  %v817 = vadd.f32 %v746, %v816
  %818 = vdwg.mxu0
  %819 = vmatprep.subr.mxu0 %v413
  %820 = vmatpush1.msra.mxu0 %v412
  %821 = vmatprep.subr.mxu0 %v417
  %822 = vmatpush1.msra.mxu0 %v416
  %823 = vmatprep.subr.mxu0 %v421
  %824 = vmatpush1.msra.mxu0 %v420
  %825 = vmatprep.subr.mxu0 %v425
  %826 = vmatpush1.msra.mxu0 %v424
  %827 = vmatprep.subr.mxu0 %v429
  %828 = vmatpush1.msra.mxu0 %v428
  %829 = vmatprep.subr.mxu0 %v433
  %830 = vmatpush1.msra.mxu0 %v432
  %831 = vmatprep.subr.mxu0 %v437
  %832 = vmatpush1.msra.mxu0 %v436
  %833 = vmatprep.subr.mxu0 %v441
  %834 = vmatpush1.msra.mxu0 %v440
  %835 = vmatprep.subr.mxu0 %v445
  %836 = vmatpush1.msra.mxu0 %v444
  %837 = vmatprep.subr.mxu0 %v449
  %838 = vmatpush1.msra.mxu0 %v448
  %839 = vmatprep.subr.mxu0 %v453
  %840 = vmatpush1.msra.mxu0 %v452
  %841 = vmatprep.subr.mxu0 %v457
  %842 = vmatpush1.msra.mxu0 %v456
  %843 = vmatprep.subr.mxu0 %v461
  %844 = vmatpush1.msra.mxu0 %v460
  %845 = vmatprep.subr.mxu0 %v465
  %846 = vmatpush1.msra.mxu0 %v464
  %847 = vmatprep.subr.mxu0 %v469
  %848 = vmatpush1.msra.mxu0 %v468
  %849 = vmatprep.subr.mxu0 %v473
  %850 = vmatpush1.msra.mxu0 %v472
  %851 = vmatprep.subr.mxu0 %v477
  %852 = vmatpush1.msra.mxu0 %v476
  %853 = vmatprep.subr.mxu0 %v481
  %854 = vmatpush1.msra.mxu0 %v480
  %855 = vmatprep.subr.mxu0 %v485
  %856 = vmatpush1.msra.mxu0 %v484
  %857 = vmatprep.subr.mxu0 %v489
  %858 = vmatpush1.msra.mxu0 %v488
  %859 = vmatprep.subr.mxu0 %v493
  %860 = vmatpush1.msra.mxu0 %v492
  %861 = vmatprep.subr.mxu0 %v497
  %862 = vmatpush1.msra.mxu0 %v496
  %863 = vmatprep.subr.mxu0 %v501
  %864 = vmatpush1.msra.mxu0 %v500
  %865 = vmatprep.subr.mxu0 %v505
  %866 = vmatpush1.msra.mxu0 %v504
  %867 = vmatprep.subr.mxu0 %v509
  %868 = vmatpush1.msra.mxu0 %v508
  %869 = vmatprep.subr.mxu0 %v513
  %870 = vmatpush1.msra.mxu0 %v512
  %871 = vmatprep.subr.mxu0 %v517
  %872 = vmatpush1.msra.mxu0 %v516
  %873 = vmatprep.subr.mxu0 %v521
  %874 = vmatpush1.msra.mxu0 %v520
  %875 = vmatprep.subr.mxu0 %v525
  %876 = vmatpush1.msra.mxu0 %v524
  %877 = vmatprep.subr.mxu0 %v529
  %878 = vmatpush1.msra.mxu0 %v528
  %879 = vmatprep.subr.mxu0 %v533
  %880 = vmatpush1.msra.mxu0 %v532
  %881 = vmatprep.subr.mxu0 %v537
  %882 = vmatpush1.msra.mxu0 %v536
  %883 = vmatprep.mubr.f32.mxu0 %v597
  %884 = vmatmul.mubr.f32.gmra.mrb[0].mxu0 %v595
  %v885 = vpop.f32.mrb[0].mxu0
  %v886 = vadd.f32 %v815, %v885
  %v887 = vpop.f32.mrb[0].mxu0
  %v888 = vadd.f32 %v817, %v887
  %889 = vdwg.mxu0
  %890 = vmatprep.subr.mxu0 %v31
  %891 = vmatpush1.msra.mxu0 %v30
  %892 = vmatprep.subr.mxu0 %v35
  %893 = vmatpush1.msra.mxu0 %v34
  %894 = vmatprep.subr.mxu0 %v39
  %895 = vmatpush1.msra.mxu0 %v38
  %896 = vmatprep.subr.mxu0 %v43
  %897 = vmatpush1.msra.mxu0 %v42
  %898 = vmatprep.subr.mxu0 %v47
  %899 = vmatpush1.msra.mxu0 %v46
  %900 = vmatprep.subr.mxu0 %v51
  %901 = vmatpush1.msra.mxu0 %v50
  %902 = vmatprep.subr.mxu0 %v55
  %903 = vmatpush1.msra.mxu0 %v54
  %904 = vmatprep.subr.mxu0 %v59
  %905 = vmatpush1.msra.mxu0 %v58
  %906 = vmatprep.subr.mxu0 %v63
  %907 = vmatpush1.msra.mxu0 %v62
  %908 = vmatprep.subr.mxu0 %v67
  %909 = vmatpush1.msra.mxu0 %v66
  %910 = vmatprep.subr.mxu0 %v71
  %911 = vmatpush1.msra.mxu0 %v70
  %912 = vmatprep.subr.mxu0 %v75
  %913 = vmatpush1.msra.mxu0 %v74
  %914 = vmatprep.subr.mxu0 %v79
  %915 = vmatpush1.msra.mxu0 %v78
  %916 = vmatprep.subr.mxu0 %v83
  %917 = vmatpush1.msra.mxu0 %v82
  %918 = vmatprep.subr.mxu0 %v87
  %919 = vmatpush1.msra.mxu0 %v86
  %920 = vmatprep.subr.mxu0 %v91
  %921 = vmatpush1.msra.mxu0 %v90
  %922 = vmatprep.subr.mxu0 %v95
  %923 = vmatpush1.msra.mxu0 %v94
  %924 = vmatprep.subr.mxu0 %v99
  %925 = vmatpush1.msra.mxu0 %v98
  %926 = vmatprep.subr.mxu0 %v103
  %927 = vmatpush1.msra.mxu0 %v102
  %928 = vmatprep.subr.mxu0 %v107
  %929 = vmatpush1.msra.mxu0 %v106
  %930 = vmatprep.subr.mxu0 %v111
  %931 = vmatpush1.msra.mxu0 %v110
  %932 = vmatprep.subr.mxu0 %v115
  %933 = vmatpush1.msra.mxu0 %v114
  %934 = vmatprep.subr.mxu0 %v119
  %935 = vmatpush1.msra.mxu0 %v118
  %936 = vmatprep.subr.mxu0 %v123
  %937 = vmatpush1.msra.mxu0 %v122
  %938 = vmatprep.subr.mxu0 %v127
  %939 = vmatpush1.msra.mxu0 %v126
  %940 = vmatprep.subr.mxu0 %v131
  %941 = vmatpush1.msra.mxu0 %v130
  %942 = vmatprep.subr.mxu0 %v135
  %943 = vmatpush1.msra.mxu0 %v134
  %944 = vmatprep.subr.mxu0 %v139
  %945 = vmatpush1.msra.mxu0 %v138
  %946 = vmatprep.subr.mxu0 %v143
  %947 = vmatpush1.msra.mxu0 %v142
  %948 = vmatprep.subr.mxu0 %v147
  %949 = vmatpush1.msra.mxu0 %v146
  %950 = vmatprep.subr.mxu0 %v151
  %951 = vmatpush1.msra.mxu0 %v150
  %952 = vmatprep.subr.mxu0 %v155
  %953 = vmatpush1.msra.mxu0 %v154
  %954 = vmatprep.mubr.f32.mxu0 %v579
  %955 = vmatmul.mubr.f32.gmra.mrb[0].mxu0 %v571
  %v956 = vpop.f32.mrb[0].mxu0
  %v957 = vadd.f32 %v553, %v956
  %v958 = vpop.f32.mrb[0].mxu0
  %v959 = vadd.f32 %v557, %v958
  %960 = vdwg.mxu0
  %961 = vmatprep.subr.mxu0 %v159
  %962 = vmatpush1.msra.mxu0 %v158
  %963 = vmatprep.subr.mxu0 %v163
  %964 = vmatpush1.msra.mxu0 %v162
  %965 = vmatprep.subr.mxu0 %v167
  %966 = vmatpush1.msra.mxu0 %v166
  %967 = vmatprep.subr.mxu0 %v171
  %968 = vmatpush1.msra.mxu0 %v170
  %969 = vmatprep.subr.mxu0 %v175
  %970 = vmatpush1.msra.mxu0 %v174
  %971 = vmatprep.subr.mxu0 %v179
  %972 = vmatpush1.msra.mxu0 %v178
  %973 = vmatprep.subr.mxu0 %v183
  %974 = vmatpush1.msra.mxu0 %v182
  %975 = vmatprep.subr.mxu0 %v187
  %976 = vmatpush1.msra.mxu0 %v186
  %977 = vmatprep.subr.mxu0 %v191
  %978 = vmatpush1.msra.mxu0 %v190
  %979 = vmatprep.subr.mxu0 %v195
  %980 = vmatpush1.msra.mxu0 %v194
  %981 = vmatprep.subr.mxu0 %v199
  %982 = vmatpush1.msra.mxu0 %v198
  %983 = vmatprep.subr.mxu0 %v203
  %984 = vmatpush1.msra.mxu0 %v202
  %985 = vmatprep.subr.mxu0 %v207
  %986 = vmatpush1.msra.mxu0 %v206
  %987 = vmatprep.subr.mxu0 %v211
  %988 = vmatpush1.msra.mxu0 %v210
  %989 = vmatprep.subr.mxu0 %v215
  %990 = vmatpush1.msra.mxu0 %v214
  %991 = vmatprep.subr.mxu0 %v219
  %992 = vmatpush1.msra.mxu0 %v218
  %993 = vmatprep.subr.mxu0 %v223
  %994 = vmatpush1.msra.mxu0 %v222
  %995 = vmatprep.subr.mxu0 %v227
  %996 = vmatpush1.msra.mxu0 %v226
  %997 = vmatprep.subr.mxu0 %v231
  %998 = vmatpush1.msra.mxu0 %v230
  %999 = vmatprep.subr.mxu0 %v235
  %1000 = vmatpush1.msra.mxu0 %v234
  %1001 = vmatprep.subr.mxu0 %v239
  %1002 = vmatpush1.msra.mxu0 %v238
  %1003 = vmatprep.subr.mxu0 %v243
  %1004 = vmatpush1.msra.mxu0 %v242
  %1005 = vmatprep.subr.mxu0 %v247
  %1006 = vmatpush1.msra.mxu0 %v246
  %1007 = vmatprep.subr.mxu0 %v251
  %1008 = vmatpush1.msra.mxu0 %v250
  %1009 = vmatprep.subr.mxu0 %v255
  %1010 = vmatpush1.msra.mxu0 %v254
  %1011 = vmatprep.subr.mxu0 %v259
  %1012 = vmatpush1.msra.mxu0 %v258
  %1013 = vmatprep.subr.mxu0 %v263
  %1014 = vmatpush1.msra.mxu0 %v262
  %1015 = vmatprep.subr.mxu0 %v267
  %1016 = vmatpush1.msra.mxu0 %v266
  %1017 = vmatprep.subr.mxu0 %v271
  %1018 = vmatpush1.msra.mxu0 %v270
  %1019 = vmatprep.subr.mxu0 %v275
  %1020 = vmatpush1.msra.mxu0 %v274
  %1021 = vmatprep.subr.mxu0 %v279
  %1022 = vmatpush1.msra.mxu0 %v278
  %1023 = vmatprep.subr.mxu0 %v283
  %1024 = vmatpush1.msra.mxu0 %v282
  %1025 = vmatprep.mubr.f32.mxu0 %v580
  %1026 = vmatmul.mubr.f32.gmra.mrb[0].mxu0 %v578
  %v1027 = vpop.f32.mrb[0].mxu0
  %v1028 = vadd.f32 %v957, %v1027
  %v1029 = vpop.f32.mrb[0].mxu0
  %v1030 = vadd.f32 %v959, %v1029
  %1031 = vdwg.mxu0
  %1032 = vmatprep.subr.mxu0 %v287
  %1033 = vmatpush1.msra.mxu0 %v286
  %1034 = vmatprep.subr.mxu0 %v291
  %1035 = vmatpush1.msra.mxu0 %v290
  %1036 = vmatprep.subr.mxu0 %v295
  %1037 = vmatpush1.msra.mxu0 %v294
  %1038 = vmatprep.subr.mxu0 %v299
  %1039 = vmatpush1.msra.mxu0 %v298
  %1040 = vmatprep.subr.mxu0 %v303
  %1041 = vmatpush1.msra.mxu0 %v302
  %1042 = vmatprep.subr.mxu0 %v307
  %1043 = vmatpush1.msra.mxu0 %v306
  %1044 = vmatprep.subr.mxu0 %v311
  %1045 = vmatpush1.msra.mxu0 %v310
  %1046 = vmatprep.subr.mxu0 %v315
  %1047 = vmatpush1.msra.mxu0 %v314
  %1048 = vmatprep.subr.mxu0 %v319
  %1049 = vmatpush1.msra.mxu0 %v318
  %1050 = vmatprep.subr.mxu0 %v323
  %1051 = vmatpush1.msra.mxu0 %v322
  %1052 = vmatprep.subr.mxu0 %v327
  %1053 = vmatpush1.msra.mxu0 %v326
  %1054 = vmatprep.subr.mxu0 %v331
  %1055 = vmatpush1.msra.mxu0 %v330
  %1056 = vmatprep.subr.mxu0 %v335
  %1057 = vmatpush1.msra.mxu0 %v334
  %1058 = vmatprep.subr.mxu0 %v339
  %1059 = vmatpush1.msra.mxu0 %v338
  %1060 = vmatprep.subr.mxu0 %v343
  %1061 = vmatpush1.msra.mxu0 %v342
  %1062 = vmatprep.subr.mxu0 %v347
  %1063 = vmatpush1.msra.mxu0 %v346
  %1064 = vmatprep.subr.mxu0 %v351
  %1065 = vmatpush1.msra.mxu0 %v350
  %1066 = vmatprep.subr.mxu0 %v355
  %1067 = vmatpush1.msra.mxu0 %v354
  %1068 = vmatprep.subr.mxu0 %v359
  %1069 = vmatpush1.msra.mxu0 %v358
  %1070 = vmatprep.subr.mxu0 %v363
  %1071 = vmatpush1.msra.mxu0 %v362
  %1072 = vmatprep.subr.mxu0 %v367
  %1073 = vmatpush1.msra.mxu0 %v366
  %1074 = vmatprep.subr.mxu0 %v371
  %1075 = vmatpush1.msra.mxu0 %v370
  %1076 = vmatprep.subr.mxu0 %v375
  %1077 = vmatpush1.msra.mxu0 %v374
  %1078 = vmatprep.subr.mxu0 %v379
  %1079 = vmatpush1.msra.mxu0 %v378
  %1080 = vmatprep.subr.mxu0 %v383
  %1081 = vmatpush1.msra.mxu0 %v382
  %1082 = vmatprep.subr.mxu0 %v387
  %1083 = vmatpush1.msra.mxu0 %v386
  %1084 = vmatprep.subr.mxu0 %v391
  %1085 = vmatpush1.msra.mxu0 %v390
  %1086 = vmatprep.subr.mxu0 %v395
  %1087 = vmatpush1.msra.mxu0 %v394
  %1088 = vmatprep.subr.mxu0 %v399
  %1089 = vmatpush1.msra.mxu0 %v398
  %1090 = vmatprep.subr.mxu0 %v403
  %1091 = vmatpush1.msra.mxu0 %v402
  %1092 = vmatprep.subr.mxu0 %v407
  %1093 = vmatpush1.msra.mxu0 %v406
  %1094 = vmatprep.subr.mxu0 %v411
  %1095 = vmatpush1.msra.mxu0 %v410
  %1096 = vmatprep.mubr.f32.mxu0 %v596
  %1097 = vmatmul.mubr.f32.gmra.mrb[0].mxu0 %v588
  %v1098 = vpop.f32.mrb[0].mxu0
  %v1099 = vadd.f32 %v1028, %v1098
  %v1100 = vpop.f32.mrb[0].mxu0
  %v1101 = vadd.f32 %v1030, %v1100
  %1102 = vdwg.mxu0
  %1103 = vmatprep.subr.mxu0 %v415
  %1104 = vmatpush1.msra.mxu0 %v414
  %1105 = vmatprep.subr.mxu0 %v419
  %1106 = vmatpush1.msra.mxu0 %v418
  %1107 = vmatprep.subr.mxu0 %v423
  %1108 = vmatpush1.msra.mxu0 %v422
  %1109 = vmatprep.subr.mxu0 %v427
  %1110 = vmatpush1.msra.mxu0 %v426
  %1111 = vmatprep.subr.mxu0 %v431
  %1112 = vmatpush1.msra.mxu0 %v430
  %1113 = vmatprep.subr.mxu0 %v435
  %1114 = vmatpush1.msra.mxu0 %v434
  %1115 = vmatprep.subr.mxu0 %v439
  %1116 = vmatpush1.msra.mxu0 %v438
  %1117 = vmatprep.subr.mxu0 %v443
  %1118 = vmatpush1.msra.mxu0 %v442
  %1119 = vmatprep.subr.mxu0 %v447
  %1120 = vmatpush1.msra.mxu0 %v446
  %1121 = vmatprep.subr.mxu0 %v451
  %1122 = vmatpush1.msra.mxu0 %v450
  %1123 = vmatprep.subr.mxu0 %v455
  %1124 = vmatpush1.msra.mxu0 %v454
  %1125 = vmatprep.subr.mxu0 %v459
  %1126 = vmatpush1.msra.mxu0 %v458
  %1127 = vmatprep.subr.mxu0 %v463
  %1128 = vmatpush1.msra.mxu0 %v462
  %1129 = vmatprep.subr.mxu0 %v467
  %1130 = vmatpush1.msra.mxu0 %v466
  %1131 = vmatprep.subr.mxu0 %v471
  %1132 = vmatpush1.msra.mxu0 %v470
  %1133 = vmatprep.subr.mxu0 %v475
  %1134 = vmatpush1.msra.mxu0 %v474
  %1135 = vmatprep.subr.mxu0 %v479
  %1136 = vmatpush1.msra.mxu0 %v478
  %1137 = vmatprep.subr.mxu0 %v483
  %1138 = vmatpush1.msra.mxu0 %v482
  %1139 = vmatprep.subr.mxu0 %v487
  %1140 = vmatpush1.msra.mxu0 %v486
  %1141 = vmatprep.subr.mxu0 %v491
  %1142 = vmatpush1.msra.mxu0 %v490
  %1143 = vmatprep.subr.mxu0 %v495
  %1144 = vmatpush1.msra.mxu0 %v494
  %1145 = vmatprep.subr.mxu0 %v499
  %1146 = vmatpush1.msra.mxu0 %v498
  %1147 = vmatprep.subr.mxu0 %v503
  %1148 = vmatpush1.msra.mxu0 %v502
  %1149 = vmatprep.subr.mxu0 %v507
  %1150 = vmatpush1.msra.mxu0 %v506
  %1151 = vmatprep.subr.mxu0 %v511
  %1152 = vmatpush1.msra.mxu0 %v510
  %1153 = vmatprep.subr.mxu0 %v515
  %1154 = vmatpush1.msra.mxu0 %v514
  %1155 = vmatprep.subr.mxu0 %v519
  %1156 = vmatpush1.msra.mxu0 %v518
  %1157 = vmatprep.subr.mxu0 %v523
  %1158 = vmatpush1.msra.mxu0 %v522
  %1159 = vmatprep.subr.mxu0 %v527
  %1160 = vmatpush1.msra.mxu0 %v526
  %1161 = vmatprep.subr.mxu0 %v531
  %1162 = vmatpush1.msra.mxu0 %v530
  %1163 = vmatprep.subr.mxu0 %v535
  %1164 = vmatpush1.msra.mxu0 %v534
  %1165 = vmatprep.subr.mxu0 %v539
  %1166 = vmatpush1.msra.mxu0 %v538
  %1167 = vmatprep.mubr.f32.mxu0 %v597
  %1168 = vmatmul.mubr.f32.gmra.mrb[0].mxu0 %v595
  %v1169 = vpop.f32.mrb[0].mxu0
  %v1170 = vadd.f32 %v1099, %v1169
  %v1171 = vpop.f32.mrb[0].mxu0
  %v1172 = vadd.f32 %v1101, %v1171
  %1173 = vdwg.mxu0
  %v1174 = vmax.f32 %v886, 0.0
  %v1175 = vmax.f32 %v888, 0.0
  %v1176 = vmax.f32 %v1170, 0.0
  %v1177 = vmax.f32 %v1172, 0.0
  %v1178 = vld [vmem:[%s3] sm:$0xff]
  %v1179 = vld [vmem:[%s3 + $0x8] sm:$0xff]
  %v1180 = vld [vmem:[%s3 + $0x10] sm:$0xff]
  %v1181 = vld [vmem:[%s3 + $0x18] sm:$0xff]
  %v1182 = vld [vmem:[%s3 + $0x20] sm:$0xff]
  %v1183 = vld [vmem:[%s3 + $0x28] sm:$0xff]
  %v1184 = vld [vmem:[%s3 + $0x30] sm:$0xff]
  %v1185 = vld [vmem:[%s3 + $0x38] sm:$0xff]
  %v1186 = vld [vmem:[%s3 + $0x40] sm:$0xff]
  %v1187 = vld [vmem:[%s3 + $0x48] sm:$0xff]
  %v1188 = vld [vmem:[%s3 + $0x50] sm:$0xff]
  %v1189 = vld [vmem:[%s3 + $0x58] sm:$0xff]
  %v1190 = vld [vmem:[%s3 + $0x60] sm:$0xff]
  %v1191 = vld [vmem:[%s3 + $0x68] sm:$0xff]
  %v1192 = vld [vmem:[%s3 + $0x70] sm:$0xff]
  %v1193 = vld [vmem:[%s3 + $0x78] sm:$0xff]
  %v1194 = vld [vmem:[%s3 + $0x80] sm:$0xff]
  %v1195 = vld [vmem:[%s3 + $0x88] sm:$0xff]
  %v1196 = vld [vmem:[%s3 + $0x90] sm:$0xff]
  %v1197 = vld [vmem:[%s3 + $0x98] sm:$0xff]
  %v1198 = vld [vmem:[%s3 + $0xa0] sm:$0xff]
  %v1199 = vld [vmem:[%s3 + $0xa8] sm:$0xff]
  %v1200 = vld [vmem:[%s3 + $0xb0] sm:$0xff]
  %v1201 = vld [vmem:[%s3 + $0xb8] sm:$0xff]
  %v1202 = vld [vmem:[%s3 + $0xc0] sm:$0xff]
  %v1203 = vld [vmem:[%s3 + $0xc8] sm:$0xff]
  %v1204 = vld [vmem:[%s3 + $0xd0] sm:$0xff]
  %v1205 = vld [vmem:[%s3 + $0xd8] sm:$0xff]
  %v1206 = vld [vmem:[%s3 + $0xe0] sm:$0xff]
  %v1207 = vld [vmem:[%s3 + $0xe8] sm:$0xff]
  %v1208 = vld [vmem:[%s3 + $0xf0] sm:$0xff]
  %v1209 = vld [vmem:[%s3 + $0xf8] sm:$0xff]
  %v1210 = vld [vmem:[%s3 + $0x100] sm:$0xff]
  %v1211 = vld [vmem:[%s3 + $0x108] sm:$0xff]
  %v1212 = vld [vmem:[%s3 + $0x110] sm:$0xff]
  %v1213 = vld [vmem:[%s3 + $0x118] sm:$0xff]
  %v1214 = vld [vmem:[%s3 + $0x120] sm:$0xff]
  %v1215 = vld [vmem:[%s3 + $0x128] sm:$0xff]
  %v1216 = vld [vmem:[%s3 + $0x130] sm:$0xff]
  %v1217 = vld [vmem:[%s3 + $0x138] sm:$0xff]
  %v1218 = vld [vmem:[%s3 + $0x140] sm:$0xff]
  %v1219 = vld [vmem:[%s3 + $0x148] sm:$0xff]
  %v1220 = vld [vmem:[%s3 + $0x150] sm:$0xff]
  %v1221 = vld [vmem:[%s3 + $0x158] sm:$0xff]
  %v1222 = vld [vmem:[%s3 + $0x160] sm:$0xff]
  %v1223 = vld [vmem:[%s3 + $0x168] sm:$0xff]
  %v1224 = vld [vmem:[%s3 + $0x170] sm:$0xff]
  %v1225 = vld [vmem:[%s3 + $0x178] sm:$0xff]
  %v1226 = vld [vmem:[%s3 + $0x180] sm:$0xff]
  %v1227 = vld [vmem:[%s3 + $0x188] sm:$0xff]
  %v1228 = vld [vmem:[%s3 + $0x190] sm:$0xff]
  %v1229 = vld [vmem:[%s3 + $0x198] sm:$0xff]
  %v1230 = vld [vmem:[%s3 + $0x1a0] sm:$0xff]
  %v1231 = vld [vmem:[%s3 + $0x1a8] sm:$0xff]
  %v1232 = vld [vmem:[%s3 + $0x1b0] sm:$0xff]
  %v1233 = vld [vmem:[%s3 + $0x1b8] sm:$0xff]
  %v1234 = vld [vmem:[%s3 + $0x1c0] sm:$0xff]
  %v1235 = vld [vmem:[%s3 + $0x1c8] sm:$0xff]
  %v1236 = vld [vmem:[%s3 + $0x1d0] sm:$0xff]
  %v1237 = vld [vmem:[%s3 + $0x1d8] sm:$0xff]
  %v1238 = vld [vmem:[%s3 + $0x1e0] sm:$0xff]
  %v1239 = vld [vmem:[%s3 + $0x1e8] sm:$0xff]
  %v1240 = vld [vmem:[%s3 + $0x1f0] sm:$0xff]
  %v1241 = vld [vmem:[%s3 + $0x1f8] sm:$0xff]
  %v1242 = vld [vmem:[%s3 + $0x200] sm:$0xff]
  %v1243 = vld [vmem:[%s3 + $0x208] sm:$0xff]
  %v1244 = vld [vmem:[%s3 + $0x210] sm:$0xff]
  %v1245 = vld [vmem:[%s3 + $0x218] sm:$0xff]
  %v1246 = vld [vmem:[%s3 + $0x220] sm:$0xff]
  %v1247 = vld [vmem:[%s3 + $0x228] sm:$0xff]
  %v1248 = vld [vmem:[%s3 + $0x230] sm:$0xff]
  %v1249 = vld [vmem:[%s3 + $0x238] sm:$0xff]
  %v1250 = vld [vmem:[%s3 + $0x240] sm:$0xff]
  %v1251 = vld [vmem:[%s3 + $0x248] sm:$0xff]
  %v1252 = vld [vmem:[%s3 + $0x250] sm:$0xff]
  %v1253 = vld [vmem:[%s3 + $0x258] sm:$0xff]
  %v1254 = vld [vmem:[%s3 + $0x260] sm:$0xff]
  %v1255 = vld [vmem:[%s3 + $0x268] sm:$0xff]
  %v1256 = vld [vmem:[%s3 + $0x270] sm:$0xff]
  %v1257 = vld [vmem:[%s3 + $0x278] sm:$0xff]
  %v1258 = vld [vmem:[%s3 + $0x280] sm:$0xff]
  %v1259 = vld [vmem:[%s3 + $0x288] sm:$0xff]
  %v1260 = vld [vmem:[%s3 + $0x290] sm:$0xff]
  %v1261 = vld [vmem:[%s3 + $0x298] sm:$0xff]
  %v1262 = vld [vmem:[%s3 + $0x2a0] sm:$0xff]
  %v1263 = vld [vmem:[%s3 + $0x2a8] sm:$0xff]
  %v1264 = vld [vmem:[%s3 + $0x2b0] sm:$0xff]
  %v1265 = vld [vmem:[%s3 + $0x2b8] sm:$0xff]
  %v1266 = vld [vmem:[%s3 + $0x2c0] sm:$0xff]
  %v1267 = vld [vmem:[%s3 + $0x2c8] sm:$0xff]
  %v1268 = vld [vmem:[%s3 + $0x2d0] sm:$0xff]
  %v1269 = vld [vmem:[%s3 + $0x2d8] sm:$0xff]
  %v1270 = vld [vmem:[%s3 + $0x2e0] sm:$0xff]
  %v1271 = vld [vmem:[%s3 + $0x2e8] sm:$0xff]
  %v1272 = vld [vmem:[%s3 + $0x2f0] sm:$0xff]
  %v1273 = vld [vmem:[%s3 + $0x2f8] sm:$0xff]
  %v1274 = vld [vmem:[%s3 + $0x300] sm:$0xff]
  %v1275 = vld [vmem:[%s3 + $0x308] sm:$0xff]
  %v1276 = vld [vmem:[%s3 + $0x310] sm:$0xff]
  %v1277 = vld [vmem:[%s3 + $0x318] sm:$0xff]
  %v1278 = vld [vmem:[%s3 + $0x320] sm:$0xff]
  %v1279 = vld [vmem:[%s3 + $0x328] sm:$0xff]
  %v1280 = vld [vmem:[%s3 + $0x330] sm:$0xff]
  %v1281 = vld [vmem:[%s3 + $0x338] sm:$0xff]
  %v1282 = vld [vmem:[%s3 + $0x340] sm:$0xff]
  %v1283 = vld [vmem:[%s3 + $0x348] sm:$0xff]
  %v1284 = vld [vmem:[%s3 + $0x350] sm:$0xff]
  %v1285 = vld [vmem:[%s3 + $0x358] sm:$0xff]
  %v1286 = vld [vmem:[%s3 + $0x360] sm:$0xff]
  %v1287 = vld [vmem:[%s3 + $0x368] sm:$0xff]
  %v1288 = vld [vmem:[%s3 + $0x370] sm:$0xff]
  %v1289 = vld [vmem:[%s3 + $0x378] sm:$0xff]
  %v1290 = vld [vmem:[%s3 + $0x380] sm:$0xff]
  %v1291 = vld [vmem:[%s3 + $0x388] sm:$0xff]
  %v1292 = vld [vmem:[%s3 + $0x390] sm:$0xff]
  %v1293 = vld [vmem:[%s3 + $0x398] sm:$0xff]
  %v1294 = vld [vmem:[%s3 + $0x3a0] sm:$0xff]
  %v1295 = vld [vmem:[%s3 + $0x3a8] sm:$0xff]
  %v1296 = vld [vmem:[%s3 + $0x3b0] sm:$0xff]
  %v1297 = vld [vmem:[%s3 + $0x3b8] sm:$0xff]
  %v1298 = vld [vmem:[%s3 + $0x3c0] sm:$0xff]
  %v1299 = vld [vmem:[%s3 + $0x3c8] sm:$0xff]
  %v1300 = vld [vmem:[%s3 + $0x3d0] sm:$0xff]
  %v1301 = vld [vmem:[%s3 + $0x3d8] sm:$0xff]
  %v1302 = vld [vmem:[%s3 + $0x3e0] sm:$0xff]
  %v1303 = vld [vmem:[%s3 + $0x3e8] sm:$0xff]
  %v1304 = vld [vmem:[%s3 + $0x3f0] sm:$0xff]
  %v1305 = vld [vmem:[%s3 + $0x3f8] sm:$0xff]
  %v1306 = vld [vmem:[%s4] sm:$0x3]
  %v1308 = vlaneseq
  %v1309 = vshrl.u32 %v1308, 7
  %v1310 = vsub.s32 0, %v1309
  %v1311 = vrot.slane %v1306, %v1310
  %v1312 = vlaneseq
  %v1313 = vshrl.u32 %v1312, 7
  %v1314 = vsub.s32 1, %v1313
  %v1315 = vrot.slane %v1306, %v1314
  %1318 = vmatprep.subr.mxu0 %v1179
  %1319 = vmatpush1.msra.mxu0 %v1178
  %1320 = vmatprep.subr.mxu0 %v1181
  %1321 = vmatpush1.msra.mxu0 %v1180
  %1322 = vmatprep.subr.mxu0 %v1183
  %1323 = vmatpush1.msra.mxu0 %v1182
  %1324 = vmatprep.subr.mxu0 %v1185
  %1325 = vmatpush1.msra.mxu0 %v1184
  %1326 = vmatprep.subr.mxu0 %v1187
  %1327 = vmatpush1.msra.mxu0 %v1186
  %1328 = vmatprep.subr.mxu0 %v1189
  %1329 = vmatpush1.msra.mxu0 %v1188
  %1330 = vmatprep.subr.mxu0 %v1191
  %1331 = vmatpush1.msra.mxu0 %v1190
  %1332 = vmatprep.subr.mxu0 %v1193
  %1333 = vmatpush1.msra.mxu0 %v1192
  %1334 = vmatprep.subr.mxu0 %v1195
  %1335 = vmatpush1.msra.mxu0 %v1194
  %1336 = vmatprep.subr.mxu0 %v1197
  %1337 = vmatpush1.msra.mxu0 %v1196
  %1338 = vmatprep.subr.mxu0 %v1199
  %1339 = vmatpush1.msra.mxu0 %v1198
  %1340 = vmatprep.subr.mxu0 %v1201
  %1341 = vmatpush1.msra.mxu0 %v1200
  %1342 = vmatprep.subr.mxu0 %v1203
  %1343 = vmatpush1.msra.mxu0 %v1202
  %1344 = vmatprep.subr.mxu0 %v1205
  %1345 = vmatpush1.msra.mxu0 %v1204
  %1346 = vmatprep.subr.mxu0 %v1207
  %1347 = vmatpush1.msra.mxu0 %v1206
  %1348 = vmatprep.subr.mxu0 %v1209
  %1349 = vmatpush1.msra.mxu0 %v1208
  %1350 = vmatprep.subr.mxu0 %v1211
  %1351 = vmatpush1.msra.mxu0 %v1210
  %1352 = vmatprep.subr.mxu0 %v1213
  %1353 = vmatpush1.msra.mxu0 %v1212
  %1354 = vmatprep.subr.mxu0 %v1215
  %1355 = vmatpush1.msra.mxu0 %v1214
  %1356 = vmatprep.subr.mxu0 %v1217
  %1357 = vmatpush1.msra.mxu0 %v1216
  %1358 = vmatprep.subr.mxu0 %v1219
  %1359 = vmatpush1.msra.mxu0 %v1218
  %1360 = vmatprep.subr.mxu0 %v1221
  %1361 = vmatpush1.msra.mxu0 %v1220
  %1362 = vmatprep.subr.mxu0 %v1223
  %1363 = vmatpush1.msra.mxu0 %v1222
  %1364 = vmatprep.subr.mxu0 %v1225
  %1365 = vmatpush1.msra.mxu0 %v1224
  %1366 = vmatprep.subr.mxu0 %v1227
  %1367 = vmatpush1.msra.mxu0 %v1226
  %1368 = vmatprep.subr.mxu0 %v1229
  %1369 = vmatpush1.msra.mxu0 %v1228
  %1370 = vmatprep.subr.mxu0 %v1231
  %1371 = vmatpush1.msra.mxu0 %v1230
  %1372 = vmatprep.subr.mxu0 %v1233
  %1373 = vmatpush1.msra.mxu0 %v1232
  %1374 = vmatprep.subr.mxu0 %v1235
  %1375 = vmatpush1.msra.mxu0 %v1234
  %1376 = vmatprep.subr.mxu0 %v1237
  %1377 = vmatpush1.msra.mxu0 %v1236
  %1378 = vmatprep.subr.mxu0 %v1239
  %1379 = vmatpush1.msra.mxu0 %v1238
  %1380 = vmatprep.subr.mxu0 %v1241
  %1381 = vmatpush1.msra.mxu0 %v1240
  %1382 = vmatprep.mubr.f32.mxu0 %v1175
  %1383 = vmatmul.mubr.f32.gmra.mrb[0].mxu0 %v1174
  %v1384 = vpop.f32.mrb[0].mxu0
  %v1385 = vadd.f32 %v1311, %v1384
  %v1386 = vpop.f32.mrb[0].mxu0
  %v1387 = vadd.f32 %v1315, %v1386
  %1388 = vdwg.mxu0
  %1389 = vmatprep.subr.mxu0 %v1243
  %1390 = vmatpush1.msra.mxu0 %v1242
  %1391 = vmatprep.subr.mxu0 %v1245
  %1392 = vmatpush1.msra.mxu0 %v1244
  %1393 = vmatprep.subr.mxu0 %v1247
  %1394 = vmatpush1.msra.mxu0 %v1246
  %1395 = vmatprep.subr.mxu0 %v1249
  %1396 = vmatpush1.msra.mxu0 %v1248
  %1397 = vmatprep.subr.mxu0 %v1251
  %1398 = vmatpush1.msra.mxu0 %v1250
  %1399 = vmatprep.subr.mxu0 %v1253
  %1400 = vmatpush1.msra.mxu0 %v1252
  %1401 = vmatprep.subr.mxu0 %v1255
  %1402 = vmatpush1.msra.mxu0 %v1254
  %1403 = vmatprep.subr.mxu0 %v1257
  %1404 = vmatpush1.msra.mxu0 %v1256
  %1405 = vmatprep.subr.mxu0 %v1259
  %1406 = vmatpush1.msra.mxu0 %v1258
  %1407 = vmatprep.subr.mxu0 %v1261
  %1408 = vmatpush1.msra.mxu0 %v1260
  %1409 = vmatprep.subr.mxu0 %v1263
  %1410 = vmatpush1.msra.mxu0 %v1262
  %1411 = vmatprep.subr.mxu0 %v1265
  %1412 = vmatpush1.msra.mxu0 %v1264
  %1413 = vmatprep.subr.mxu0 %v1267
  %1414 = vmatpush1.msra.mxu0 %v1266
  %1415 = vmatprep.subr.mxu0 %v1269
  %1416 = vmatpush1.msra.mxu0 %v1268
  %1417 = vmatprep.subr.mxu0 %v1271
  %1418 = vmatpush1.msra.mxu0 %v1270
  %1419 = vmatprep.subr.mxu0 %v1273
  %1420 = vmatpush1.msra.mxu0 %v1272
  %1421 = vmatprep.subr.mxu0 %v1275
  %1422 = vmatpush1.msra.mxu0 %v1274
  %1423 = vmatprep.subr.mxu0 %v1277
  %1424 = vmatpush1.msra.mxu0 %v1276
  %1425 = vmatprep.subr.mxu0 %v1279
  %1426 = vmatpush1.msra.mxu0 %v1278
  %1427 = vmatprep.subr.mxu0 %v1281
  %1428 = vmatpush1.msra.mxu0 %v1280
  %1429 = vmatprep.subr.mxu0 %v1283
  %1430 = vmatpush1.msra.mxu0 %v1282
  %1431 = vmatprep.subr.mxu0 %v1285
  %1432 = vmatpush1.msra.mxu0 %v1284
  %1433 = vmatprep.subr.mxu0 %v1287
  %1434 = vmatpush1.msra.mxu0 %v1286
  %1435 = vmatprep.subr.mxu0 %v1289
  %1436 = vmatpush1.msra.mxu0 %v1288
  %1437 = vmatprep.subr.mxu0 %v1291
  %1438 = vmatpush1.msra.mxu0 %v1290
  %1439 = vmatprep.subr.mxu0 %v1293
  %1440 = vmatpush1.msra.mxu0 %v1292
  %1441 = vmatprep.subr.mxu0 %v1295
  %1442 = vmatpush1.msra.mxu0 %v1294
  %1443 = vmatprep.subr.mxu0 %v1297
  %1444 = vmatpush1.msra.mxu0 %v1296
  %1445 = vmatprep.subr.mxu0 %v1299
  %1446 = vmatpush1.msra.mxu0 %v1298
  %1447 = vmatprep.subr.mxu0 %v1301
  %1448 = vmatpush1.msra.mxu0 %v1300
  %1449 = vmatprep.subr.mxu0 %v1303
  %1450 = vmatpush1.msra.mxu0 %v1302
  %1451 = vmatprep.subr.mxu0 %v1305
  %1452 = vmatpush1.msra.mxu0 %v1304
  %1453 = vmatprep.mubr.f32.mxu0 %v1177
  %1454 = vmatmul.mubr.f32.gmra.mrb[0].mxu0 %v1176
  %v1455 = vpop.f32.mrb[0].mxu0
  %v1456 = vadd.f32 %v1385, %v1455
  %v1457 = vpop.f32.mrb[0].mxu0
  %v1458 = vadd.f32 %v1387, %v1457
  %1459 = vdwg.mxu0
  %v1460 = vmax.f32 %v1456, 0.0
  %v1461 = vmax.f32 %v1458, 0.0
  %v1462 = vld [vmem:[%s5] sm:$0xff]
  %v1463 = vld [vmem:[%s5 + $0x8] sm:$0xff]
  %v1464 = vld [vmem:[%s5 + $0x10] sm:$0xff]
  %v1465 = vld [vmem:[%s5 + $0x18] sm:$0xff]
  %v1466 = vld [vmem:[%s5 + $0x20] sm:$0xff]
  %v1467 = vld [vmem:[%s5 + $0x28] sm:$0xff]
  %v1468 = vld [vmem:[%s5 + $0x30] sm:$0xff]
  %v1469 = vld [vmem:[%s5 + $0x38] sm:$0xff]
  %v1470 = vld [vmem:[%s5 + $0x40] sm:$0xff]
  %v1471 = vld [vmem:[%s5 + $0x48] sm:$0xff]
  %v1472 = vld [vmem:[%s5 + $0x50] sm:$0xff]
  %v1473 = vld [vmem:[%s5 + $0x58] sm:$0xff]
  %v1474 = vld [vmem:[%s5 + $0x60] sm:$0xff]
  %v1475 = vld [vmem:[%s5 + $0x68] sm:$0xff]
  %v1476 = vld [vmem:[%s5 + $0x70] sm:$0xff]
  %v1477 = vld [vmem:[%s5 + $0x78] sm:$0xff]
  %v1478 = vld [vmem:[%s5 + $0x80] sm:$0xff]
  %v1479 = vld [vmem:[%s5 + $0x88] sm:$0xff]
  %v1480 = vld [vmem:[%s5 + $0x90] sm:$0xff]
  %v1481 = vld [vmem:[%s5 + $0x98] sm:$0xff]
  %v1482 = vld [vmem:[%s5 + $0xa0] sm:$0xff]
  %v1483 = vld [vmem:[%s5 + $0xa8] sm:$0xff]
  %v1484 = vld [vmem:[%s5 + $0xb0] sm:$0xff]
  %v1485 = vld [vmem:[%s5 + $0xb8] sm:$0xff]
  %v1486 = vld [vmem:[%s5 + $0xc0] sm:$0xff]
  %v1487 = vld [vmem:[%s5 + $0xc8] sm:$0xff]
  %v1488 = vld [vmem:[%s5 + $0xd0] sm:$0xff]
  %v1489 = vld [vmem:[%s5 + $0xd8] sm:$0xff]
  %v1490 = vld [vmem:[%s5 + $0xe0] sm:$0xff]
  %v1491 = vld [vmem:[%s5 + $0xe8] sm:$0xff]
  %v1492 = vld [vmem:[%s5 + $0xf0] sm:$0xff]
  %v1493 = vld [vmem:[%s5 + $0xf8] sm:$0xff]
  %v1494 = vld [vmem:[%s5 + $0x100] sm:$0xff]
  %v1495 = vld [vmem:[%s5 + $0x108] sm:$0xff]
  %v1496 = vld [vmem:[%s5 + $0x110] sm:$0xff]
  %v1497 = vld [vmem:[%s5 + $0x118] sm:$0xff]
  %v1498 = vld [vmem:[%s5 + $0x120] sm:$0xff]
  %v1499 = vld [vmem:[%s5 + $0x128] sm:$0xff]
  %v1500 = vld [vmem:[%s5 + $0x130] sm:$0xff]
  %v1501 = vld [vmem:[%s5 + $0x138] sm:$0xff]
  %v1502 = vld [vmem:[%s5 + $0x140] sm:$0xff]
  %v1503 = vld [vmem:[%s5 + $0x148] sm:$0xff]
  %v1504 = vld [vmem:[%s5 + $0x150] sm:$0xff]
  %v1505 = vld [vmem:[%s5 + $0x158] sm:$0xff]
  %v1506 = vld [vmem:[%s5 + $0x160] sm:$0xff]
  %v1507 = vld [vmem:[%s5 + $0x168] sm:$0xff]
  %v1508 = vld [vmem:[%s5 + $0x170] sm:$0xff]
  %v1509 = vld [vmem:[%s5 + $0x178] sm:$0xff]
  %v1510 = vld [vmem:[%s5 + $0x180] sm:$0xff]
  %v1511 = vld [vmem:[%s5 + $0x188] sm:$0xff]
  %v1512 = vld [vmem:[%s5 + $0x190] sm:$0xff]
  %v1513 = vld [vmem:[%s5 + $0x198] sm:$0xff]
  %v1514 = vld [vmem:[%s5 + $0x1a0] sm:$0xff]
  %v1515 = vld [vmem:[%s5 + $0x1a8] sm:$0xff]
  %v1516 = vld [vmem:[%s5 + $0x1b0] sm:$0xff]
  %v1517 = vld [vmem:[%s5 + $0x1b8] sm:$0xff]
  %v1518 = vld [vmem:[%s5 + $0x1c0] sm:$0xff]
  %v1519 = vld [vmem:[%s5 + $0x1c8] sm:$0xff]
  %v1520 = vld [vmem:[%s5 + $0x1d0] sm:$0xff]
  %v1521 = vld [vmem:[%s5 + $0x1d8] sm:$0xff]
  %v1522 = vld [vmem:[%s5 + $0x1e0] sm:$0xff]
  %v1523 = vld [vmem:[%s5 + $0x1e8] sm:$0xff]
  %v1524 = vld [vmem:[%s5 + $0x1f0] sm:$0xff]
  %v1525 = vld [vmem:[%s5 + $0x1f8] sm:$0xff]
  %v1526 = vld [vmem:[%s6] sm:$0x3]
  %v1528 = vlaneseq
  %v1529 = vshrl.u32 %v1528, 7
  %v1530 = vsub.s32 0, %v1529
  %v1531 = vrot.slane %v1526, %v1530
  %v1532 = vlaneseq
  %v1533 = vshrl.u32 %v1532, 7
  %v1534 = vsub.s32 1, %v1533
  %v1535 = vrot.slane %v1526, %v1534
  %1538 = vmatprep.subr.mxu0 %v1463
  %1539 = vmatpush1.msra.mxu0 %v1462
  %1540 = vmatprep.subr.mxu0 %v1465
  %1541 = vmatpush1.msra.mxu0 %v1464
  %1542 = vmatprep.subr.mxu0 %v1467
  %1543 = vmatpush1.msra.mxu0 %v1466
  %1544 = vmatprep.subr.mxu0 %v1469
  %1545 = vmatpush1.msra.mxu0 %v1468
  %1546 = vmatprep.subr.mxu0 %v1471
  %1547 = vmatpush1.msra.mxu0 %v1470
  %1548 = vmatprep.subr.mxu0 %v1473
  %1549 = vmatpush1.msra.mxu0 %v1472
  %1550 = vmatprep.subr.mxu0 %v1475
  %1551 = vmatpush1.msra.mxu0 %v1474
  %1552 = vmatprep.subr.mxu0 %v1477
  %1553 = vmatpush1.msra.mxu0 %v1476
  %1554 = vmatprep.subr.mxu0 %v1479
  %1555 = vmatpush1.msra.mxu0 %v1478
  %1556 = vmatprep.subr.mxu0 %v1481
  %1557 = vmatpush1.msra.mxu0 %v1480
  %1558 = vmatprep.subr.mxu0 %v1483
  %1559 = vmatpush1.msra.mxu0 %v1482
  %1560 = vmatprep.subr.mxu0 %v1485
  %1561 = vmatpush1.msra.mxu0 %v1484
  %1562 = vmatprep.subr.mxu0 %v1487
  %1563 = vmatpush1.msra.mxu0 %v1486
  %1564 = vmatprep.subr.mxu0 %v1489
  %1565 = vmatpush1.msra.mxu0 %v1488
  %1566 = vmatprep.subr.mxu0 %v1491
  %1567 = vmatpush1.msra.mxu0 %v1490
  %1568 = vmatprep.subr.mxu0 %v1493
  %1569 = vmatpush1.msra.mxu0 %v1492
  %1570 = vmatprep.subr.mxu0 %v1495
  %1571 = vmatpush1.msra.mxu0 %v1494
  %1572 = vmatprep.subr.mxu0 %v1497
  %1573 = vmatpush1.msra.mxu0 %v1496
  %1574 = vmatprep.subr.mxu0 %v1499
  %1575 = vmatpush1.msra.mxu0 %v1498
  %1576 = vmatprep.subr.mxu0 %v1501
  %1577 = vmatpush1.msra.mxu0 %v1500
  %1578 = vmatprep.subr.mxu0 %v1503
  %1579 = vmatpush1.msra.mxu0 %v1502
  %1580 = vmatprep.subr.mxu0 %v1505
  %1581 = vmatpush1.msra.mxu0 %v1504
  %1582 = vmatprep.subr.mxu0 %v1507
  %1583 = vmatpush1.msra.mxu0 %v1506
  %1584 = vmatprep.subr.mxu0 %v1509
  %1585 = vmatpush1.msra.mxu0 %v1508
  %1586 = vmatprep.subr.mxu0 %v1511
  %1587 = vmatpush1.msra.mxu0 %v1510
  %1588 = vmatprep.subr.mxu0 %v1513
  %1589 = vmatpush1.msra.mxu0 %v1512
  %1590 = vmatprep.subr.mxu0 %v1515
  %1591 = vmatpush1.msra.mxu0 %v1514
  %1592 = vmatprep.subr.mxu0 %v1517
  %1593 = vmatpush1.msra.mxu0 %v1516
  %1594 = vmatprep.subr.mxu0 %v1519
  %1595 = vmatpush1.msra.mxu0 %v1518
  %1596 = vmatprep.subr.mxu0 %v1521
  %1597 = vmatpush1.msra.mxu0 %v1520
  %1598 = vmatprep.subr.mxu0 %v1523
  %1599 = vmatpush1.msra.mxu0 %v1522
  %1600 = vmatprep.subr.mxu0 %v1525
  %1601 = vmatpush1.msra.mxu0 %v1524
  %1602 = vmatprep.mubr.f32.mxu0 %v1461
  %1603 = vmatmul.mubr.f32.gmra.mrb[0].mxu0 %v1460
  %v1604 = vpop.f32.mrb[0].mxu0
  %v1605 = vadd.f32 %v1531, %v1604
  %v1606 = vpop.f32.mrb[0].mxu0
  %v1607 = vadd.f32 %v1535, %v1606
  %1608 = vdwg.mxu0
  %v1611 = vcombine.low %v1605, %v1607
  %v1613 = vunpack.c.l.s4 1983009808
  %v1614 = vunpack.c.0.s8 %v1613
  %v1615 = vlaneseq
  %v1616 = vshrl.u32 %v1615, 7
  %v1617 = vsub.s32 %v1614, %v1616
  %v1618 = vrot.slane %v1611, %v1617
  %1620 = vst [vmem:[%s7] sm:$0xf] %v1618
  // Predicated region
  $region30: #{stnkd_forward.3} parent=0 // pred_check
    _
  $region31: #{stnkd_forward.3} parent=0 // pred_check_branch
    %1622 = sbr.rel (0) target = $region33
  $region32: #{stnkd_forward.3} parent=0 // pred_region
    _
  $region33: #{stnkd_forward.3} parent=0 // pred_fallthru
    _
  // Predicated region
  $region34: #{stnkd_forward.3} parent=0 // pred_check
    _
  $region35: #{stnkd_forward.3} parent=0 // pred_check_branch
    %1624 = sbr.rel (0) target = $region37
  $region36: #{stnkd_forward.3} parent=0 // pred_region
    _
  $region37: #{stnkd_forward.3} parent=0 // pred_fallthru
    _

</llo_original>
